<compile_context>
chip_gen: v5e
topology: v5e:2x2
jax: 0.10.0
libtpu: 0.0.40
codegen_flags: <defaults>
</compile_context>

<pallas_src>
import functools

import jax
import jax.numpy as jnp
from jax import lax
from jax.experimental import pallas as pl
from jax.experimental.pallas import tpu as pltpu

PATCH = 14           # DINOv2 patch size
EMBED_DIM = 128      # token feature dim (lane-dense)
NUM_HEADS = 2        # head dim = 64
MLP_DIM = 256
NUM_LAYERS = 2
NUM_CLUSTERS = 8     # VLAD clusters  -> descriptor dim = 8 * 128 = 1024

_VMEM_LIMIT = 48 * 1024 * 1024   # leave headroom below v7x's 64 MiB physical VMEM


def _cparams(*sems):
    return pltpu.CompilerParams(dimension_semantics=sems,
                                vmem_limit_bytes=_VMEM_LIMIT)


def _pick_tile(p, max_tile=512):
    """Largest multiple-of-8 row tile <= max_tile that divides p (falls back to p)."""
    t = min(max_tile, p)
    t -= t % 8
    while t >= 8:
        if p % t == 0:
            return t
        t -= 8
    return p


# ----------------------------- Pallas kernels ------------------------------

def _patch_embed_kernel(x_ref, w_ref, b_ref, pos_ref, o_ref):
    # x: (TILE, 588) bf16, w: (588, D) bf16, b: (1, D) f32, pos: (TILE, D) f32
    acc = jnp.dot(x_ref[...], w_ref[...], preferred_element_type=jnp.float32)
    o_ref[...] = (acc + b_ref[...] + pos_ref[...]).astype(o_ref.dtype)


def _ln_qkv_kernel(tok_ref, g_ref, beta_ref, w_ref, b_ref,
                   q_ref, k_ref, v_ref, *, d, scale):
    # LayerNorm (f32 stats) + fused QKV projection on a flattened row tile.
    # Emits three contiguous (TILE, D) streams; q is pre-scaled by 1/sqrt(dh).
    x = tok_ref[...].astype(jnp.float32)
    mu = jnp.mean(x, axis=-1, keepdims=True)
    xc = x - mu
    var = jnp.mean(xc * xc, axis=-1, keepdims=True)
    y = xc * lax.rsqrt(var + 1e-6) * g_ref[...] + beta_ref[...]
    qkv = jnp.dot(y.astype(jnp.bfloat16), w_ref[...],
                  preferred_element_type=jnp.float32) + b_ref[...]
    q_ref[...] = (qkv[:, :d] * scale).astype(q_ref.dtype)
    k_ref[...] = qkv[:, d:2 * d].astype(k_ref.dtype)
    v_ref[...] = qkv[:, 2 * d:3 * d].astype(v_ref.dtype)


def _attn_mlp_kernel(q_ref, k_ref, v_ref, tok_ref, pw_ref, pb_ref,
                     g2_ref, beta2_ref, w1_ref, b1_ref, w2_ref, b2_ref,
                     o_ref, *, num_heads, dh):
    # Full-KV attention (softmax over the whole (TQ, P) score tile; q already
    # scaled) + per-head output projection + residual, fused with
    # LN2 + FC1 + GELU + FC2 + residual.  No scratch, everything in vregs.
    out = tok_ref[...].astype(jnp.float32) + pb_ref[...]
    for h in range(num_heads):
        sl = slice(h * dh, (h + 1) * dh)
        q = q_ref[:, sl]                                   # (TQ, dh)  bf16
        k = k_ref[:, sl]                                   # (P,  dh)  bf16
        v = v_ref[:, sl]                                   # (P,  dh)  bf16
        s = jnp.dot(q, k.T, preferred_element_type=jnp.float32)   # (TQ, P)
        m = jnp.max(s, axis=-1, keepdims=True)
        p = jnp.exp(s - m)
        denom = jnp.sum(p, axis=-1, keepdims=True)
        o_h = jnp.dot(p.astype(jnp.bfloat16), v,
                      preferred_element_type=jnp.float32)
        o_h = o_h * pl.reciprocal(denom, approx=True)
        out = out + jnp.dot(o_h.astype(jnp.bfloat16),
                            pw_ref[h * dh:(h + 1) * dh, :],
                            preferred_element_type=jnp.float32)
    # LN2 + MLP + residual
    mu = jnp.mean(out, axis=-1, keepdims=True)
    xc = out - mu
    var = jnp.mean(xc * xc, axis=-1, keepdims=True)
    y = xc * lax.rsqrt(var + 1e-6) * g2_ref[...] + beta2_ref[...]
    h1 = jnp.dot(y.astype(jnp.bfloat16), w1_ref[...],
                 preferred_element_type=jnp.float32) + b1_ref[...]
    # TODO(synk): exact erf GELU (torch.nn.GELU default) instead of tanh approx.
    h1 = jax.nn.gelu(h1, approximate=True)
    mlp = jnp.dot(h1.astype(jnp.bfloat16), w2_ref[...],
                  preferred_element_type=jnp.float32) + b2_ref[...]
    o_ref[...] = (out + mlp).astype(o_ref.dtype)


def _ln_vlad_kernel(tok_ref, g_ref, beta_ref, c_ref, o_ref):
    # Final LayerNorm fused with hard-assignment VLAD aggregation.
    # Output is lane-dense (K, D); flattening to K*D happens in the wrapper.
    K, D = c_ref.shape
    x = tok_ref[...].astype(jnp.float32)                   # (P, D)
    mu = jnp.mean(x, axis=-1, keepdims=True)
    xc = x - mu
    var = jnp.mean(xc * xc, axis=-1, keepdims=True)
    f = xc * lax.rsqrt(var + 1e-6) * g_ref[...] + beta_ref[...]
    c = c_ref[...].astype(jnp.float32)                     # (K, D)
    # per-patch L2 normalization
    f = f * lax.rsqrt(jnp.sum(f * f, axis=-1, keepdims=True) + 1e-12)
    # hard assignment to nearest center: argmax_k (f.c_k - 0.5*|c_k|^2)
    sims = jnp.dot(f, c.T, preferred_element_type=jnp.float32) \
        - 0.5 * jnp.sum(c * c, axis=-1)[None, :]           # (P, K)
    iota = lax.broadcasted_iota(jnp.int32, sims.shape, 1)
    m = jnp.max(sims, axis=-1, keepdims=True)
    first = jnp.min(jnp.where(sims >= m, iota, K), axis=-1, keepdims=True)
    a = (iota == first).astype(jnp.float32)                # (P, K) one-hot
    # residual aggregation: V[k] = sum_p a[p,k] * (f[p] - c[k])
    V = lax.dot_general(a, f, dimension_numbers=(((0,), (0,)), ((), ())),
                        preferred_element_type=jnp.float32) \
        - jnp.sum(a, axis=0)[:, None] * c                  # (K, D)
    # intra-normalization (per cluster) then global L2 — no reshape needed.
    V = V * lax.rsqrt(jnp.sum(V * V, axis=-1, keepdims=True) + 1e-12)
    V = V * lax.rsqrt(jnp.sum(V * V) + 1e-12)
    o_ref[0] = V.astype(o_ref.dtype)


# ------------------------------ call wrappers -------------------------------

def patch_embed(x, w, b, pos, tile):
    rows, pdim = x.shape
    d = w.shape[1]
    nrt = rows // tile
    return pl.pallas_call(
        _patch_embed_kernel,
        out_shape=jax.ShapeDtypeStruct((rows, d), jnp.bfloat16),
        grid=(nrt,),
        in_specs=[
            pl.BlockSpec((tile, pdim), lambda i: (i, 0)),
            pl.BlockSpec((pdim, d), lambda i: (0, 0)),
            pl.BlockSpec((1, d), lambda i: (0, 0)),
            pl.BlockSpec((tile, d), lambda i: (i, 0)),
        ],
        out_specs=pl.BlockSpec((tile, d), lambda i: (i, 0)),
        compiler_params=_cparams("parallel"),
    )(x, w, b, pos)


def ln_qkv(tok, g, beta, w, b, tile, num_heads):
    rows, d = tok.shape
    d3 = w.shape[1]
    nrt = rows // tile
    scale = 1.0 / ((d // num_heads) ** 0.5)
    kern = functools.partial(_ln_qkv_kernel, d=d, scale=scale)
    out_sds = jax.ShapeDtypeStruct((rows, d), jnp.bfloat16)
    return pl.pallas_call(
        kern,
        out_shape=(out_sds, out_sds, out_sds),
        grid=(nrt,),
        in_specs=[
            pl.BlockSpec((tile, d), lambda i: (i, 0)),
            pl.BlockSpec((1, d), lambda i: (0, 0)),
            pl.BlockSpec((1, d), lambda i: (0, 0)),
            pl.BlockSpec((d, d3), lambda i: (0, 0)),
            pl.BlockSpec((1, d3), lambda i: (0, 0)),
        ],
        out_specs=[
            pl.BlockSpec((tile, d), lambda i: (i, 0)),
            pl.BlockSpec((tile, d), lambda i: (i, 0)),
            pl.BlockSpec((tile, d), lambda i: (i, 0)),
        ],
        compiler_params=_cparams("parallel"),
    )(tok, g, beta, w, b)


def attn_mlp_block(q, k, v, tok, blk, num_heads, n_patch, tile_q):
    rows, d = tok.shape
    batch = rows // n_patch
    nq = n_patch // tile_q
    mlp = blk['fc1_w'].shape[1]
    kern = functools.partial(_attn_mlp_kernel, num_heads=num_heads,
                             dh=d // num_heads)
    return pl.pallas_call(
        kern,
        out_shape=jax.ShapeDtypeStruct((rows, d), jnp.bfloat16),
        grid=(batch, nq),
        in_specs=[
            # q / residual tok tiles of the flattened (B*P, D) streams
            pl.BlockSpec((tile_q, d), lambda b, qi: (b * nq + qi, 0)),
            # full per-batch contiguous K / V tiles (KV fits one tile)
            pl.BlockSpec((n_patch, d), lambda b, qi: (b, 0)),
            pl.BlockSpec((n_patch, d), lambda b, qi: (b, 0)),
            pl.BlockSpec((tile_q, d), lambda b, qi: (b * nq + qi, 0)),
            pl.BlockSpec((d, d), lambda b, qi: (0, 0)),
            pl.BlockSpec((1, d), lambda b, qi: (0, 0)),
            pl.BlockSpec((1, d), lambda b, qi: (0, 0)),
            pl.BlockSpec((1, d), lambda b, qi: (0, 0)),
            pl.BlockSpec((d, mlp), lambda b, qi: (0, 0)),
            pl.BlockSpec((1, mlp), lambda b, qi: (0, 0)),
            pl.BlockSpec((mlp, d), lambda b, qi: (0, 0)),
            pl.BlockSpec((1, d), lambda b, qi: (0, 0)),
        ],
        out_specs=pl.BlockSpec((tile_q, d), lambda b, qi: (b * nq + qi, 0)),
        compiler_params=_cparams("parallel", "parallel"),
    )(q, k, v, tok, blk['proj_w'], blk['proj_b'], blk['ln2_g'], blk['ln2_b'],
      blk['fc1_w'], blk['fc1_b'], blk['fc2_w'], blk['fc2_b'])


def ln_vlad(tok, g, beta, centers, batch, n_patch):
    rows, d = tok.shape
    k = centers.shape[0]
    out = pl.pallas_call(
        _ln_vlad_kernel,
        out_shape=jax.ShapeDtypeStruct((batch, k, d), jnp.float32),
        grid=(batch,),
        in_specs=[
            pl.BlockSpec((n_patch, d), lambda b: (b, 0)),
            pl.BlockSpec((1, d), lambda b: (0, 0)),
            pl.BlockSpec((1, d), lambda b: (0, 0)),
            pl.BlockSpec((k, d), lambda b: (0, 0)),
        ],
        out_specs=pl.BlockSpec((1, k, d), lambda b: (b, 0, 0)),
        compiler_params=_cparams("parallel"),
    )(tok, g, beta, centers)
    return out.reshape(batch, k * d)


# ----------------------------- model definition -----------------------------

def init_params(key, num_patches):
    # TODO(synk): load the pretrained torch.hub AnyLoc/DINOv2 + VLAD weights;
    # here a structurally equivalent random-initialized model is used.
    d, k_cl = EMBED_DIM, NUM_CLUSTERS
    pdim = 3 * PATCH * PATCH
    keys = jax.random.split(key, 4 + NUM_LAYERS)
    params = {
        'patch_w': (jax.random.normal(keys[0], (pdim, d)) * 0.02).astype(jnp.bfloat16),
        'patch_b': jnp.zeros((1, d), jnp.float32),
        # one positional embedding per patch of the native grid
        # TODO(synk): bicubic pos-emb interpolation (DINOv2) for other grids.
        'pos_emb': jax.random.normal(keys[1], (num_patches, d), jnp.float32) * 0.02,
        'ln_f_g': jnp.ones((1, d), jnp.float32),
        'ln_f_b': jnp.zeros((1, d), jnp.float32),
        'vlad_centers': jax.random.normal(keys[2], (k_cl, d), jnp.float32) * 0.1,
        'blocks': [],
    }
    for i in range(NUM_LAYERS):
        bk = jax.random.split(keys[4 + i], 4)
        params['blocks'].append({
            'ln1_g': jnp.ones((1, d), jnp.float32),
            'ln1_b': jnp.zeros((1, d), jnp.float32),
            'qkv_w': (jax.random.normal(bk[0], (d, 3 * d)) * 0.02).astype(jnp.bfloat16),
            'qkv_b': jnp.zeros((1, 3 * d), jnp.float32),
            'proj_w': (jax.random.normal(bk[1], (d, d)) * 0.02).astype(jnp.bfloat16),
            'proj_b': jnp.zeros((1, d), jnp.float32),
            'ln2_g': jnp.ones((1, d), jnp.float32),
            'ln2_b': jnp.zeros((1, d), jnp.float32),
            'fc1_w': (jax.random.normal(bk[2], (d, MLP_DIM)) * 0.02).astype(jnp.bfloat16),
            'fc1_b': jnp.zeros((1, MLP_DIM), jnp.float32),
            'fc2_w': (jax.random.normal(bk[3], (MLP_DIM, d)) * 0.02).astype(jnp.bfloat16),
            'fc2_b': jnp.zeros((1, d), jnp.float32),
        })
    return params


def anyloc_forward(images, params):
    B, C, H, W = images.shape
    # Reference forward resizes to the nearest multiple of 14; with H, W already
    # multiples of 14 the antialiased resize is an identity.
    assert H % PATCH == 0 and W % PATCH == 0
    # TODO(synk): antialiased bilinear resize for inputs not a multiple of 14.
    gh, gw = H // PATCH, W // PATCH
    P = gh * gw
    assert params['pos_emb'].shape[0] == P, "pos_emb must have one row per patch"
    # TODO(synk): pad/mask P to a multiple of 8 for real DINOv2 grids (e.g. 37x37).
    assert P % 8 == 0, "patch count must be a multiple of 8 for this demo"

    # Patch extraction in (c, kh, kw) order — equivalent to Conv2d(k=14, s=14).
    # Done in bf16 to halve the relayout's HBM traffic.
    # TODO(synk): fold this relayout into the patch-embed kernel DMA via an
    # index_map over (b, gh, gw) patch tiles to skip one HBM pass.
    x = images.astype(jnp.bfloat16)
    x = x.reshape(B, C, gh, PATCH, gw, PATCH)
    x = x.transpose(0, 2, 4, 1, 3, 5).reshape(B * P, C * PATCH * PATCH)

    pos = jnp.broadcast_to(params['pos_emb'][None], (B, P, EMBED_DIM)
                           ).reshape(B * P, EMBED_DIM)

    rows = B * P
    tile = _pick_tile(rows)        # large row tile over flattened batch*patches
    tile_q = _pick_tile(P)         # per-batch query tile for attention

    tok = patch_embed(x, params['patch_w'], params['patch_b'], pos, tile)

    for blk in params['blocks']:
        q, k, v = ln_qkv(tok, blk['ln1_g'], blk['ln1_b'],
                         blk['qkv_w'], blk['qkv_b'], tile, NUM_HEADS)
        tok = attn_mlp_block(q, k, v, tok, blk, NUM_HEADS, P, tile_q)

    # final LayerNorm fused into the VLAD aggregation kernel -> (B, K*D)
    return ln_vlad(tok, params['ln_f_g'], params['ln_f_b'],
                   params['vlad_centers'], B, P)


# ---------------------------------- main -------------------------------------

if __name__ == "__main__":
    key = jax.random.PRNGKey(0)
    k_img, k_par = jax.random.split(key)
    # Small example: B=2, C=3, H=W=112  ->  8x8 = 64 patches of 14x14 per image.
    B, C, H, W = 2, 3, 112, 112
    images = jax.random.uniform(k_img, (B, C, H, W), jnp.float32)
    P = (H // PATCH) * (W // PATCH)
    params = init_params(k_par, P)

    fwd = jax.jit(anyloc_forward)
    desc = jax.block_until_ready(fwd(images, params))
    assert desc.shape == (B, NUM_CLUSTERS * EMBED_DIM)
    assert bool(jnp.all(jnp.isfinite(desc)))
    print("KERNEL_OK")
</pallas_src>

<mosaic_0001>
module attributes {stable_mosaic.version = 11 : i64} {
  func.func @_patch_embed_kernel(%arg0: i32, %arg1: memref<128x588xbf16, #tpu.memory_space<vmem>>, %arg2: memref<588x128xbf16, #tpu.memory_space<vmem>>, %arg3: memref<1x128xf32, #tpu.memory_space<vmem>>, %arg4: memref<128x128xf32, #tpu.memory_space<vmem>>, %arg5: memref<128x128xbf16, #tpu.memory_space<vmem>>) attributes {dimension_semantics = [#tpu.dimension_semantics<parallel>], iteration_bounds = array<i64: 1>, scalar_prefetch = 0 : i64, scratch_operands = 0 : i64, tpu.core_type = #tpu.core_type<tc>, window_params = [{transform_indices = @transform_0, window_bounds = array<i64: 128, 588>}, {pipeline_mode = #tpu.pipeline_mode<synchronous>, transform_indices = @transform_1, window_bounds = array<i64: 588, 128>}, {pipeline_mode = #tpu.pipeline_mode<synchronous>, transform_indices = @transform_2, window_bounds = array<i64: 1, 128>}, {transform_indices = @transform_3, window_bounds = array<i64: 128, 128>}, {transform_indices = @transform_4, window_bounds = array<i64: 128, 128>}]} {
    %c0 = arith.constant 0 : index
    %c0_0 = arith.constant 0 : index
    %0 = vector.load %arg1[%c0, %c0_0] : memref<128x588xbf16, #tpu.memory_space<vmem>>, vector<128x588xbf16>
    %c0_1 = arith.constant 0 : index
    %c0_2 = arith.constant 0 : index
    %1 = vector.load %arg2[%c0_1, %c0_2] : memref<588x128xbf16, #tpu.memory_space<vmem>>, vector<588x128xbf16>
    %cst = arith.constant dense<0.000000e+00> : vector<128x128xf32>
    %2 = tpu.matmul %0, %1, %cst {dimension_numbers = #tpu.dot_dimension_numbers<[1], [0], [0], [1], [0, 0, 1, 1], [], []>} : vector<128x588xbf16>, vector<588x128xbf16>, vector<128x128xf32> -> vector<128x128xf32>
    %c0_3 = arith.constant 0 : index
    %c0_4 = arith.constant 0 : index
    %3 = vector.load %arg3[%c0_3, %c0_4] : memref<1x128xf32, #tpu.memory_space<vmem>>, vector<1x128xf32>
    %4 = vector.broadcast %3 : vector<1x128xf32> to vector<128x128xf32>
    %5 = arith.addf %2, %4 : vector<128x128xf32>
    %c0_5 = arith.constant 0 : index
    %c0_6 = arith.constant 0 : index
    %6 = vector.load %arg4[%c0_5, %c0_6] : memref<128x128xf32, #tpu.memory_space<vmem>>, vector<128x128xf32>
    %7 = arith.addf %5, %6 : vector<128x128xf32>
    %8 = arith.truncf %7 : vector<128x128xf32> to vector<128x128xbf16>
    %c0_7 = arith.constant 0 : index
    %c0_8 = arith.constant 0 : index
    %9 = vector.load %arg5[%c0_7, %c0_8] : memref<128x128xbf16, #tpu.memory_space<vmem>>, vector<128x128xbf16>
    tpu.vector_store %arg5[%c0_7, %c0_8], %8 {strides = array<i32>} : memref<128x128xbf16, #tpu.memory_space<vmem>>, vector<128x128xbf16>,
    return
  }
  func.func @transform_0(%arg0: i32) -> (i32, i32) {
    %c0_i32 = arith.constant 0 : i32
    %c0_i32_0 = arith.constant 0 : i32
    return %arg0, %c0_i32 : i32, i32
  }
  func.func @transform_1(%arg0: i32) -> (i32, i32) {
    %c0_i32 = arith.constant 0 : i32
    %c0_i32_0 = arith.constant 0 : i32
    %c0_i32_1 = arith.constant 0 : i32
    return %c0_i32, %c0_i32_0 : i32, i32
  }
  func.func @transform_2(%arg0: i32) -> (i32, i32) {
    %c0_i32 = arith.constant 0 : i32
    %c0_i32_0 = arith.constant 0 : i32
    %c0_i32_1 = arith.constant 0 : i32
    return %c0_i32, %c0_i32_0 : i32, i32
  }
  func.func @transform_3(%arg0: i32) -> (i32, i32) {
    %c0_i32 = arith.constant 0 : i32
    %c0_i32_0 = arith.constant 0 : i32
    return %arg0, %c0_i32 : i32, i32
  }
  func.func @transform_4(%arg0: i32) -> (i32, i32) {
    %c0_i32 = arith.constant 0 : i32
    %c0_i32_0 = arith.constant 0 : i32
    return %arg0, %c0_i32 : i32, i32
  }
}

module attributes {stable_mosaic.version = 11 : i64} {
  func.func @_ln_qkv_kernel(%arg0: i32, %arg1: memref<128x128xbf16, #tpu.memory_space<vmem>>, %arg2: memref<1x128xf32, #tpu.memory_space<vmem>>, %arg3: memref<1x128xf32, #tpu.memory_space<vmem>>, %arg4: memref<128x384xbf16, #tpu.memory_space<vmem>>, %arg5: memref<1x384xf32, #tpu.memory_space<vmem>>, %arg6: memref<128x128xbf16, #tpu.memory_space<vmem>>, %arg7: memref<128x128xbf16, #tpu.memory_space<vmem>>, %arg8: memref<128x128xbf16, #tpu.memory_space<vmem>>) attributes {dimension_semantics = [#tpu.dimension_semantics<parallel>], iteration_bounds = array<i64: 1>, scalar_prefetch = 0 : i64, scratch_operands = 0 : i64, tpu.core_type = #tpu.core_type<tc>, window_params = [{transform_indices = @transform_0, window_bounds = array<i64: 128, 128>}, {pipeline_mode = #tpu.pipeline_mode<synchronous>, transform_indices = @transform_1, window_bounds = array<i64: 1, 128>}, {pipeline_mode = #tpu.pipeline_mode<synchronous>, transform_indices = @transform_2, window_bounds = array<i64: 1, 128>}, {pipeline_mode = #tpu.pipeline_mode<synchronous>, transform_indices = @transform_3, window_bounds = array<i64: 128, 384>}, {pipeline_mode = #tpu.pipeline_mode<synchronous>, transform_indices = @transform_4, window_bounds = array<i64: 1, 384>}, {transform_indices = @transform_5, window_bounds = array<i64: 128, 128>}, {transform_indices = @transform_6, window_bounds = array<i64: 128, 128>}, {transform_indices = @transform_7, window_bounds = array<i64: 128, 128>}]} {
    %c0 = arith.constant 0 : index
    %c0_0 = arith.constant 0 : index
    %0 = vector.load %arg1[%c0, %c0_0] : memref<128x128xbf16, #tpu.memory_space<vmem>>, vector<128x128xbf16>
    %1 = arith.extf %0 : vector<128x128xbf16> to vector<128x128xf32>
    %cst = arith.constant dense<0.000000e+00> : vector<128xf32>
    %2 = vector.multi_reduction <add>, %1, %cst [1] : vector<128x128xf32> to vector<128xf32>
    %3 = vector.shape_cast %2 : vector<128xf32> to vector<128x1xf32>
    %cst_1 = arith.constant 1.280000e+02 : f32
    %4 = vector.broadcast %cst_1 : f32 to vector<128x1xf32>
    %5 = arith.divf %3, %4 : vector<128x1xf32>
    %6 = vector.broadcast %5 : vector<128x1xf32> to vector<128x128xf32>
    %7 = arith.subf %1, %6 : vector<128x128xf32>
    %8 = arith.mulf %7, %7 : vector<128x128xf32>
    %cst_2 = arith.constant dense<0.000000e+00> : vector<128xf32>
    %9 = vector.multi_reduction <add>, %8, %cst_2 [1] : vector<128x128xf32> to vector<128xf32>
    %10 = vector.shape_cast %9 : vector<128xf32> to vector<128x1xf32>
    %cst_3 = arith.constant 1.280000e+02 : f32
    %11 = vector.broadcast %cst_3 : f32 to vector<128x1xf32>
    %12 = arith.divf %10, %11 : vector<128x1xf32>
    %cst_4 = arith.constant 9.99999997E-7 : f32
    %13 = vector.broadcast %cst_4 : f32 to vector<128x1xf32>
    %14 = arith.addf %12, %13 : vector<128x1xf32>
    %15 = math.rsqrt %14 : vector<128x1xf32>
    %16 = vector.broadcast %15 : vector<128x1xf32> to vector<128x128xf32>
    %17 = arith.mulf %7, %16 : vector<128x128xf32>
    %c0_5 = arith.constant 0 : index
    %c0_6 = arith.constant 0 : index
    %18 = vector.load %arg2[%c0_5, %c0_6] : memref<1x128xf32, #tpu.memory_space<vmem>>, vector<1x128xf32>
    %19 = vector.broadcast %18 : vector<1x128xf32> to vector<128x128xf32>
    %20 = arith.mulf %17, %19 : vector<128x128xf32>
    %c0_7 = arith.constant 0 : index
    %c0_8 = arith.constant 0 : index
    %21 = vector.load %arg3[%c0_7, %c0_8] : memref<1x128xf32, #tpu.memory_space<vmem>>, vector<1x128xf32>
    %22 = vector.broadcast %21 : vector<1x128xf32> to vector<128x128xf32>
    %23 = arith.addf %20, %22 : vector<128x128xf32>
    %24 = arith.truncf %23 : vector<128x128xf32> to vector<128x128xbf16>
    %c0_9 = arith.constant 0 : index
    %c0_10 = arith.constant 0 : index
    %25 = vector.load %arg4[%c0_9, %c0_10] : memref<128x384xbf16, #tpu.memory_space<vmem>>, vector<128x384xbf16>
    %cst_11 = arith.constant dense<0.000000e+00> : vector<128x384xf32>
    %26 = tpu.matmul %24, %25, %cst_11 {dimension_numbers = #tpu.dot_dimension_numbers<[1], [0], [0], [1], [0, 0, 1, 1], [], []>} : vector<128x128xbf16>, vector<128x384xbf16>, vector<128x384xf32> -> vector<128x384xf32>
    %c0_12 = arith.constant 0 : index
    %c0_13 = arith.constant 0 : index
    %27 = vector.load %arg5[%c0_12, %c0_13] : memref<1x384xf32, #tpu.memory_space<vmem>>, vector<1x384xf32>
    %28 = vector.broadcast %27 : vector<1x384xf32> to vector<128x384xf32>
    %29 = arith.addf %26, %28 : vector<128x384xf32>
    %30 = vector.extract_strided_slice %29 {offsets = [0, 0], sizes = [128, 128], strides = [1, 1]} : vector<128x384xf32> to vector<128x128xf32>
    %cst_14 = arith.constant 1.250000e-01 : f32
    %31 = vector.broadcast %cst_14 : f32 to vector<128x128xf32>
    %32 = arith.mulf %30, %31 : vector<128x128xf32>
    %33 = arith.truncf %32 : vector<128x128xf32> to vector<128x128xbf16>
    %c0_15 = arith.constant 0 : index
    %c0_16 = arith.constant 0 : index
    %34 = vector.load %arg6[%c0_15, %c0_16] : memref<128x128xbf16, #tpu.memory_space<vmem>>, vector<128x128xbf16>
    tpu.vector_store %arg6[%c0_15, %c0_16], %33 {strides = array<i32>} : memref<128x128xbf16, #tpu.memory_space<vmem>>, vector<128x128xbf16>,
    %35 = vector.extract_strided_slice %29 {offsets = [0, 128], sizes = [128, 128], strides = [1, 1]} : vector<128x384xf32> to vector<128x128xf32>
    %36 = arith.truncf %35 : vector<128x128xf32> to vector<128x128xbf16>
    %c0_17 = arith.constant 0 : index
    %c0_18 = arith.constant 0 : index
    %37 = vector.load %arg7[%c0_17, %c0_18] : memref<128x128xbf16, #tpu.memory_space<vmem>>, vector<128x128xbf16>
    tpu.vector_store %arg7[%c0_17, %c0_18], %36 {strides = array<i32>} : memref<128x128xbf16, #tpu.memory_space<vmem>>, vector<128x128xbf16>,
    %38 = vector.extract_strided_slice %29 {offsets = [0, 256], sizes = [128, 128], strides = [1, 1]} : vector<128x384xf32> to vector<128x128xf32>
    %39 = arith.truncf %38 : vector<128x128xf32> to vector<128x128xbf16>
    %c0_19 = arith.constant 0 : index
    %c0_20 = arith.constant 0 : index
    %40 = vector.load %arg8[%c0_19, %c0_20] : memref<128x128xbf16, #tpu.memory_space<vmem>>, vector<128x128xbf16>
    tpu.vector_store %arg8[%c0_19, %c0_20], %39 {strides = array<i32>} : memref<128x128xbf16, #tpu.memory_space<vmem>>, vector<128x128xbf16>,
    return
  }
  func.func @transform_0(%arg0: i32) -> (i32, i32) {
    %c0_i32 = arith.constant 0 : i32
    %c0_i32_0 = arith.constant 0 : i32
    return %arg0, %c0_i32 : i32, i32
  }
  func.func @transform_1(%arg0: i32) -> (i32, i32) {
    %c0_i32 = arith.constant 0 : i32
    %c0_i32_0 = arith.constant 0 : i32
    %c0_i32_1 = arith.constant 0 : i32
    return %c0_i32, %c0_i32_0 : i32, i32
  }
  func.func @transform_2(%arg0: i32) -> (i32, i32) {
    %c0_i32 = arith.constant 0 : i32
    %c0_i32_0 = arith.constant 0 : i32
    %c0_i32_1 = arith.constant 0 : i32
    return %c0_i32, %c0_i32_0 : i32, i32
  }
  func.func @transform_3(%arg0: i32) -> (i32, i32) {
    %c0_i32 = arith.constant 0 : i32
    %c0_i32_0 = arith.constant 0 : i32
    %c0_i32_1 = arith.constant 0 : i32
    return %c0_i32, %c0_i32_0 : i32, i32
  }
  func.func @transform_4(%arg0: i32) -> (i32, i32) {
    %c0_i32 = arith.constant 0 : i32
    %c0_i32_0 = arith.constant 0 : i32
    %c0_i32_1 = arith.constant 0 : i32
    return %c0_i32, %c0_i32_0 : i32, i32
  }
  func.func @transform_5(%arg0: i32) -> (i32, i32) {
    %c0_i32 = arith.constant 0 : i32
    %c0_i32_0 = arith.constant 0 : i32
    return %arg0, %c0_i32 : i32, i32
  }
  func.func @transform_6(%arg0: i32) -> (i32, i32) {
    %c0_i32 = arith.constant 0 : i32
    %c0_i32_0 = arith.constant 0 : i32
    return %arg0, %c0_i32 : i32, i32
  }
  func.func @transform_7(%arg0: i32) -> (i32, i32) {
    %c0_i32 = arith.constant 0 : i32
    %c0_i32_0 = arith.constant 0 : i32
    return %arg0, %c0_i32 : i32, i32
  }
}

module attributes {stable_mosaic.version = 11 : i64} {
  func.func @_attn_mlp_kernel(%arg0: i32, %arg1: i32, %arg2: memref<64x128xbf16, #tpu.memory_space<vmem>>, %arg3: memref<64x128xbf16, #tpu.memory_space<vmem>>, %arg4: memref<64x128xbf16, #tpu.memory_space<vmem>>, %arg5: memref<64x128xbf16, #tpu.memory_space<vmem>>, %arg6: memref<128x128xbf16, #tpu.memory_space<vmem>>, %arg7: memref<1x128xf32, #tpu.memory_space<vmem>>, %arg8: memref<1x128xf32, #tpu.memory_space<vmem>>, %arg9: memref<1x128xf32, #tpu.memory_space<vmem>>, %arg10: memref<128x256xbf16, #tpu.memory_space<vmem>>, %arg11: memref<1x256xf32, #tpu.memory_space<vmem>>, %arg12: memref<256x128xbf16, #tpu.memory_space<vmem>>, %arg13: memref<1x128xf32, #tpu.memory_space<vmem>>, %arg14: memref<64x128xbf16, #tpu.memory_space<vmem>>) attributes {dimension_semantics = [#tpu.dimension_semantics<parallel>, #tpu.dimension_semantics<parallel>], iteration_bounds = array<i64: 2, 1>, scalar_prefetch = 0 : i64, scratch_operands = 0 : i64, tpu.core_type = #tpu.core_type<tc>, window_params = [{transform_indices = @transform_0, window_bounds = array<i64: 64, 128>}, {transform_indices = @transform_1, window_bounds = array<i64: 64, 128>}, {transform_indices = @transform_2, window_bounds = array<i64: 64, 128>}, {transform_indices = @transform_3, window_bounds = array<i64: 64, 128>}, {pipeline_mode = #tpu.pipeline_mode<synchronous>, transform_indices = @transform_4, window_bounds = array<i64: 128, 128>}, {pipeline_mode = #tpu.pipeline_mode<synchronous>, transform_indices = @transform_5, window_bounds = array<i64: 1, 128>}, {pipeline_mode = #tpu.pipeline_mode<synchronous>, transform_indices = @transform_6, window_bounds = array<i64: 1, 128>}, {pipeline_mode = #tpu.pipeline_mode<synchronous>, transform_indices = @transform_7, window_bounds = array<i64: 1, 128>}, {pipeline_mode = #tpu.pipeline_mode<synchronous>, transform_indices = @transform_8, window_bounds = array<i64: 128, 256>}, {pipeline_mode = #tpu.pipeline_mode<synchronous>, transform_indices = @transform_9, window_bounds = array<i64: 1, 256>}, {pipeline_mode = #tpu.pipeline_mode<synchronous>, transform_indices = @transform_10, window_bounds = array<i64: 256, 128>}, {pipeline_mode = #tpu.pipeline_mode<synchronous>, transform_indices = @transform_11, window_bounds = array<i64: 1, 128>}, {transform_indices = @transform_12, window_bounds = array<i64: 64, 128>}]} {
    %c0 = arith.constant 0 : index
    %c0_0 = arith.constant 0 : index
    %0 = vector.load %arg5[%c0, %c0_0] : memref<64x128xbf16, #tpu.memory_space<vmem>>, vector<64x128xbf16>
    %1 = arith.extf %0 : vector<64x128xbf16> to vector<64x128xf32>
    %c0_1 = arith.constant 0 : index
    %c0_2 = arith.constant 0 : index
    %2 = vector.load %arg7[%c0_1, %c0_2] : memref<1x128xf32, #tpu.memory_space<vmem>>, vector<1x128xf32>
    %3 = vector.broadcast %2 : vector<1x128xf32> to vector<64x128xf32>
    %4 = arith.addf %1, %3 : vector<64x128xf32>
    %c0_3 = arith.constant 0 : index
    %c0_4 = arith.constant 0 : index
    %5 = vector.load %arg2[%c0_3, %c0_4] : memref<64x128xbf16, #tpu.memory_space<vmem>>, vector<64x64xbf16>
    %c0_5 = arith.constant 0 : index
    %c0_6 = arith.constant 0 : index
    %6 = vector.load %arg3[%c0_5, %c0_6] : memref<64x128xbf16, #tpu.memory_space<vmem>>, vector<64x64xbf16>
    %c0_7 = arith.constant 0 : index
    %c0_8 = arith.constant 0 : index
    %7 = vector.load %arg4[%c0_7, %c0_8] : memref<64x128xbf16, #tpu.memory_space<vmem>>, vector<64x64xbf16>
    %8 = tpu.transpose %6, [1, 0] : vector<64x64xbf16> -> vector<64x64xbf16>
    %cst = arith.constant dense<0.000000e+00> : vector<64x64xf32>
    %9 = tpu.matmul %5, %8, %cst {dimension_numbers = #tpu.dot_dimension_numbers<[1], [0], [0], [1], [0, 0, 1, 1], [], []>} : vector<64x64xbf16>, vector<64x64xbf16>, vector<64x64xf32> -> vector<64x64xf32>
    %cst_9 = arith.constant dense<0xFF800000> : vector<64xf32>
    %10 = vector.multi_reduction <maximumf>, %9, %cst_9 [1] : vector<64x64xf32> to vector<64xf32>
    %11 = vector.shape_cast %10 : vector<64xf32> to vector<64x1xf32>
    %12 = vector.broadcast %11 : vector<64x1xf32> to vector<64x64xf32>
    %13 = arith.subf %9, %12 : vector<64x64xf32>
    %14 = math.exp %13 : vector<64x64xf32>
    %cst_10 = arith.constant dense<0.000000e+00> : vector<64xf32>
    %15 = vector.multi_reduction <add>, %14, %cst_10 [1] : vector<64x64xf32> to vector<64xf32>
    %16 = vector.shape_cast %15 : vector<64xf32> to vector<64x1xf32>
    %17 = arith.truncf %14 : vector<64x64xf32> to vector<64x64xbf16>
    %cst_11 = arith.constant dense<0.000000e+00> : vector<64x64xf32>
    %18 = tpu.matmul %17, %7, %cst_11 {dimension_numbers = #tpu.dot_dimension_numbers<[1], [0], [0], [1], [0, 0, 1, 1], [], []>} : vector<64x64xbf16>, vector<64x64xbf16>, vector<64x64xf32> -> vector<64x64xf32>
    %19 = tpu.reciprocal %16 {approx = true} : vector<64x1xf32> -> vector<64x1xf32>
    %20 = vector.broadcast %19 : vector<64x1xf32> to vector<64x64xf32>
    %21 = arith.mulf %18, %20 : vector<64x64xf32>
    %22 = arith.truncf %21 : vector<64x64xf32> to vector<64x64xbf16>
    %c0_12 = arith.constant 0 : index
    %c0_13 = arith.constant 0 : index
    %23 = vector.load %arg6[%c0_12, %c0_13] : memref<128x128xbf16, #tpu.memory_space<vmem>>, vector<64x128xbf16>
    %cst_14 = arith.constant dense<0.000000e+00> : vector<64x128xf32>
    %24 = tpu.matmul %22, %23, %cst_14 {dimension_numbers = #tpu.dot_dimension_numbers<[1], [0], [0], [1], [0, 0, 1, 1], [], []>} : vector<64x64xbf16>, vector<64x128xbf16>, vector<64x128xf32> -> vector<64x128xf32>
    %25 = arith.addf %4, %24 : vector<64x128xf32>
    %c0_15 = arith.constant 0 : index
    %c64 = arith.constant 64 : index
    %26 = vector.load %arg2[%c0_15, %c64] : memref<64x128xbf16, #tpu.memory_space<vmem>>, vector<64x64xbf16>
    %c0_16 = arith.constant 0 : index
    %c64_17 = arith.constant 64 : index
    %27 = vector.load %arg3[%c0_16, %c64_17] : memref<64x128xbf16, #tpu.memory_space<vmem>>, vector<64x64xbf16>
    %c0_18 = arith.constant 0 : index
    %c64_19 = arith.constant 64 : index
    %28 = vector.load %arg4[%c0_18, %c64_19] : memref<64x128xbf16, #tpu.memory_space<vmem>>, vector<64x64xbf16>
    %29 = tpu.transpose %27, [1, 0] : vector<64x64xbf16> -> vector<64x64xbf16>
    %cst_20 = arith.constant dense<0.000000e+00> : vector<64x64xf32>
    %30 = tpu.matmul %26, %29, %cst_20 {dimension_numbers = #tpu.dot_dimension_numbers<[1], [0], [0], [1], [0, 0, 1, 1], [], []>} : vector<64x64xbf16>, vector<64x64xbf16>, vector<64x64xf32> -> vector<64x64xf32>
    %cst_21 = arith.constant dense<0xFF800000> : vector<64xf32>
    %31 = vector.multi_reduction <maximumf>, %30, %cst_21 [1] : vector<64x64xf32> to vector<64xf32>
    %32 = vector.shape_cast %31 : vector<64xf32> to vector<64x1xf32>
    %33 = vector.broadcast %32 : vector<64x1xf32> to vector<64x64xf32>
    %34 = arith.subf %30, %33 : vector<64x64xf32>
    %35 = math.exp %34 : vector<64x64xf32>
    %cst_22 = arith.constant dense<0.000000e+00> : vector<64xf32>
    %36 = vector.multi_reduction <add>, %35, %cst_22 [1] : vector<64x64xf32> to vector<64xf32>
    %37 = vector.shape_cast %36 : vector<64xf32> to vector<64x1xf32>
    %38 = arith.truncf %35 : vector<64x64xf32> to vector<64x64xbf16>
    %cst_23 = arith.constant dense<0.000000e+00> : vector<64x64xf32>
    %39 = tpu.matmul %38, %28, %cst_23 {dimension_numbers = #tpu.dot_dimension_numbers<[1], [0], [0], [1], [0, 0, 1, 1], [], []>} : vector<64x64xbf16>, vector<64x64xbf16>, vector<64x64xf32> -> vector<64x64xf32>
    %40 = tpu.reciprocal %37 {approx = true} : vector<64x1xf32> -> vector<64x1xf32>
    %41 = vector.broadcast %40 : vector<64x1xf32> to vector<64x64xf32>
    %42 = arith.mulf %39, %41 : vector<64x64xf32>
    %43 = arith.truncf %42 : vector<64x64xf32> to vector<64x64xbf16>
    %c64_24 = arith.constant 64 : index
    %c0_25 = arith.constant 0 : index
    %44 = vector.load %arg6[%c64_24, %c0_25] : memref<128x128xbf16, #tpu.memory_space<vmem>>, vector<64x128xbf16>
    %cst_26 = arith.constant dense<0.000000e+00> : vector<64x128xf32>
    %45 = tpu.matmul %43, %44, %cst_26 {dimension_numbers = #tpu.dot_dimension_numbers<[1], [0], [0], [1], [0, 0, 1, 1], [], []>} : vector<64x64xbf16>, vector<64x128xbf16>, vector<64x128xf32> -> vector<64x128xf32>
    %46 = arith.addf %25, %45 : vector<64x128xf32>
    %cst_27 = arith.constant dense<0.000000e+00> : vector<64xf32>
    %47 = vector.multi_reduction <add>, %46, %cst_27 [1] : vector<64x128xf32> to vector<64xf32>
    %48 = vector.shape_cast %47 : vector<64xf32> to vector<64x1xf32>
    %cst_28 = arith.constant 1.280000e+02 : f32
    %49 = vector.broadcast %cst_28 : f32 to vector<64x1xf32>
    %50 = arith.divf %48, %49 : vector<64x1xf32>
    %51 = vector.broadcast %50 : vector<64x1xf32> to vector<64x128xf32>
    %52 = arith.subf %46, %51 : vector<64x128xf32>
    %53 = arith.mulf %52, %52 : vector<64x128xf32>
    %cst_29 = arith.constant dense<0.000000e+00> : vector<64xf32>
    %54 = vector.multi_reduction <add>, %53, %cst_29 [1] : vector<64x128xf32> to vector<64xf32>
    %55 = vector.shape_cast %54 : vector<64xf32> to vector<64x1xf32>
    %cst_30 = arith.constant 1.280000e+02 : f32
    %56 = vector.broadcast %cst_30 : f32 to vector<64x1xf32>
    %57 = arith.divf %55, %56 : vector<64x1xf32>
    %cst_31 = arith.constant 9.99999997E-7 : f32
    %58 = vector.broadcast %cst_31 : f32 to vector<64x1xf32>
    %59 = arith.addf %57, %58 : vector<64x1xf32>
    %60 = math.rsqrt %59 : vector<64x1xf32>
    %61 = vector.broadcast %60 : vector<64x1xf32> to vector<64x128xf32>
    %62 = arith.mulf %52, %61 : vector<64x128xf32>
    %c0_32 = arith.constant 0 : index
    %c0_33 = arith.constant 0 : index
    %63 = vector.load %arg8[%c0_32, %c0_33] : memref<1x128xf32, #tpu.memory_space<vmem>>, vector<1x128xf32>
    %64 = vector.broadcast %63 : vector<1x128xf32> to vector<64x128xf32>
    %65 = arith.mulf %62, %64 : vector<64x128xf32>
    %c0_34 = arith.constant 0 : index
    %c0_35 = arith.constant 0 : index
    %66 = vector.load %arg9[%c0_34, %c0_35] : memref<1x128xf32, #tpu.memory_space<vmem>>, vector<1x128xf32>
    %67 = vector.broadcast %66 : vector<1x128xf32> to vector<64x128xf32>
    %68 = arith.addf %65, %67 : vector<64x128xf32>
    %69 = arith.truncf %68 : vector<64x128xf32> to vector<64x128xbf16>
    %c0_36 = arith.constant 0 : index
    %c0_37 = arith.constant 0 : index
    %70 = vector.load %arg10[%c0_36, %c0_37] : memref<128x256xbf16, #tpu.memory_space<vmem>>, vector<128x256xbf16>
    %cst_38 = arith.constant dense<0.000000e+00> : vector<64x256xf32>
    %71 = tpu.matmul %69, %70, %cst_38 {dimension_numbers = #tpu.dot_dimension_numbers<[1], [0], [0], [1], [0, 0, 1, 1], [], []>} : vector<64x128xbf16>, vector<128x256xbf16>, vector<64x256xf32> -> vector<64x256xf32>
    %c0_39 = arith.constant 0 : index
    %c0_40 = arith.constant 0 : index
    %72 = vector.load %arg11[%c0_39, %c0_40] : memref<1x256xf32, #tpu.memory_space<vmem>>, vector<1x256xf32>
    %73 = vector.broadcast %72 : vector<1x256xf32> to vector<64x256xf32>
    %74 = arith.addf %71, %73 : vector<64x256xf32>
    %75 = arith.mulf %74, %74 : vector<64x256xf32>
    %76 = arith.mulf %74, %75 : vector<64x256xf32>
    %cst_41 = arith.constant 4.471500e-02 : f32
    %77 = vector.broadcast %cst_41 : f32 to vector<64x256xf32>
    %78 = arith.mulf %77, %76 : vector<64x256xf32>
    %79 = arith.addf %74, %78 : vector<64x256xf32>
    %cst_42 = arith.constant 0.797884583 : f32
    %80 = vector.broadcast %cst_42 : f32 to vector<64x256xf32>
    %81 = arith.mulf %80, %79 : vector<64x256xf32>
    %82 = math.tanh %81 : vector<64x256xf32>
    %cst_43 = arith.constant 1.000000e+00 : f32
    %83 = vector.broadcast %cst_43 : f32 to vector<64x256xf32>
    %84 = arith.addf %83, %82 : vector<64x256xf32>
    %cst_44 = arith.constant 5.000000e-01 : f32
    %85 = vector.broadcast %cst_44 : f32 to vector<64x256xf32>
    %86 = arith.mulf %85, %84 : vector<64x256xf32>
    %87 = arith.mulf %74, %86 : vector<64x256xf32>
    %88 = arith.truncf %87 : vector<64x256xf32> to vector<64x256xbf16>
    %c0_45 = arith.constant 0 : index
    %c0_46 = arith.constant 0 : index
    %89 = vector.load %arg12[%c0_45, %c0_46] : memref<256x128xbf16, #tpu.memory_space<vmem>>, vector<256x128xbf16>
    %cst_47 = arith.constant dense<0.000000e+00> : vector<64x128xf32>
    %90 = tpu.matmul %88, %89, %cst_47 {dimension_numbers = #tpu.dot_dimension_numbers<[1], [0], [0], [1], [0, 0, 1, 1], [], []>} : vector<64x256xbf16>, vector<256x128xbf16>, vector<64x128xf32> -> vector<64x128xf32>
    %c0_48 = arith.constant 0 : index
    %c0_49 = arith.constant 0 : index
    %91 = vector.load %arg13[%c0_48, %c0_49] : memref<1x128xf32, #tpu.memory_space<vmem>>, vector<1x128xf32>
    %92 = vector.broadcast %91 : vector<1x128xf32> to vector<64x128xf32>
    %93 = arith.addf %90, %92 : vector<64x128xf32>
    %94 = arith.addf %46, %93 : vector<64x128xf32>
    %95 = arith.truncf %94 : vector<64x128xf32> to vector<64x128xbf16>
    %c0_50 = arith.constant 0 : index
    %c0_51 = arith.constant 0 : index
    %96 = vector.load %arg14[%c0_50, %c0_51] : memref<64x128xbf16, #tpu.memory_space<vmem>>, vector<64x128xbf16>
    tpu.vector_store %arg14[%c0_50, %c0_51], %95 {strides = array<i32>} : memref<64x128xbf16, #tpu.memory_space<vmem>>, vector<64x128xbf16>,
    return
  }
  func.func @transform_0(%arg0: i32, %arg1: i32) -> (i32, i32) {
    %c1_i32 = arith.constant 1 : i32
    %0 = arith.muli %arg0, %c1_i32 : i32
    %1 = arith.addi %0, %arg1 : i32
    %c0_i32 = arith.constant 0 : i32
    %c0_i32_0 = arith.constant 0 : i32
    return %1, %c0_i32 : i32, i32
  }
  func.func @transform_1(%arg0: i32, %arg1: i32) -> (i32, i32) {
    %c0_i32 = arith.constant 0 : i32
    %c0_i32_0 = arith.constant 0 : i32
    return %arg0, %c0_i32 : i32, i32
  }
  func.func @transform_2(%arg0: i32, %arg1: i32) -> (i32, i32) {
    %c0_i32 = arith.constant 0 : i32
    %c0_i32_0 = arith.constant 0 : i32
    return %arg0, %c0_i32 : i32, i32
  }
  func.func @transform_3(%arg0: i32, %arg1: i32) -> (i32, i32) {
    %c1_i32 = arith.constant 1 : i32
    %0 = arith.muli %arg0, %c1_i32 : i32
    %1 = arith.addi %0, %arg1 : i32
    %c0_i32 = arith.constant 0 : i32
    %c0_i32_0 = arith.constant 0 : i32
    return %1, %c0_i32 : i32, i32
  }
  func.func @transform_4(%arg0: i32, %arg1: i32) -> (i32, i32) {
    %c0_i32 = arith.constant 0 : i32
    %c0_i32_0 = arith.constant 0 : i32
    %c0_i32_1 = arith.constant 0 : i32
    return %c0_i32, %c0_i32_0 : i32, i32
  }
  func.func @transform_5(%arg0: i32, %arg1: i32) -> (i32, i32) {
    %c0_i32 = arith.constant 0 : i32
    %c0_i32_0 = arith.constant 0 : i32
    %c0_i32_1 = arith.constant 0 : i32
    return %c0_i32, %c0_i32_0 : i32, i32
  }
  func.func @transform_6(%arg0: i32, %arg1: i32) -> (i32, i32) {
    %c0_i32 = arith.constant 0 : i32
    %c0_i32_0 = arith.constant 0 : i32
    %c0_i32_1 = arith.constant 0 : i32
    return %c0_i32, %c0_i32_0 : i32, i32
  }
  func.func @transform_7(%arg0: i32, %arg1: i32) -> (i32, i32) {
    %c0_i32 = arith.constant 0 : i32
    %c0_i32_0 = arith.constant 0 : i32
    %c0_i32_1 = arith.constant 0 : i32
    return %c0_i32, %c0_i32_0 : i32, i32
  }
  func.func @transform_8(%arg0: i32, %arg1: i32) -> (i32, i32) {
    %c0_i32 = arith.constant 0 : i32
    %c0_i32_0 = arith.constant 0 : i32
    %c0_i32_1 = arith.constant 0 : i32
    return %c0_i32, %c0_i32_0 : i32, i32
  }
  func.func @transform_9(%arg0: i32, %arg1: i32) -> (i32, i32) {
    %c0_i32 = arith.constant 0 : i32
    %c0_i32_0 = arith.constant 0 : i32
    %c0_i32_1 = arith.constant 0 : i32
    return %c0_i32, %c0_i32_0 : i32, i32
  }
  func.func @transform_10(%arg0: i32, %arg1: i32) -> (i32, i32) {
    %c0_i32 = arith.constant 0 : i32
    %c0_i32_0 = arith.constant 0 : i32
    %c0_i32_1 = arith.constant 0 : i32
    return %c0_i32, %c0_i32_0 : i32, i32
  }
  func.func @transform_11(%arg0: i32, %arg1: i32) -> (i32, i32) {
    %c0_i32 = arith.constant 0 : i32
    %c0_i32_0 = arith.constant 0 : i32
    %c0_i32_1 = arith.constant 0 : i32
    return %c0_i32, %c0_i32_0 : i32, i32
  }
  func.func @transform_12(%arg0: i32, %arg1: i32) -> (i32, i32) {
    %c1_i32 = arith.constant 1 : i32
    %0 = arith.muli %arg0, %c1_i32 : i32
    %1 = arith.addi %0, %arg1 : i32
    %c0_i32 = arith.constant 0 : i32
    %c0_i32_0 = arith.constant 0 : i32
    return %1, %c0_i32 : i32, i32
  }
}

module attributes {stable_mosaic.version = 11 : i64} {
  func.func @_ln_vlad_kernel(%arg0: i32, %arg1: memref<64x128xbf16, #tpu.memory_space<vmem>>, %arg2: memref<1x128xf32, #tpu.memory_space<vmem>>, %arg3: memref<1x128xf32, #tpu.memory_space<vmem>>, %arg4: memref<8x128xf32, #tpu.memory_space<vmem>>, %arg5: memref<1x8x128xf32, #tpu.memory_space<vmem>>) attributes {dimension_semantics = [#tpu.dimension_semantics<parallel>], iteration_bounds = array<i64: 2>, scalar_prefetch = 0 : i64, scratch_operands = 0 : i64, tpu.core_type = #tpu.core_type<tc>, window_params = [{transform_indices = @transform_0, window_bounds = array<i64: 64, 128>}, {pipeline_mode = #tpu.pipeline_mode<synchronous>, transform_indices = @transform_1, window_bounds = array<i64: 1, 128>}, {pipeline_mode = #tpu.pipeline_mode<synchronous>, transform_indices = @transform_2, window_bounds = array<i64: 1, 128>}, {pipeline_mode = #tpu.pipeline_mode<synchronous>, transform_indices = @transform_3, window_bounds = array<i64: 8, 128>}, {transform_indices = @transform_4, window_bounds = array<i64: 1, 8, 128>}]} {
    %c0 = arith.constant 0 : index
    %c0_0 = arith.constant 0 : index
    %0 = vector.load %arg1[%c0, %c0_0] : memref<64x128xbf16, #tpu.memory_space<vmem>>, vector<64x128xbf16>
    %1 = arith.extf %0 : vector<64x128xbf16> to vector<64x128xf32>
    %cst = arith.constant dense<0.000000e+00> : vector<64xf32>
    %2 = vector.multi_reduction <add>, %1, %cst [1] : vector<64x128xf32> to vector<64xf32>
    %3 = vector.shape_cast %2 : vector<64xf32> to vector<64x1xf32>
    %cst_1 = arith.constant 1.280000e+02 : f32
    %4 = vector.broadcast %cst_1 : f32 to vector<64x1xf32>
    %5 = arith.divf %3, %4 : vector<64x1xf32>
    %6 = vector.broadcast %5 : vector<64x1xf32> to vector<64x128xf32>
    %7 = arith.subf %1, %6 : vector<64x128xf32>
    %8 = arith.mulf %7, %7 : vector<64x128xf32>
    %cst_2 = arith.constant dense<0.000000e+00> : vector<64xf32>
    %9 = vector.multi_reduction <add>, %8, %cst_2 [1] : vector<64x128xf32> to vector<64xf32>
    %10 = vector.shape_cast %9 : vector<64xf32> to vector<64x1xf32>
    %cst_3 = arith.constant 1.280000e+02 : f32
    %11 = vector.broadcast %cst_3 : f32 to vector<64x1xf32>
    %12 = arith.divf %10, %11 : vector<64x1xf32>
    %cst_4 = arith.constant 9.99999997E-7 : f32
    %13 = vector.broadcast %cst_4 : f32 to vector<64x1xf32>
    %14 = arith.addf %12, %13 : vector<64x1xf32>
    %15 = math.rsqrt %14 : vector<64x1xf32>
    %16 = vector.broadcast %15 : vector<64x1xf32> to vector<64x128xf32>
    %17 = arith.mulf %7, %16 : vector<64x128xf32>
    %c0_5 = arith.constant 0 : index
    %c0_6 = arith.constant 0 : index
    %18 = vector.load %arg2[%c0_5, %c0_6] : memref<1x128xf32, #tpu.memory_space<vmem>>, vector<1x128xf32>
    %19 = vector.broadcast %18 : vector<1x128xf32> to vector<64x128xf32>
    %20 = arith.mulf %17, %19 : vector<64x128xf32>
    %c0_7 = arith.constant 0 : index
    %c0_8 = arith.constant 0 : index
    %21 = vector.load %arg3[%c0_7, %c0_8] : memref<1x128xf32, #tpu.memory_space<vmem>>, vector<1x128xf32>
    %22 = vector.broadcast %21 : vector<1x128xf32> to vector<64x128xf32>
    %23 = arith.addf %20, %22 : vector<64x128xf32>
    %c0_9 = arith.constant 0 : index
    %c0_10 = arith.constant 0 : index
    %24 = vector.load %arg4[%c0_9, %c0_10] : memref<8x128xf32, #tpu.memory_space<vmem>>, vector<8x128xf32>
    %25 = arith.mulf %23, %23 : vector<64x128xf32>
    %cst_11 = arith.constant dense<0.000000e+00> : vector<64xf32>
    %26 = vector.multi_reduction <add>, %25, %cst_11 [1] : vector<64x128xf32> to vector<64xf32>
    %27 = vector.shape_cast %26 : vector<64xf32> to vector<64x1xf32>
    %cst_12 = arith.constant 9.99999996E-13 : f32
    %28 = vector.broadcast %cst_12 : f32 to vector<64x1xf32>
    %29 = arith.addf %27, %28 : vector<64x1xf32>
    %30 = math.rsqrt %29 : vector<64x1xf32>
    %31 = vector.broadcast %30 : vector<64x1xf32> to vector<64x128xf32>
    %32 = arith.mulf %23, %31 : vector<64x128xf32>
    %33 = tpu.transpose %24, [1, 0] : vector<8x128xf32> -> vector<128x8xf32>
    %cst_13 = arith.constant dense<0.000000e+00> : vector<64x8xf32>
    %34 = tpu.matmul %32, %33, %cst_13 {dimension_numbers = #tpu.dot_dimension_numbers<[1], [0], [0], [1], [0, 0, 1, 1], [], []>} : vector<64x128xf32>, vector<128x8xf32>, vector<64x8xf32> -> vector<64x8xf32>
    %35 = arith.mulf %24, %24 : vector<8x128xf32>
    %cst_14 = arith.constant dense<0.000000e+00> : vector<8xf32>
    %36 = vector.multi_reduction <add>, %35, %cst_14 [1] : vector<8x128xf32> to vector<8xf32>
    %37 = vector.shape_cast %36 : vector<8xf32> to vector<1x8xf32>
    %cst_15 = arith.constant 5.000000e-01 : f32
    %38 = vector.broadcast %cst_15 : f32 to vector<1x8xf32>
    %39 = arith.mulf %38, %37 : vector<1x8xf32>
    %40 = vector.broadcast %39 : vector<1x8xf32> to vector<64x8xf32>
    %41 = arith.subf %34, %40 : vector<64x8xf32>
    %42 = tpu.iota {dimensions = array<i32: 1>} : vector<64x8xi32>
    %cst_16 = arith.constant dense<0xFF800000> : vector<64xf32>
    %43 = vector.multi_reduction <maximumf>, %41, %cst_16 [1] : vector<64x8xf32> to vector<64xf32>
    %44 = vector.shape_cast %43 : vector<64xf32> to vector<64x1xf32>
    %45 = vector.broadcast %44 : vector<64x1xf32> to vector<64x8xf32>
    %46 = arith.cmpf oge, %41, %45 : vector<64x8xf32>
    %c8_i32 = arith.constant 8 : i32
    %47 = vector.broadcast %c8_i32 : i32 to vector<64x8xi32>
    %48 = arith.select %46, %42, %47 : vector<64x8xi1>, vector<64x8xi32>
    %cst_17 = arith.constant dense<2147483647> : vector<64xi32>
    %49 = vector.multi_reduction <minsi>, %48, %cst_17 [1] : vector<64x8xi32> to vector<64xi32>
    %50 = vector.shape_cast %49 : vector<64xi32> to vector<64x1xi32>
    %51 = vector.broadcast %50 : vector<64x1xi32> to vector<64x8xi32>
    %52 = arith.cmpi eq, %42, %51 : vector<64x8xi32>
    %53 = arith.extui %52 : vector<64x8xi1> to vector<64x8xi32>
    %54 = arith.sitofp %53 : vector<64x8xi32> to vector<64x8xf32>
    %cst_18 = arith.constant dense<0.000000e+00> : vector<8x128xf32>
    %55 = tpu.matmul %54, %32, %cst_18 {dimension_numbers = #tpu.dot_dimension_numbers<[0], [0], [1], [1], [0, 1, 1, 1], [], []>} : vector<64x8xf32>, vector<64x128xf32>, vector<8x128xf32> -> vector<8x128xf32>
    %cst_19 = arith.constant dense<0.000000e+00> : vector<8xf32>
    %56 = vector.multi_reduction <add>, %54, %cst_19 [0] : vector<64x8xf32> to vector<8xf32>
    %57 = vector.shape_cast %56 : vector<8xf32> to vector<8x1xf32>
    %58 = vector.broadcast %57 : vector<8x1xf32> to vector<8x128xf32>
    %59 = arith.mulf %58, %24 : vector<8x128xf32>
    %60 = arith.subf %55, %59 : vector<8x128xf32>
    %61 = arith.mulf %60, %60 : vector<8x128xf32>
    %cst_20 = arith.constant dense<0.000000e+00> : vector<8xf32>
    %62 = vector.multi_reduction <add>, %61, %cst_20 [1] : vector<8x128xf32> to vector<8xf32>
    %63 = vector.shape_cast %62 : vector<8xf32> to vector<8x1xf32>
    %cst_21 = arith.constant 9.99999996E-13 : f32
    %64 = vector.broadcast %cst_21 : f32 to vector<8x1xf32>
    %65 = arith.addf %63, %64 : vector<8x1xf32>
    %66 = math.rsqrt %65 : vector<8x1xf32>
    %67 = vector.broadcast %66 : vector<8x1xf32> to vector<8x128xf32>
    %68 = arith.mulf %60, %67 : vector<8x128xf32>
    %69 = arith.mulf %68, %68 : vector<8x128xf32>
    %70 = vector.shape_cast %69 : vector<8x128xf32> to vector<1x8x128xf32>
    %cst_22 = arith.constant dense<0.000000e+00> : vector<1xf32>
    %71 = vector.multi_reduction <add>, %70, %cst_22 [1, 2] : vector<1x8x128xf32> to vector<1xf32>
    %72 = vector.shape_cast %71 : vector<1xf32> to vector<1x1x1xf32>
    %73 = vector.extract %72[0, 0, 0] : f32 from vector<1x1x1xf32>
    %cst_23 = arith.constant 9.99999996E-13 : f32
    %74 = arith.addf %73, %cst_23 : f32
    %75 = math.rsqrt %74 : f32
    %76 = vector.broadcast %75 : f32 to vector<8x128xf32>
    %77 = arith.mulf %68, %76 : vector<8x128xf32>
    %c0_24 = arith.constant 0 : index
    %c0_25 = arith.constant 0 : index
    %c0_26 = arith.constant 0 : index
    %78 = vector.load %arg5[%c0_24, %c0_25, %c0_26] : memref<1x8x128xf32, #tpu.memory_space<vmem>>, vector<1x8x128xf32>
    %79 = vector.shape_cast %78 : vector<1x8x128xf32> to vector<8x128xf32>
    %80 = vector.shape_cast %77 : vector<8x128xf32> to vector<1x8x128xf32>
    tpu.vector_store %arg5[%c0_24, %c0_25, %c0_26], %80 {strides = array<i32>} : memref<1x8x128xf32, #tpu.memory_space<vmem>>, vector<1x8x128xf32>,
    return
  }
  func.func @transform_0(%arg0: i32) -> (i32, i32) {
    %c0_i32 = arith.constant 0 : i32
    %c0_i32_0 = arith.constant 0 : i32
    return %arg0, %c0_i32 : i32, i32
  }
  func.func @transform_1(%arg0: i32) -> (i32, i32) {
    %c0_i32 = arith.constant 0 : i32
    %c0_i32_0 = arith.constant 0 : i32
    %c0_i32_1 = arith.constant 0 : i32
    return %c0_i32, %c0_i32_0 : i32, i32
  }
  func.func @transform_2(%arg0: i32) -> (i32, i32) {
    %c0_i32 = arith.constant 0 : i32
    %c0_i32_0 = arith.constant 0 : i32
    %c0_i32_1 = arith.constant 0 : i32
    return %c0_i32, %c0_i32_0 : i32, i32
  }
  func.func @transform_3(%arg0: i32) -> (i32, i32) {
    %c0_i32 = arith.constant 0 : i32
    %c0_i32_0 = arith.constant 0 : i32
    %c0_i32_1 = arith.constant 0 : i32
    return %c0_i32, %c0_i32_0 : i32, i32
  }
  func.func @transform_4(%arg0: i32) -> (i32, i32, i32) {
    %c0_i32 = arith.constant 0 : i32
    %c0_i32_0 = arith.constant 0 : i32
    %c0_i32_1 = arith.constant 0 : i32
    return %arg0, %c0_i32, %c0_i32_0 : i32, i32, i32
  }
}

</mosaic_0001>

<llo_original>
// kernel: anyloc_forward.6
$region0: #{anyloc_forward.6}
  #allocation0 [shape = 'u32[]', space=smem, size = 0x4, offset = 0x4, fixed_abs, tag = 'smem constant byte address 0x4 - core index']
  #allocation1 [shape = 'u32[72,128]{1,0:T(1,128)}', space=vmem, size = 0x9000, scoped, tag = 'internal scratch']
  %s0 = inlined_call_operand.vmem [shape: bf16[128,588], index: 0, kind: input, shape index: {}]
  %s1 = inlined_call_operand.vmem [shape: bf16[588,128], index: 1, kind: input, shape index: {}]
  %s2 = inlined_call_operand.vmem [shape: f32[1,128], index: 2, kind: input, shape index: {}]
  %s3 = inlined_call_operand.vmem [shape: f32[128,128], index: 3, kind: input, shape index: {}]
  %s4 = inlined_call_operand.vmem [shape: bf16[128,128], index: 4, kind: output, shape index: {}]
  %s5 = sld [smem:[#allocation0]]
  $region26: #{anyloc_forward.6} parent=0
    _
  %s7 = ssub.s32 1, %s5
  %s8 = scalar_select 0, %s7, %s5
  // Predicated region
  $region2: #{anyloc_forward.6} parent=0 // pred_check
    _
  $region3: #{anyloc_forward.6} parent=0 // pred_check_branch
    %10 = sbr.rel (0) target = $region5
  $region4: #{anyloc_forward.6} parent=0 // pred_region
    _
  $region5: #{anyloc_forward.6} parent=0 // pred_fallthru
    _
  // Predicated region
  $region6: #{anyloc_forward.6} parent=0 // pred_check
    _
  $region7: #{anyloc_forward.6} parent=0 // pred_check_branch
    %12 = sbr.rel (0) target = $region9
  $region8: #{anyloc_forward.6} parent=0 // pred_region
    _
  $region9: #{anyloc_forward.6} parent=0 // pred_fallthru
    _
  // Predicated region
  $region10: #{anyloc_forward.6} parent=0 // pred_check
    _
  $region11: #{anyloc_forward.6} parent=0 // pred_check_branch
    %14 = sbr.rel (0) target = $region13
  $region12: #{anyloc_forward.6} parent=0 // pred_region
    _
  $region13: #{anyloc_forward.6} parent=0 // pred_fallthru
    _
  // Predicated region
  $region14: #{anyloc_forward.6} parent=0 // pred_check
    _
  $region15: #{anyloc_forward.6} parent=0 // pred_check_branch
    %16 = sbr.rel (0) target = $region17
  $region16: #{anyloc_forward.6} parent=0 // pred_region
    _
  $region17: #{anyloc_forward.6} parent=0 // pred_fallthru
    _
  %v18 = vld [vmem:[%s0] sm:$0xff]
  %v19 = vld [vmem:[%s0 + $0x8] sm:$0xff]
  %v20 = vld [vmem:[%s0 + $0x10] sm:$0xf]
  %v21 = vld [vmem:[%s0 + $0x14] sm:$0xff]
  %v22 = vld [vmem:[%s0 + $0x1c] sm:$0xff]
  %v23 = vld [vmem:[%s0 + $0x24] sm:$0xf]
  %v24 = vld [vmem:[%s0 + $0x28] sm:$0xff]
  %v25 = vld [vmem:[%s0 + $0x30] sm:$0xff]
  %v26 = vld [vmem:[%s0 + $0x38] sm:$0xf]
  %v27 = vld [vmem:[%s0 + $0x3c] sm:$0xff]
  %v28 = vld [vmem:[%s0 + $0x44] sm:$0xff]
  %v29 = vld [vmem:[%s0 + $0x4c] sm:$0xf]
  %v30 = vld [vmem:[%s0 + $0x50] sm:$0xff]
  %v31 = vld [vmem:[%s0 + $0x58] sm:$0xff]
  %v32 = vld [vmem:[%s0 + $0x60] sm:$0xf]
  %v33 = vld [vmem:[%s0 + $0x64] sm:$0xff]
  %v34 = vld [vmem:[%s0 + $0x6c] sm:$0xff]
  %v35 = vld [vmem:[%s0 + $0x74] sm:$0xf]
  %v36 = vld [vmem:[%s0 + $0x78] sm:$0xff]
  %v37 = vld [vmem:[%s0 + $0x80] sm:$0xff]
  %v38 = vld [vmem:[%s0 + $0x88] sm:$0xf]
  %v39 = vld [vmem:[%s0 + $0x8c] sm:$0xff]
  %v40 = vld [vmem:[%s0 + $0x94] sm:$0xff]
  %v41 = vld [vmem:[%s0 + $0x9c] sm:$0xf]
  %v42 = vld [vmem:[%s0 + $0xa0] sm:$0xff]
  %v43 = vld [vmem:[%s0 + $0xa8] sm:$0xff]
  %v44 = vld [vmem:[%s0 + $0xb0] sm:$0xf]
  %v45 = vld [vmem:[%s0 + $0xb4] sm:$0xff]
  %v46 = vld [vmem:[%s0 + $0xbc] sm:$0xff]
  %v47 = vld [vmem:[%s0 + $0xc4] sm:$0xf]
  %v48 = vld [vmem:[%s0 + $0xc8] sm:$0xff]
  %v49 = vld [vmem:[%s0 + $0xd0] sm:$0xff]
  %v50 = vld [vmem:[%s0 + $0xd8] sm:$0xf]
  %v51 = vld [vmem:[%s0 + $0xdc] sm:$0xff]
  %v52 = vld [vmem:[%s0 + $0xe4] sm:$0xff]
  %v53 = vld [vmem:[%s0 + $0xec] sm:$0xf]
  %v54 = vld [vmem:[%s0 + $0xf0] sm:$0xff]
  %v55 = vld [vmem:[%s0 + $0xf8] sm:$0xff]
  %v56 = vld [vmem:[%s0 + $0x100] sm:$0xf]
  %v57 = vld [vmem:[%s0 + $0x104] sm:$0xff]
  %v58 = vld [vmem:[%s0 + $0x10c] sm:$0xff]
  %v59 = vld [vmem:[%s0 + $0x114] sm:$0xf]
  %v60 = vld [vmem:[%s0 + $0x118] sm:$0xff]
  %v61 = vld [vmem:[%s0 + $0x120] sm:$0xff]
  %v62 = vld [vmem:[%s0 + $0x128] sm:$0xf]
  %v63 = vld [vmem:[%s0 + $0x12c] sm:$0xff]
  %v64 = vld [vmem:[%s0 + $0x134] sm:$0xff]
  %v65 = vld [vmem:[%s0 + $0x13c] sm:$0xf]
  %v66 = vld [vmem:[%s1] sm:$0xf]
  %v67 = vld [vmem:[%s1 + $0x4] sm:$0xf]
  %v68 = vld [vmem:[%s1 + $0x8] sm:$0xf]
  %v69 = vld [vmem:[%s1 + $0xc] sm:$0xf]
  %v70 = vld [vmem:[%s1 + $0x10] sm:$0xf]
  %v71 = vld [vmem:[%s1 + $0x14] sm:$0xf]
  %v72 = vld [vmem:[%s1 + $0x18] sm:$0xf]
  %v73 = vld [vmem:[%s1 + $0x1c] sm:$0xf]
  %v74 = vld [vmem:[%s1 + $0x20] sm:$0xf]
  %v75 = vld [vmem:[%s1 + $0x24] sm:$0xf]
  %v76 = vld [vmem:[%s1 + $0x28] sm:$0xf]
  %v77 = vld [vmem:[%s1 + $0x2c] sm:$0xf]
  %v78 = vld [vmem:[%s1 + $0x30] sm:$0xf]
  %v79 = vld [vmem:[%s1 + $0x34] sm:$0xf]
  %v80 = vld [vmem:[%s1 + $0x38] sm:$0xf]
  %v81 = vld [vmem:[%s1 + $0x3c] sm:$0xf]
  %v82 = vld [vmem:[%s1 + $0x40] sm:$0xf]
  %v83 = vld [vmem:[%s1 + $0x44] sm:$0xf]
  %v84 = vld [vmem:[%s1 + $0x48] sm:$0xf]
  %v85 = vld [vmem:[%s1 + $0x4c] sm:$0xf]
  %v86 = vld [vmem:[%s1 + $0x50] sm:$0xf]
  %v87 = vld [vmem:[%s1 + $0x54] sm:$0xf]
  %v88 = vld [vmem:[%s1 + $0x58] sm:$0xf]
  %v89 = vld [vmem:[%s1 + $0x5c] sm:$0xf]
  %v90 = vld [vmem:[%s1 + $0x60] sm:$0xf]
  %v91 = vld [vmem:[%s1 + $0x64] sm:$0xf]
  %v92 = vld [vmem:[%s1 + $0x68] sm:$0xf]
  %v93 = vld [vmem:[%s1 + $0x6c] sm:$0xf]
  %v94 = vld [vmem:[%s1 + $0x70] sm:$0xf]
  %v95 = vld [vmem:[%s1 + $0x74] sm:$0xf]
  %v96 = vld [vmem:[%s1 + $0x78] sm:$0xf]
  %v97 = vld [vmem:[%s1 + $0x7c] sm:$0xf]
  %v98 = vld [vmem:[%s1 + $0x80] sm:$0xf]
  %v99 = vld [vmem:[%s1 + $0x84] sm:$0xf]
  %v100 = vld [vmem:[%s1 + $0x88] sm:$0xf]
  %v101 = vld [vmem:[%s1 + $0x8c] sm:$0xf]
  %v102 = vld [vmem:[%s1 + $0x90] sm:$0xf]
  %v103 = vld [vmem:[%s1 + $0x94] sm:$0xf]
  %v104 = vld [vmem:[%s1 + $0x98] sm:$0xf]
  %v105 = vld [vmem:[%s1 + $0x9c] sm:$0xf]
  %v106 = vld [vmem:[%s1 + $0xa0] sm:$0xf]
  %v107 = vld [vmem:[%s1 + $0xa4] sm:$0xf]
  %v108 = vld [vmem:[%s1 + $0xa8] sm:$0xf]
  %v109 = vld [vmem:[%s1 + $0xac] sm:$0xf]
  %v110 = vld [vmem:[%s1 + $0xb0] sm:$0xf]
  %v111 = vld [vmem:[%s1 + $0xb4] sm:$0xf]
  %v112 = vld [vmem:[%s1 + $0xb8] sm:$0xf]
  %v113 = vld [vmem:[%s1 + $0xbc] sm:$0xf]
  %v114 = vld [vmem:[%s1 + $0xc0] sm:$0xf]
  %v115 = vld [vmem:[%s1 + $0xc4] sm:$0xf]
  %v116 = vld [vmem:[%s1 + $0xc8] sm:$0xf]
  %v117 = vld [vmem:[%s1 + $0xcc] sm:$0xf]
  %v118 = vld [vmem:[%s1 + $0xd0] sm:$0xf]
  %v119 = vld [vmem:[%s1 + $0xd4] sm:$0xf]
  %v120 = vld [vmem:[%s1 + $0xd8] sm:$0xf]
  %v121 = vld [vmem:[%s1 + $0xdc] sm:$0xf]
  %v122 = vld [vmem:[%s1 + $0xe0] sm:$0xf]
  %v123 = vld [vmem:[%s1 + $0xe4] sm:$0xf]
  %v124 = vld [vmem:[%s1 + $0xe8] sm:$0xf]
  %v125 = vld [vmem:[%s1 + $0xec] sm:$0xf]
  %v126 = vld [vmem:[%s1 + $0xf0] sm:$0xf]
  %v127 = vld [vmem:[%s1 + $0xf4] sm:$0xf]
  %v128 = vld [vmem:[%s1 + $0xf8] sm:$0xf]
  %v129 = vld [vmem:[%s1 + $0xfc] sm:$0xf]
  %v130 = vld [vmem:[%s1 + $0x100] sm:$0xf]
  %v131 = vld [vmem:[%s1 + $0x104] sm:$0xf]
  %v132 = vld [vmem:[%s1 + $0x108] sm:$0xf]
  %v133 = vld [vmem:[%s1 + $0x10c] sm:$0xf]
  %v134 = vld [vmem:[%s1 + $0x110] sm:$0xf]
  %v135 = vld [vmem:[%s1 + $0x114] sm:$0xf]
  %v136 = vld [vmem:[%s1 + $0x118] sm:$0xf]
  %v137 = vld [vmem:[%s1 + $0x11c] sm:$0xf]
  %v138 = vld [vmem:[%s1 + $0x120] sm:$0xf]
  %v139 = vld [vmem:[%s1 + $0x124] sm:$0x3]
  %v140 = vld [vmem:[%s2] sm:$0x1]
  %v142 = vperm.slane %v140, 0
  %v192 = vunpack.c.l.b16 %v18
  %v193 = vunpack.c.h.b16 %v18
  %v194 = vunpack.c.l.b16 %v19
  %v195 = vunpack.c.h.b16 %v19
  %v196 = vunpack.c.l.b16 %v20
  %v197 = vunpack.c.l.b16 %v21
  %v198 = vunpack.c.h.b16 %v21
  %v199 = vunpack.c.l.b16 %v22
  %v200 = vunpack.c.h.b16 %v22
  %v201 = vunpack.c.l.b16 %v23
  %v202 = vunpack.c.l.b16 %v24
  %v203 = vunpack.c.h.b16 %v24
  %v204 = vunpack.c.l.b16 %v25
  %v205 = vunpack.c.h.b16 %v25
  %v206 = vunpack.c.l.b16 %v26
  %v207 = vunpack.c.l.b16 %v27
  %v208 = vunpack.c.h.b16 %v27
  %v209 = vunpack.c.l.b16 %v28
  %v210 = vunpack.c.h.b16 %v28
  %v211 = vunpack.c.l.b16 %v29
  %v212 = vunpack.c.l.b16 %v30
  %v213 = vunpack.c.h.b16 %v30
  %v214 = vunpack.c.l.b16 %v31
  %v215 = vunpack.c.h.b16 %v31
  %v216 = vunpack.c.l.b16 %v32
  %v217 = vunpack.c.l.b16 %v33
  %v218 = vunpack.c.h.b16 %v33
  %v219 = vunpack.c.l.b16 %v34
  %v220 = vunpack.c.h.b16 %v34
  %v221 = vunpack.c.l.b16 %v35
  %v222 = vunpack.c.l.b16 %v36
  %v223 = vunpack.c.h.b16 %v36
  %v224 = vunpack.c.l.b16 %v37
  %v225 = vunpack.c.h.b16 %v37
  %v226 = vunpack.c.l.b16 %v38
  %v227 = vunpack.c.l.b16 %v39
  %v228 = vunpack.c.h.b16 %v39
  %v229 = vunpack.c.l.b16 %v40
  %v230 = vunpack.c.h.b16 %v40
  %v231 = vunpack.c.l.b16 %v41
  %v232 = vunpack.c.l.b16 %v42
  %v233 = vunpack.c.h.b16 %v42
  %v234 = vunpack.c.l.b16 %v43
  %v235 = vunpack.c.h.b16 %v43
  %v236 = vunpack.c.l.b16 %v44
  %v237 = vunpack.c.l.b16 %v45
  %v238 = vunpack.c.h.b16 %v45
  %v239 = vunpack.c.l.b16 %v46
  %v240 = vunpack.c.h.b16 %v46
  %v241 = vunpack.c.l.b16 %v47
  %v242 = vunpack.c.l.b16 %v48
  %v243 = vunpack.c.h.b16 %v48
  %v244 = vunpack.c.l.b16 %v49
  %v245 = vunpack.c.h.b16 %v49
  %v246 = vunpack.c.l.b16 %v50
  %v247 = vunpack.c.l.b16 %v51
  %v248 = vunpack.c.h.b16 %v51
  %v249 = vunpack.c.l.b16 %v52
  %v250 = vunpack.c.h.b16 %v52
  %v251 = vunpack.c.l.b16 %v53
  %v252 = vunpack.c.l.b16 %v54
  %v253 = vunpack.c.h.b16 %v54
  %v254 = vunpack.c.l.b16 %v55
  %v255 = vunpack.c.h.b16 %v55
  %v256 = vunpack.c.l.b16 %v56
  %v257 = vunpack.c.l.b16 %v57
  %v258 = vunpack.c.h.b16 %v57
  %v259 = vunpack.c.l.b16 %v58
  %v260 = vunpack.c.h.b16 %v58
  %v261 = vunpack.c.l.b16 %v59
  %v262 = vunpack.c.l.b16 %v60
  %v263 = vunpack.c.h.b16 %v60
  %v264 = vunpack.c.l.b16 %v61
  %v265 = vunpack.c.h.b16 %v61
  %v266 = vunpack.c.l.b16 %v62
  %v267 = vunpack.c.l.b16 %v63
  %v268 = vunpack.c.h.b16 %v63
  %v269 = vunpack.c.l.b16 %v64
  %v270 = vunpack.c.h.b16 %v64
  %v271 = vunpack.c.l.b16 %v65
  %v272 = vpack.c.b16 %v197, %v192
  %v273 = vpack.c.b16 %v198, %v193
  %v274 = vpack.c.b16 %v199, %v194
  %v275 = vpack.c.b16 %v200, %v195
  %v276 = vpack.c.b16 %v201, %v196
  %v277 = vpack.c.b16 %v207, %v202
  %v278 = vpack.c.b16 %v208, %v203
  %v279 = vpack.c.b16 %v209, %v204
  %v280 = vpack.c.b16 %v210, %v205
  %v281 = vpack.c.b16 %v211, %v206
  %v282 = vpack.c.b16 %v217, %v212
  %v283 = vpack.c.b16 %v218, %v213
  %v284 = vpack.c.b16 %v219, %v214
  %v285 = vpack.c.b16 %v220, %v215
  %v286 = vpack.c.b16 %v221, %v216
  %v287 = vpack.c.b16 %v227, %v222
  %v288 = vpack.c.b16 %v228, %v223
  %v289 = vpack.c.b16 %v229, %v224
  %v290 = vpack.c.b16 %v230, %v225
  %v291 = vpack.c.b16 %v231, %v226
  %v292 = vpack.c.b16 %v237, %v232
  %v293 = vpack.c.b16 %v238, %v233
  %v294 = vpack.c.b16 %v239, %v234
  %v295 = vpack.c.b16 %v240, %v235
  %v296 = vpack.c.b16 %v241, %v236
  %v297 = vpack.c.b16 %v247, %v242
  %v298 = vpack.c.b16 %v248, %v243
  %v299 = vpack.c.b16 %v249, %v244
  %v300 = vpack.c.b16 %v250, %v245
  %v301 = vpack.c.b16 %v251, %v246
  %v302 = vpack.c.b16 %v257, %v252
  %v303 = vpack.c.b16 %v258, %v253
  %v304 = vpack.c.b16 %v259, %v254
  %v305 = vpack.c.b16 %v260, %v255
  %v306 = vpack.c.b16 %v261, %v256
  %v307 = vpack.c.b16 %v267, %v262
  %v308 = vpack.c.b16 %v268, %v263
  %v309 = vpack.c.b16 %v269, %v264
  %v310 = vpack.c.b16 %v270, %v265
  %v311 = vpack.c.b16 %v271, %v266
  %v418 = vunpack.c.l.b16 %v66
  %v419 = vunpack.c.l.b16 %v67
  %v420 = vunpack.c.l.b16 %v68
  %v421 = vunpack.c.l.b16 %v69
  %v422 = vunpack.c.l.b16 %v70
  %v423 = vunpack.c.l.b16 %v71
  %v424 = vunpack.c.l.b16 %v72
  %v425 = vunpack.c.l.b16 %v73
  %v426 = vunpack.c.l.b16 %v74
  %v427 = vunpack.c.l.b16 %v75
  %v428 = vunpack.c.l.b16 %v76
  %v429 = vunpack.c.l.b16 %v77
  %v430 = vunpack.c.l.b16 %v78
  %v431 = vunpack.c.l.b16 %v79
  %v432 = vunpack.c.l.b16 %v80
  %v433 = vunpack.c.l.b16 %v81
  %v434 = vunpack.c.l.b16 %v82
  %v435 = vunpack.c.l.b16 %v83
  %v436 = vunpack.c.l.b16 %v84
  %v437 = vunpack.c.l.b16 %v85
  %v438 = vunpack.c.l.b16 %v86
  %v439 = vunpack.c.l.b16 %v87
  %v440 = vunpack.c.l.b16 %v88
  %v441 = vunpack.c.l.b16 %v89
  %v442 = vunpack.c.l.b16 %v90
  %v443 = vunpack.c.l.b16 %v91
  %v444 = vunpack.c.l.b16 %v92
  %v445 = vunpack.c.l.b16 %v93
  %v446 = vunpack.c.l.b16 %v94
  %v447 = vunpack.c.l.b16 %v95
  %v448 = vunpack.c.l.b16 %v96
  %v449 = vunpack.c.l.b16 %v97
  %v450 = vunpack.c.l.b16 %v98
  %v451 = vunpack.c.l.b16 %v99
  %v452 = vunpack.c.l.b16 %v100
  %v453 = vunpack.c.l.b16 %v101
  %v454 = vunpack.c.l.b16 %v102
  %v455 = vunpack.c.l.b16 %v103
  %v456 = vunpack.c.l.b16 %v104
  %v457 = vunpack.c.l.b16 %v105
  %v458 = vunpack.c.l.b16 %v106
  %v459 = vunpack.c.l.b16 %v107
  %v460 = vunpack.c.l.b16 %v108
  %v461 = vunpack.c.l.b16 %v109
  %v462 = vunpack.c.l.b16 %v110
  %v463 = vunpack.c.l.b16 %v111
  %v464 = vunpack.c.l.b16 %v112
  %v465 = vunpack.c.l.b16 %v113
  %v466 = vunpack.c.l.b16 %v114
  %v467 = vunpack.c.l.b16 %v115
  %v468 = vunpack.c.l.b16 %v116
  %v469 = vunpack.c.l.b16 %v117
  %v470 = vunpack.c.l.b16 %v118
  %v471 = vunpack.c.l.b16 %v119
  %v472 = vunpack.c.l.b16 %v120
  %v473 = vunpack.c.l.b16 %v121
  %v474 = vunpack.c.l.b16 %v122
  %v475 = vunpack.c.l.b16 %v123
  %v476 = vunpack.c.l.b16 %v124
  %v477 = vunpack.c.l.b16 %v125
  %v478 = vunpack.c.l.b16 %v126
  %v479 = vunpack.c.l.b16 %v127
  %v480 = vunpack.c.l.b16 %v128
  %v481 = vunpack.c.l.b16 %v129
  %v482 = vunpack.c.l.b16 %v130
  %v483 = vunpack.c.l.b16 %v131
  %v484 = vunpack.c.l.b16 %v132
  %v485 = vunpack.c.l.b16 %v133
  %v486 = vunpack.c.l.b16 %v134
  %v487 = vunpack.c.l.b16 %v135
  %v488 = vunpack.c.l.b16 %v136
  %v489 = vunpack.c.l.b16 %v137
  %v490 = vunpack.c.l.b16 %v138
  %v491 = vunpack.c.l.b16 %v139
  %v492 = vpack.c.b16 %v419, %v418
  %v493 = vpack.c.b16 %v421, %v420
  %v494 = vpack.c.b16 %v423, %v422
  %v495 = vpack.c.b16 %v425, %v424
  %v496 = vpack.c.b16 %v427, %v426
  %v497 = vpack.c.b16 %v429, %v428
  %v498 = vpack.c.b16 %v431, %v430
  %v499 = vpack.c.b16 %v433, %v432
  %v500 = vpack.c.b16 %v435, %v434
  %v501 = vpack.c.b16 %v437, %v436
  %v502 = vpack.c.b16 %v439, %v438
  %v503 = vpack.c.b16 %v441, %v440
  %v504 = vpack.c.b16 %v443, %v442
  %v505 = vpack.c.b16 %v445, %v444
  %v506 = vpack.c.b16 %v447, %v446
  %v507 = vpack.c.b16 %v449, %v448
  %v508 = vpack.c.b16 %v451, %v450
  %v509 = vpack.c.b16 %v453, %v452
  %v510 = vpack.c.b16 %v455, %v454
  %v511 = vpack.c.b16 %v457, %v456
  %v512 = vpack.c.b16 %v459, %v458
  %v513 = vpack.c.b16 %v461, %v460
  %v514 = vpack.c.b16 %v463, %v462
  %v515 = vpack.c.b16 %v465, %v464
  %v516 = vpack.c.b16 %v467, %v466
  %v517 = vpack.c.b16 %v469, %v468
  %v518 = vpack.c.b16 %v471, %v470
  %v519 = vpack.c.b16 %v473, %v472
  %v520 = vpack.c.b16 %v475, %v474
  %v521 = vpack.c.b16 %v477, %v476
  %v522 = vpack.c.b16 %v479, %v478
  %v523 = vpack.c.b16 %v481, %v480
  %v524 = vpack.c.b16 %v483, %v482
  %v525 = vpack.c.b16 %v485, %v484
  %v526 = vpack.c.b16 %v487, %v486
  %v527 = vpack.c.b16 %v489, %v488
  %v528 = vpack.c.b16 %v491, %v490
  %vm565 = vcmask 621568
  %v567 = vsel %vm565, %v276, 0
  %v570 = vsel %vm565, %v281, 0
  %v573 = vsel %vm565, %v286, 0
  %v576 = vsel %vm565, %v291, 0
  %v579 = vsel %vm565, %v296, 0
  %v582 = vsel %vm565, %v301, 0
  %v585 = vsel %vm565, %v306, 0
  %v588 = vsel %vm565, %v311, 0
  %vm590 = vcmask 1045504
  %v592 = vsel %vm590, %v528, 0
  %594 = vmatpush.bf16.msra.mxu0 %v499
  %595 = vmatpush.bf16.msra.mxu0 %v498
  %596 = vmatpush.bf16.msra.mxu0 %v497
  %597 = vmatpush.bf16.msra.mxu0 %v496
  %598 = vmatpush.bf16.msra.mxu0 %v495
  %599 = vmatpush.bf16.msra.mxu0 %v494
  %600 = vmatpush.bf16.msra.mxu0 %v493
  %601 = vmatpush.bf16.msra.mxu0 %v492
  %602 = vmatmul.bf16.gmra.mxu0 %v272
  %v603 = vpop.f32.mrf.mxu0
  %v604 = vadd.f32 %v142, %v603
  %v605 = vpop.f32.mrf.mxu0
  %v606 = vadd.f32 %v142, %v605
  %607 = vmatmul.bf16.gmra.mxu0 %v277
  %v608 = vpop.f32.mrf.mxu0
  %v609 = vadd.f32 %v142, %v608
  %v610 = vpop.f32.mrf.mxu0
  %v611 = vadd.f32 %v142, %v610
  %612 = vmatmul.bf16.gmra.mxu0 %v282
  %v613 = vpop.f32.mrf.mxu0
  %v614 = vadd.f32 %v142, %v613
  %v615 = vpop.f32.mrf.mxu0
  %v616 = vadd.f32 %v142, %v615
  %617 = vmatmul.bf16.gmra.mxu0 %v287
  %v618 = vpop.f32.mrf.mxu0
  %v619 = vadd.f32 %v142, %v618
  %v620 = vpop.f32.mrf.mxu0
  %v621 = vadd.f32 %v142, %v620
  %622 = vmatmul.bf16.gmra.mxu0 %v292
  %v623 = vpop.f32.mrf.mxu0
  %v624 = vadd.f32 %v142, %v623
  %v625 = vpop.f32.mrf.mxu0
  %v626 = vadd.f32 %v142, %v625
  %627 = vmatmul.bf16.gmra.mxu0 %v297
  %v628 = vpop.f32.mrf.mxu0
  %v629 = vadd.f32 %v142, %v628
  %v630 = vpop.f32.mrf.mxu0
  %v631 = vadd.f32 %v142, %v630
  %632 = vmatmul.bf16.gmra.mxu0 %v302
  %v633 = vpop.f32.mrf.mxu0
  %v634 = vadd.f32 %v142, %v633
  %v635 = vpop.f32.mrf.mxu0
  %v636 = vadd.f32 %v142, %v635
  %637 = vmatmul.bf16.gmra.mxu0 %v307
  %v638 = vpop.f32.mrf.mxu0
  %v639 = vadd.f32 %v142, %v638
  %v640 = vpop.f32.mrf.mxu0
  %v641 = vadd.f32 %v142, %v640
  %642 = vdwg.mxu0
  %643 = vmatpush.bf16.msra.mxu0 %v507
  %644 = vmatpush.bf16.msra.mxu0 %v506
  %645 = vmatpush.bf16.msra.mxu0 %v505
  %646 = vmatpush.bf16.msra.mxu0 %v504
  %647 = vmatpush.bf16.msra.mxu0 %v503
  %648 = vmatpush.bf16.msra.mxu0 %v502
  %649 = vmatpush.bf16.msra.mxu0 %v501
  %650 = vmatpush.bf16.msra.mxu0 %v500
  %651 = vmatmul.bf16.gmra.mxu0 %v273
  %v652 = vpop.f32.mrf.mxu0
  %v653 = vadd.f32 %v604, %v652
  %v654 = vpop.f32.mrf.mxu0
  %v655 = vadd.f32 %v606, %v654
  %656 = vmatmul.bf16.gmra.mxu0 %v278
  %v657 = vpop.f32.mrf.mxu0
  %v658 = vadd.f32 %v609, %v657
  %v659 = vpop.f32.mrf.mxu0
  %v660 = vadd.f32 %v611, %v659
  %661 = vmatmul.bf16.gmra.mxu0 %v283
  %v662 = vpop.f32.mrf.mxu0
  %v663 = vadd.f32 %v614, %v662
  %v664 = vpop.f32.mrf.mxu0
  %v665 = vadd.f32 %v616, %v664
  %666 = vmatmul.bf16.gmra.mxu0 %v288
  %v667 = vpop.f32.mrf.mxu0
  %v668 = vadd.f32 %v619, %v667
  %v669 = vpop.f32.mrf.mxu0
  %v670 = vadd.f32 %v621, %v669
  %671 = vmatmul.bf16.gmra.mxu0 %v293
  %v672 = vpop.f32.mrf.mxu0
  %v673 = vadd.f32 %v624, %v672
  %v674 = vpop.f32.mrf.mxu0
  %v675 = vadd.f32 %v626, %v674
  %676 = vmatmul.bf16.gmra.mxu0 %v298
  %v677 = vpop.f32.mrf.mxu0
  %v678 = vadd.f32 %v629, %v677
  %v679 = vpop.f32.mrf.mxu0
  %v680 = vadd.f32 %v631, %v679
  %681 = vmatmul.bf16.gmra.mxu0 %v303
  %v682 = vpop.f32.mrf.mxu0
  %v683 = vadd.f32 %v634, %v682
  %v684 = vpop.f32.mrf.mxu0
  %v685 = vadd.f32 %v636, %v684
  %686 = vmatmul.bf16.gmra.mxu0 %v308
  %v687 = vpop.f32.mrf.mxu0
  %v688 = vadd.f32 %v639, %v687
  %v689 = vpop.f32.mrf.mxu0
  %v690 = vadd.f32 %v641, %v689
  %691 = vdwg.mxu0
  %692 = vmatpush.bf16.msra.mxu0 %v515
  %693 = vmatpush.bf16.msra.mxu0 %v514
  %694 = vmatpush.bf16.msra.mxu0 %v513
  %695 = vmatpush.bf16.msra.mxu0 %v512
  %696 = vmatpush.bf16.msra.mxu0 %v511
  %697 = vmatpush.bf16.msra.mxu0 %v510
  %698 = vmatpush.bf16.msra.mxu0 %v509
  %699 = vmatpush.bf16.msra.mxu0 %v508
  %700 = vmatmul.bf16.gmra.mxu0 %v274
  %v701 = vpop.f32.mrf.mxu0
  %v702 = vadd.f32 %v653, %v701
  %v703 = vpop.f32.mrf.mxu0
  %v704 = vadd.f32 %v655, %v703
  %705 = vmatmul.bf16.gmra.mxu0 %v279
  %v706 = vpop.f32.mrf.mxu0
  %v707 = vadd.f32 %v658, %v706
  %v708 = vpop.f32.mrf.mxu0
  %v709 = vadd.f32 %v660, %v708
  %710 = vmatmul.bf16.gmra.mxu0 %v284
  %v711 = vpop.f32.mrf.mxu0
  %v712 = vadd.f32 %v663, %v711
  %v713 = vpop.f32.mrf.mxu0
  %v714 = vadd.f32 %v665, %v713
  %715 = vmatmul.bf16.gmra.mxu0 %v289
  %v716 = vpop.f32.mrf.mxu0
  %v717 = vadd.f32 %v668, %v716
  %v718 = vpop.f32.mrf.mxu0
  %v719 = vadd.f32 %v670, %v718
  %720 = vmatmul.bf16.gmra.mxu0 %v294
  %v721 = vpop.f32.mrf.mxu0
  %v722 = vadd.f32 %v673, %v721
  %v723 = vpop.f32.mrf.mxu0
  %v724 = vadd.f32 %v675, %v723
  %725 = vmatmul.bf16.gmra.mxu0 %v299
  %v726 = vpop.f32.mrf.mxu0
  %v727 = vadd.f32 %v678, %v726
  %v728 = vpop.f32.mrf.mxu0
  %v729 = vadd.f32 %v680, %v728
  %730 = vmatmul.bf16.gmra.mxu0 %v304
  %v731 = vpop.f32.mrf.mxu0
  %v732 = vadd.f32 %v683, %v731
  %v733 = vpop.f32.mrf.mxu0
  %v734 = vadd.f32 %v685, %v733
  %735 = vmatmul.bf16.gmra.mxu0 %v309
  %v736 = vpop.f32.mrf.mxu0
  %v737 = vadd.f32 %v688, %v736
  %v738 = vpop.f32.mrf.mxu0
  %v739 = vadd.f32 %v690, %v738
  %740 = vdwg.mxu0
  %741 = vmatpush.bf16.msra.mxu0 %v523
  %742 = vmatpush.bf16.msra.mxu0 %v522
  %743 = vmatpush.bf16.msra.mxu0 %v521
  %744 = vmatpush.bf16.msra.mxu0 %v520
  %745 = vmatpush.bf16.msra.mxu0 %v519
  %746 = vmatpush.bf16.msra.mxu0 %v518
  %747 = vmatpush.bf16.msra.mxu0 %v517
  %748 = vmatpush.bf16.msra.mxu0 %v516
  %749 = vmatmul.bf16.gmra.mxu0 %v275
  %v750 = vpop.f32.mrf.mxu0
  %v751 = vadd.f32 %v702, %v750
  %v752 = vpop.f32.mrf.mxu0
  %v753 = vadd.f32 %v704, %v752
  %754 = vmatmul.bf16.gmra.mxu0 %v280
  %v755 = vpop.f32.mrf.mxu0
  %v756 = vadd.f32 %v707, %v755
  %v757 = vpop.f32.mrf.mxu0
  %v758 = vadd.f32 %v709, %v757
  %759 = vmatmul.bf16.gmra.mxu0 %v285
  %v760 = vpop.f32.mrf.mxu0
  %v761 = vadd.f32 %v712, %v760
  %v762 = vpop.f32.mrf.mxu0
  %v763 = vadd.f32 %v714, %v762
  %764 = vmatmul.bf16.gmra.mxu0 %v290
  %v765 = vpop.f32.mrf.mxu0
  %v766 = vadd.f32 %v717, %v765
  %v767 = vpop.f32.mrf.mxu0
  %v768 = vadd.f32 %v719, %v767
  %769 = vmatmul.bf16.gmra.mxu0 %v295
  %v770 = vpop.f32.mrf.mxu0
  %v771 = vadd.f32 %v722, %v770
  %v772 = vpop.f32.mrf.mxu0
  %v773 = vadd.f32 %v724, %v772
  %774 = vmatmul.bf16.gmra.mxu0 %v300
  %v775 = vpop.f32.mrf.mxu0
  %v776 = vadd.f32 %v727, %v775
  %v777 = vpop.f32.mrf.mxu0
  %v778 = vadd.f32 %v729, %v777
  %779 = vmatmul.bf16.gmra.mxu0 %v305
  %v780 = vpop.f32.mrf.mxu0
  %v781 = vadd.f32 %v732, %v780
  %v782 = vpop.f32.mrf.mxu0
  %v783 = vadd.f32 %v734, %v782
  %784 = vmatmul.bf16.gmra.mxu0 %v310
  %v785 = vpop.f32.mrf.mxu0
  %v786 = vadd.f32 %v737, %v785
  %v787 = vpop.f32.mrf.mxu0
  %v788 = vadd.f32 %v739, %v787
  %789 = vdwg.mxu0
  %790 = vmatpush.bf16.msra.mxu0 0
  %791 = vmatpush.bf16.msra.mxu0 0
  %792 = vmatpush.bf16.msra.mxu0 0
  %793 = vmatpush.bf16.msra.mxu0 %v592
  %794 = vmatpush.bf16.msra.mxu0 %v527
  %795 = vmatpush.bf16.msra.mxu0 %v526
  %796 = vmatpush.bf16.msra.mxu0 %v525
  %797 = vmatpush.bf16.msra.mxu0 %v524
  %798 = vmatmul.bf16.gmra.mxu0 %v567
  %v799 = vpop.f32.mrf.mxu0
  %v800 = vadd.f32 %v751, %v799
  %v801 = vpop.f32.mrf.mxu0
  %v802 = vadd.f32 %v753, %v801
  %803 = vmatmul.bf16.gmra.mxu0 %v570
  %v804 = vpop.f32.mrf.mxu0
  %v805 = vadd.f32 %v756, %v804
  %v806 = vpop.f32.mrf.mxu0
  %v807 = vadd.f32 %v758, %v806
  %808 = vmatmul.bf16.gmra.mxu0 %v573
  %v809 = vpop.f32.mrf.mxu0
  %v810 = vadd.f32 %v761, %v809
  %v811 = vpop.f32.mrf.mxu0
  %v812 = vadd.f32 %v763, %v811
  %813 = vmatmul.bf16.gmra.mxu0 %v576
  %v814 = vpop.f32.mrf.mxu0
  %v815 = vadd.f32 %v766, %v814
  %v816 = vpop.f32.mrf.mxu0
  %v817 = vadd.f32 %v768, %v816
  %818 = vmatmul.bf16.gmra.mxu0 %v579
  %v819 = vpop.f32.mrf.mxu0
  %v820 = vadd.f32 %v771, %v819
  %v821 = vpop.f32.mrf.mxu0
  %v822 = vadd.f32 %v773, %v821
  %823 = vmatmul.bf16.gmra.mxu0 %v582
  %v824 = vpop.f32.mrf.mxu0
  %v825 = vadd.f32 %v776, %v824
  %v826 = vpop.f32.mrf.mxu0
  %v827 = vadd.f32 %v778, %v826
  %828 = vmatmul.bf16.gmra.mxu0 %v585
  %v829 = vpop.f32.mrf.mxu0
  %v830 = vadd.f32 %v781, %v829
  %v831 = vpop.f32.mrf.mxu0
  %v832 = vadd.f32 %v783, %v831
  %833 = vmatmul.bf16.gmra.mxu0 %v588
  %v834 = vpop.f32.mrf.mxu0
  %v835 = vadd.f32 %v786, %v834
  %v836 = vpop.f32.mrf.mxu0
  %v837 = vadd.f32 %v788, %v836
  %838 = vdwg.mxu0
  %v839 = vld [vmem:[%s3] sm:$0xff]
  %v840 = vld [vmem:[%s3 + $0x8] sm:$0xff]
  %v841 = vld [vmem:[%s3 + $0x10] sm:$0xff]
  %v842 = vld [vmem:[%s3 + $0x18] sm:$0xff]
  %v843 = vld [vmem:[%s3 + $0x20] sm:$0xff]
  %v844 = vld [vmem:[%s3 + $0x28] sm:$0xff]
  %v845 = vld [vmem:[%s3 + $0x30] sm:$0xff]
  %v846 = vld [vmem:[%s3 + $0x38] sm:$0xff]
  %v847 = vld [vmem:[%s3 + $0x40] sm:$0xff]
  %v848 = vld [vmem:[%s3 + $0x48] sm:$0xff]
  %v849 = vld [vmem:[%s3 + $0x50] sm:$0xff]
  %v850 = vld [vmem:[%s3 + $0x58] sm:$0xff]
  %v851 = vld [vmem:[%s3 + $0x60] sm:$0xff]
  %v852 = vld [vmem:[%s3 + $0x68] sm:$0xff]
  %v853 = vld [vmem:[%s3 + $0x70] sm:$0xff]
  %v854 = vld [vmem:[%s3 + $0x78] sm:$0xff]
  %v855 = vadd.f32 %v800, %v839
  %v856 = vadd.f32 %v802, %v840
  %v857 = vadd.f32 %v805, %v841
  %v858 = vadd.f32 %v807, %v842
  %v859 = vadd.f32 %v810, %v843
  %v860 = vadd.f32 %v812, %v844
  %v861 = vadd.f32 %v815, %v845
  %v862 = vadd.f32 %v817, %v846
  %v863 = vadd.f32 %v820, %v847
  %v864 = vadd.f32 %v822, %v848
  %v865 = vadd.f32 %v825, %v849
  %v866 = vadd.f32 %v827, %v850
  %v867 = vadd.f32 %v830, %v851
  %v868 = vadd.f32 %v832, %v852
  %v869 = vadd.f32 %v835, %v853
  %v870 = vadd.f32 %v837, %v854
  %v871 = vpack.c.bf16 %v855, %v855
  %v872 = vpack.c.bf16 %v856, %v856
  %v873 = vpack.c.bf16 %v857, %v857
  %v874 = vpack.c.bf16 %v858, %v858
  %v875 = vpack.c.bf16 %v859, %v859
  %v876 = vpack.c.bf16 %v860, %v860
  %v877 = vpack.c.bf16 %v861, %v861
  %v878 = vpack.c.bf16 %v862, %v862
  %v879 = vpack.c.bf16 %v863, %v863
  %v880 = vpack.c.bf16 %v864, %v864
  %v881 = vpack.c.bf16 %v865, %v865
  %v882 = vpack.c.bf16 %v866, %v866
  %v883 = vpack.c.bf16 %v867, %v867
  %v884 = vpack.c.bf16 %v868, %v868
  %v885 = vpack.c.bf16 %v869, %v869
  %v886 = vpack.c.bf16 %v870, %v870
  %887 = vst [vmem:[%s4] sm:$0xf] %v871
  %888 = vst [vmem:[%s4 + $0x4] sm:$0xf] %v872
  %889 = vst [vmem:[%s4 + $0x8] sm:$0xf] %v873
  %890 = vst [vmem:[%s4 + $0xc] sm:$0xf] %v874
  %891 = vst [vmem:[%s4 + $0x10] sm:$0xf] %v875
  %892 = vst [vmem:[%s4 + $0x14] sm:$0xf] %v876
  %893 = vst [vmem:[%s4 + $0x18] sm:$0xf] %v877
  %894 = vst [vmem:[%s4 + $0x1c] sm:$0xf] %v878
  %895 = vst [vmem:[%s4 + $0x20] sm:$0xf] %v879
  %896 = vst [vmem:[%s4 + $0x24] sm:$0xf] %v880
  %897 = vst [vmem:[%s4 + $0x28] sm:$0xf] %v881
  %898 = vst [vmem:[%s4 + $0x2c] sm:$0xf] %v882
  %899 = vst [vmem:[%s4 + $0x30] sm:$0xf] %v883
  %900 = vst [vmem:[%s4 + $0x34] sm:$0xf] %v884
  %901 = vst [vmem:[%s4 + $0x38] sm:$0xf] %v885
  %902 = vst [vmem:[%s4 + $0x3c] sm:$0xf] %v886
  // Predicated region
  $region18: #{anyloc_forward.6} parent=0 // pred_check
    _
  $region19: #{anyloc_forward.6} parent=0 // pred_check_branch
    %904 = sbr.rel (0) target = $region21
  $region20: #{anyloc_forward.6} parent=0 // pred_region
    _
  $region21: #{anyloc_forward.6} parent=0 // pred_fallthru
    _
  // Predicated region
  $region22: #{anyloc_forward.6} parent=0 // pred_check
    _
  $region23: #{anyloc_forward.6} parent=0 // pred_check_branch
    %906 = sbr.rel (0) target = $region25
  $region24: #{anyloc_forward.6} parent=0 // pred_region
    _
  $region25: #{anyloc_forward.6} parent=0 // pred_fallthru
    _

// kernel: anyloc_forward.7
$region0: #{anyloc_forward.7}
  #allocation0 [shape = 'u32[]', space=smem, size = 0x4, offset = 0x4, fixed_abs, tag = 'smem constant byte address 0x4 - core index']
  #allocation1 [shape = 'u32[72,128]{1,0:T(1,128)}', space=vmem, size = 0x9000, scoped, tag = 'internal scratch']
  %s0 = inlined_call_operand.vmem [shape: bf16[128,128], index: 0, kind: input, shape index: {}]
  %s1 = inlined_call_operand.vmem [shape: f32[1,128], index: 1, kind: input, shape index: {}]
  %s2 = inlined_call_operand.vmem [shape: f32[1,128], index: 2, kind: input, shape index: {}]
  %s3 = inlined_call_operand.vmem [shape: bf16[128,384], index: 3, kind: input, shape index: {}]
  %s4 = inlined_call_operand.vmem [shape: f32[1,384], index: 4, kind: input, shape index: {}]
  %s5 = inlined_call_operand.vmem [shape: bf16[128,128], index: 5, kind: output, shape index: {0}]
  %s6 = inlined_call_operand.vmem [shape: bf16[128,128], index: 6, kind: output, shape index: {1}]
  %s7 = inlined_call_operand.vmem [shape: bf16[128,128], index: 7, kind: output, shape index: {2}]
  %8 = xla_tuple %s5, %s6, %s7
  %s9 = sld [smem:[#allocation0]]
  $region46: #{anyloc_forward.7} parent=0
    _
  %s11 = ssub.s32 1, %s9
  %s12 = scalar_select 0, %s11, %s9
  // Predicated region
  $region2: #{anyloc_forward.7} parent=0 // pred_check
    _
  $region3: #{anyloc_forward.7} parent=0 // pred_check_branch
    %14 = sbr.rel (0) target = $region5
  $region4: #{anyloc_forward.7} parent=0 // pred_region
    _
  $region5: #{anyloc_forward.7} parent=0 // pred_fallthru
    _
  // Predicated region
  $region6: #{anyloc_forward.7} parent=0 // pred_check
    _
  $region7: #{anyloc_forward.7} parent=0 // pred_check_branch
    %16 = sbr.rel (0) target = $region9
  $region8: #{anyloc_forward.7} parent=0 // pred_region
    _
  $region9: #{anyloc_forward.7} parent=0 // pred_fallthru
    _
  // Predicated region
  $region10: #{anyloc_forward.7} parent=0 // pred_check
    _
  $region11: #{anyloc_forward.7} parent=0 // pred_check_branch
    %18 = sbr.rel (0) target = $region13
  $region12: #{anyloc_forward.7} parent=0 // pred_region
    _
  $region13: #{anyloc_forward.7} parent=0 // pred_fallthru
    _
  // Predicated region
  $region14: #{anyloc_forward.7} parent=0 // pred_check
    _
  $region15: #{anyloc_forward.7} parent=0 // pred_check_branch
    %20 = sbr.rel (0) target = $region17
  $region16: #{anyloc_forward.7} parent=0 // pred_region
    _
  $region17: #{anyloc_forward.7} parent=0 // pred_fallthru
    _
  // Predicated region
  $region18: #{anyloc_forward.7} parent=0 // pred_check
    _
  $region19: #{anyloc_forward.7} parent=0 // pred_check_branch
    %22 = sbr.rel (0) target = $region21
  $region20: #{anyloc_forward.7} parent=0 // pred_region
    _
  $region21: #{anyloc_forward.7} parent=0 // pred_fallthru
    _
  %v23 = vld [vmem:[%s0] sm:$0xf]
  %v24 = vld [vmem:[%s0 + $0x4] sm:$0xf]
  %v25 = vld [vmem:[%s0 + $0x8] sm:$0xf]
  %v26 = vld [vmem:[%s0 + $0xc] sm:$0xf]
  %v27 = vld [vmem:[%s0 + $0x10] sm:$0xf]
  %v28 = vld [vmem:[%s0 + $0x14] sm:$0xf]
  %v29 = vld [vmem:[%s0 + $0x18] sm:$0xf]
  %v30 = vld [vmem:[%s0 + $0x1c] sm:$0xf]
  %v31 = vld [vmem:[%s0 + $0x20] sm:$0xf]
  %v32 = vld [vmem:[%s0 + $0x24] sm:$0xf]
  %v33 = vld [vmem:[%s0 + $0x28] sm:$0xf]
  %v34 = vld [vmem:[%s0 + $0x2c] sm:$0xf]
  %v35 = vld [vmem:[%s0 + $0x30] sm:$0xf]
  %v36 = vld [vmem:[%s0 + $0x34] sm:$0xf]
  %v37 = vld [vmem:[%s0 + $0x38] sm:$0xf]
  %v38 = vld [vmem:[%s0 + $0x3c] sm:$0xf]
  %v39 = vunpack.c.l.bf16 %v23
  %v40 = vunpack.c.l.bf16 %v24
  %v41 = vunpack.c.l.bf16 %v25
  %v42 = vunpack.c.l.bf16 %v26
  %v43 = vunpack.c.l.bf16 %v27
  %v44 = vunpack.c.l.bf16 %v28
  %v45 = vunpack.c.l.bf16 %v29
  %v46 = vunpack.c.l.bf16 %v30
  %v47 = vunpack.c.l.bf16 %v31
  %v48 = vunpack.c.l.bf16 %v32
  %v49 = vunpack.c.l.bf16 %v33
  %v50 = vunpack.c.l.bf16 %v34
  %v51 = vunpack.c.l.bf16 %v35
  %v52 = vunpack.c.l.bf16 %v36
  %v53 = vunpack.c.l.bf16 %v37
  %v54 = vunpack.c.l.bf16 %v38
  %55 = vadd.xlane.f32.xlu0 %v39
  %v56 = vpop.xlane.xlu0 %55
  %57 = vadd.xlane.f32.xlu0 %v40
  %v58 = vpop.xlane.xlu0 %57
  %59 = vadd.xlane.f32.xlu0 %v41
  %v60 = vpop.xlane.xlu0 %59
  %61 = vadd.xlane.f32.xlu0 %v42
  %v62 = vpop.xlane.xlu0 %61
  %63 = vadd.xlane.f32.xlu0 %v43
  %v64 = vpop.xlane.xlu0 %63
  %65 = vadd.xlane.f32.xlu0 %v44
  %v66 = vpop.xlane.xlu0 %65
  %67 = vadd.xlane.f32.xlu0 %v45
  %v68 = vpop.xlane.xlu0 %67
  %69 = vadd.xlane.f32.xlu0 %v46
  %v70 = vpop.xlane.xlu0 %69
  %71 = vadd.xlane.f32.xlu0 %v47
  %v72 = vpop.xlane.xlu0 %71
  %73 = vadd.xlane.f32.xlu0 %v48
  %v74 = vpop.xlane.xlu0 %73
  %75 = vadd.xlane.f32.xlu0 %v49
  %v76 = vpop.xlane.xlu0 %75
  %77 = vadd.xlane.f32.xlu0 %v50
  %v78 = vpop.xlane.xlu0 %77
  %79 = vadd.xlane.f32.xlu0 %v51
  %v80 = vpop.xlane.xlu0 %79
  %81 = vadd.xlane.f32.xlu0 %v52
  %v82 = vpop.xlane.xlu0 %81
  %83 = vadd.xlane.f32.xlu0 %v53
  %v84 = vpop.xlane.xlu0 %83
  %85 = vadd.xlane.f32.xlu0 %v54
  %v86 = vpop.xlane.xlu0 %85
  %v87 = vrcp.pop 128.0
  %v88 = vmul.f32 128.0, %v87
  %v89 = vsub.f32 1.0, %v88
  %v90 = vmul.f32 %v87, %v89
  %v91 = vadd.f32 %v87, %v90
  %vm92 = vweird.f32 %v87
  %v93 = vsel %vm92, %v87, %v91
  %v94 = vmul.f32 %v56, %v93
  %v95 = vmul.f32 %v58, %v93
  %v96 = vmul.f32 %v60, %v93
  %v97 = vmul.f32 %v62, %v93
  %v98 = vmul.f32 %v64, %v93
  %v99 = vmul.f32 %v66, %v93
  %v100 = vmul.f32 %v68, %v93
  %v101 = vmul.f32 %v70, %v93
  %v102 = vmul.f32 %v72, %v93
  %v103 = vmul.f32 %v74, %v93
  %v104 = vmul.f32 %v76, %v93
  %v105 = vmul.f32 %v78, %v93
  %v106 = vmul.f32 %v80, %v93
  %v107 = vmul.f32 %v82, %v93
  %v108 = vmul.f32 %v84, %v93
  %v109 = vmul.f32 %v86, %v93
  %v110 = vsub.f32 %v39, %v94
  %v111 = vsub.f32 %v40, %v95
  %v112 = vsub.f32 %v41, %v96
  %v113 = vsub.f32 %v42, %v97
  %v114 = vsub.f32 %v43, %v98
  %v115 = vsub.f32 %v44, %v99
  %v116 = vsub.f32 %v45, %v100
  %v117 = vsub.f32 %v46, %v101
  %v118 = vsub.f32 %v47, %v102
  %v119 = vsub.f32 %v48, %v103
  %v120 = vsub.f32 %v49, %v104
  %v121 = vsub.f32 %v50, %v105
  %v122 = vsub.f32 %v51, %v106
  %v123 = vsub.f32 %v52, %v107
  %v124 = vsub.f32 %v53, %v108
  %v125 = vsub.f32 %v54, %v109
  %v126 = vmul.f32 %v110, %v110
  %v127 = vmul.f32 %v111, %v111
  %v128 = vmul.f32 %v112, %v112
  %v129 = vmul.f32 %v113, %v113
  %v130 = vmul.f32 %v114, %v114
  %v131 = vmul.f32 %v115, %v115
  %v132 = vmul.f32 %v116, %v116
  %v133 = vmul.f32 %v117, %v117
  %v134 = vmul.f32 %v118, %v118
  %v135 = vmul.f32 %v119, %v119
  %v136 = vmul.f32 %v120, %v120
  %v137 = vmul.f32 %v121, %v121
  %v138 = vmul.f32 %v122, %v122
  %v139 = vmul.f32 %v123, %v123
  %v140 = vmul.f32 %v124, %v124
  %v141 = vmul.f32 %v125, %v125
  %142 = vadd.xlane.f32.xlu0 %v126
  %v143 = vpop.xlane.xlu0 %142
  %144 = vadd.xlane.f32.xlu0 %v127
  %v145 = vpop.xlane.xlu0 %144
  %146 = vadd.xlane.f32.xlu0 %v128
  %v147 = vpop.xlane.xlu0 %146
  %148 = vadd.xlane.f32.xlu0 %v129
  %v149 = vpop.xlane.xlu0 %148
  %150 = vadd.xlane.f32.xlu0 %v130
  %v151 = vpop.xlane.xlu0 %150
  %152 = vadd.xlane.f32.xlu0 %v131
  %v153 = vpop.xlane.xlu0 %152
  %154 = vadd.xlane.f32.xlu0 %v132
  %v155 = vpop.xlane.xlu0 %154
  %156 = vadd.xlane.f32.xlu0 %v133
  %v157 = vpop.xlane.xlu0 %156
  %158 = vadd.xlane.f32.xlu0 %v134
  %v159 = vpop.xlane.xlu0 %158
  %160 = vadd.xlane.f32.xlu0 %v135
  %v161 = vpop.xlane.xlu0 %160
  %162 = vadd.xlane.f32.xlu0 %v136
  %v163 = vpop.xlane.xlu0 %162
  %164 = vadd.xlane.f32.xlu0 %v137
  %v165 = vpop.xlane.xlu0 %164
  %166 = vadd.xlane.f32.xlu0 %v138
  %v167 = vpop.xlane.xlu0 %166
  %168 = vadd.xlane.f32.xlu0 %v139
  %v169 = vpop.xlane.xlu0 %168
  %170 = vadd.xlane.f32.xlu0 %v140
  %v171 = vpop.xlane.xlu0 %170
  %172 = vadd.xlane.f32.xlu0 %v141
  %v173 = vpop.xlane.xlu0 %172
  %v174 = vmul.f32 %v143, %v93
  %v175 = vmul.f32 %v145, %v93
  %v176 = vmul.f32 %v147, %v93
  %v177 = vmul.f32 %v149, %v93
  %v178 = vmul.f32 %v151, %v93
  %v179 = vmul.f32 %v153, %v93
  %v180 = vmul.f32 %v155, %v93
  %v181 = vmul.f32 %v157, %v93
  %v182 = vmul.f32 %v159, %v93
  %v183 = vmul.f32 %v161, %v93
  %v184 = vmul.f32 %v163, %v93
  %v185 = vmul.f32 %v165, %v93
  %v186 = vmul.f32 %v167, %v93
  %v187 = vmul.f32 %v169, %v93
  %v188 = vmul.f32 %v171, %v93
  %v189 = vmul.f32 %v173, %v93
  %v190 = vadd.f32 %v174, 1e-06
  %v191 = vadd.f32 %v175, 1e-06
  %v192 = vadd.f32 %v176, 1e-06
  %v193 = vadd.f32 %v177, 1e-06
  %v194 = vadd.f32 %v178, 1e-06
  %v195 = vadd.f32 %v179, 1e-06
  %v196 = vadd.f32 %v180, 1e-06
  %v197 = vadd.f32 %v181, 1e-06
  %v198 = vadd.f32 %v182, 1e-06
  %v199 = vadd.f32 %v183, 1e-06
  %v200 = vadd.f32 %v184, 1e-06
  %v201 = vadd.f32 %v185, 1e-06
  %v202 = vadd.f32 %v186, 1e-06
  %v203 = vadd.f32 %v187, 1e-06
  %v204 = vadd.f32 %v188, 1e-06
  %v205 = vadd.f32 %v189, 1e-06
  %v206 = vrsqrt.pop %v190
  %v207 = vmul.f32 %v206, %v190
  %v208 = vmul.f32 %v207, %v206
  %v209 = vmul.f32 0.5, %v208
  %v210 = vsub.f32 1.5, %v209
  %v211 = vmul.f32 %v206, %v210
  %vm212 = vweird.f32 %v190
  %vm213 = vweird.f32 %v206
  %vm214 = vmor %vm212, %vm213
  %v215 = vsel %vm214, %v206, %v211
  %v216 = vrsqrt.pop %v191
  %v217 = vmul.f32 %v216, %v191
  %v218 = vmul.f32 %v217, %v216
  %v219 = vmul.f32 0.5, %v218
  %v220 = vsub.f32 1.5, %v219
  %v221 = vmul.f32 %v216, %v220
  %vm222 = vweird.f32 %v191
  %vm223 = vweird.f32 %v216
  %vm224 = vmor %vm222, %vm223
  %v225 = vsel %vm224, %v216, %v221
  %v226 = vrsqrt.pop %v192
  %v227 = vmul.f32 %v226, %v192
  %v228 = vmul.f32 %v227, %v226
  %v229 = vmul.f32 0.5, %v228
  %v230 = vsub.f32 1.5, %v229
  %v231 = vmul.f32 %v226, %v230
  %vm232 = vweird.f32 %v192
  %vm233 = vweird.f32 %v226
  %vm234 = vmor %vm232, %vm233
  %v235 = vsel %vm234, %v226, %v231
  %v236 = vrsqrt.pop %v193
  %v237 = vmul.f32 %v236, %v193
  %v238 = vmul.f32 %v237, %v236
  %v239 = vmul.f32 0.5, %v238
  %v240 = vsub.f32 1.5, %v239
  %v241 = vmul.f32 %v236, %v240
  %vm242 = vweird.f32 %v193
  %vm243 = vweird.f32 %v236
  %vm244 = vmor %vm242, %vm243
  %v245 = vsel %vm244, %v236, %v241
  %v246 = vrsqrt.pop %v194
  %v247 = vmul.f32 %v246, %v194
  %v248 = vmul.f32 %v247, %v246
  %v249 = vmul.f32 0.5, %v248
  %v250 = vsub.f32 1.5, %v249
  %v251 = vmul.f32 %v246, %v250
  %vm252 = vweird.f32 %v194
  %vm253 = vweird.f32 %v246
  %vm254 = vmor %vm252, %vm253
  %v255 = vsel %vm254, %v246, %v251
  %v256 = vrsqrt.pop %v195
  %v257 = vmul.f32 %v256, %v195
  %v258 = vmul.f32 %v257, %v256
  %v259 = vmul.f32 0.5, %v258
  %v260 = vsub.f32 1.5, %v259
  %v261 = vmul.f32 %v256, %v260
  %vm262 = vweird.f32 %v195
  %vm263 = vweird.f32 %v256
  %vm264 = vmor %vm262, %vm263
  %v265 = vsel %vm264, %v256, %v261
  %v266 = vrsqrt.pop %v196
  %v267 = vmul.f32 %v266, %v196
  %v268 = vmul.f32 %v267, %v266
  %v269 = vmul.f32 0.5, %v268
  %v270 = vsub.f32 1.5, %v269
  %v271 = vmul.f32 %v266, %v270
  %vm272 = vweird.f32 %v196
  %vm273 = vweird.f32 %v266
  %vm274 = vmor %vm272, %vm273
  %v275 = vsel %vm274, %v266, %v271
  %v276 = vrsqrt.pop %v197
  %v277 = vmul.f32 %v276, %v197
  %v278 = vmul.f32 %v277, %v276
  %v279 = vmul.f32 0.5, %v278
  %v280 = vsub.f32 1.5, %v279
  %v281 = vmul.f32 %v276, %v280
  %vm282 = vweird.f32 %v197
  %vm283 = vweird.f32 %v276
  %vm284 = vmor %vm282, %vm283
  %v285 = vsel %vm284, %v276, %v281
  %v286 = vrsqrt.pop %v198
  %v287 = vmul.f32 %v286, %v198
  %v288 = vmul.f32 %v287, %v286
  %v289 = vmul.f32 0.5, %v288
  %v290 = vsub.f32 1.5, %v289
  %v291 = vmul.f32 %v286, %v290
  %vm292 = vweird.f32 %v198
  %vm293 = vweird.f32 %v286
  %vm294 = vmor %vm292, %vm293
  %v295 = vsel %vm294, %v286, %v291
  %v296 = vrsqrt.pop %v199
  %v297 = vmul.f32 %v296, %v199
  %v298 = vmul.f32 %v297, %v296
  %v299 = vmul.f32 0.5, %v298
  %v300 = vsub.f32 1.5, %v299
  %v301 = vmul.f32 %v296, %v300
  %vm302 = vweird.f32 %v199
  %vm303 = vweird.f32 %v296
  %vm304 = vmor %vm302, %vm303
  %v305 = vsel %vm304, %v296, %v301
  %v306 = vrsqrt.pop %v200
  %v307 = vmul.f32 %v306, %v200
  %v308 = vmul.f32 %v307, %v306
  %v309 = vmul.f32 0.5, %v308
  %v310 = vsub.f32 1.5, %v309
  %v311 = vmul.f32 %v306, %v310
  %vm312 = vweird.f32 %v200
  %vm313 = vweird.f32 %v306
  %vm314 = vmor %vm312, %vm313
  %v315 = vsel %vm314, %v306, %v311
  %v316 = vrsqrt.pop %v201
  %v317 = vmul.f32 %v316, %v201
  %v318 = vmul.f32 %v317, %v316
  %v319 = vmul.f32 0.5, %v318
  %v320 = vsub.f32 1.5, %v319
  %v321 = vmul.f32 %v316, %v320
  %vm322 = vweird.f32 %v201
  %vm323 = vweird.f32 %v316
  %vm324 = vmor %vm322, %vm323
  %v325 = vsel %vm324, %v316, %v321
  %v326 = vrsqrt.pop %v202
  %v327 = vmul.f32 %v326, %v202
  %v328 = vmul.f32 %v327, %v326
  %v329 = vmul.f32 0.5, %v328
  %v330 = vsub.f32 1.5, %v329
  %v331 = vmul.f32 %v326, %v330
  %vm332 = vweird.f32 %v202
  %vm333 = vweird.f32 %v326
  %vm334 = vmor %vm332, %vm333
  %v335 = vsel %vm334, %v326, %v331
  %v336 = vrsqrt.pop %v203
  %v337 = vmul.f32 %v336, %v203
  %v338 = vmul.f32 %v337, %v336
  %v339 = vmul.f32 0.5, %v338
  %v340 = vsub.f32 1.5, %v339
  %v341 = vmul.f32 %v336, %v340
  %vm342 = vweird.f32 %v203
  %vm343 = vweird.f32 %v336
  %vm344 = vmor %vm342, %vm343
  %v345 = vsel %vm344, %v336, %v341
  %v346 = vrsqrt.pop %v204
  %v347 = vmul.f32 %v346, %v204
  %v348 = vmul.f32 %v347, %v346
  %v349 = vmul.f32 0.5, %v348
  %v350 = vsub.f32 1.5, %v349
  %v351 = vmul.f32 %v346, %v350
  %vm352 = vweird.f32 %v204
  %vm353 = vweird.f32 %v346
  %vm354 = vmor %vm352, %vm353
  %v355 = vsel %vm354, %v346, %v351
  %v356 = vrsqrt.pop %v205
  %v357 = vmul.f32 %v356, %v205
  %v358 = vmul.f32 %v357, %v356
  %v359 = vmul.f32 0.5, %v358
  %v360 = vsub.f32 1.5, %v359
  %v361 = vmul.f32 %v356, %v360
  %vm362 = vweird.f32 %v205
  %vm363 = vweird.f32 %v356
  %vm364 = vmor %vm362, %vm363
  %v365 = vsel %vm364, %v356, %v361
  %v366 = vmul.f32 %v110, %v215
  %v367 = vmul.f32 %v111, %v225
  %v368 = vmul.f32 %v112, %v235
  %v369 = vmul.f32 %v113, %v245
  %v370 = vmul.f32 %v114, %v255
  %v371 = vmul.f32 %v115, %v265
  %v372 = vmul.f32 %v116, %v275
  %v373 = vmul.f32 %v117, %v285
  %v374 = vmul.f32 %v118, %v295
  %v375 = vmul.f32 %v119, %v305
  %v376 = vmul.f32 %v120, %v315
  %v377 = vmul.f32 %v121, %v325
  %v378 = vmul.f32 %v122, %v335
  %v379 = vmul.f32 %v123, %v345
  %v380 = vmul.f32 %v124, %v355
  %v381 = vmul.f32 %v125, %v365
  %v382 = vld [vmem:[%s1] sm:$0x1]
  %v384 = vperm.slane %v382, 0
  %v386 = vmul.f32 %v366, %v384
  %v387 = vmul.f32 %v367, %v384
  %v388 = vmul.f32 %v368, %v384
  %v389 = vmul.f32 %v369, %v384
  %v390 = vmul.f32 %v370, %v384
  %v391 = vmul.f32 %v371, %v384
  %v392 = vmul.f32 %v372, %v384
  %v393 = vmul.f32 %v373, %v384
  %v394 = vmul.f32 %v374, %v384
  %v395 = vmul.f32 %v375, %v384
  %v396 = vmul.f32 %v376, %v384
  %v397 = vmul.f32 %v377, %v384
  %v398 = vmul.f32 %v378, %v384
  %v399 = vmul.f32 %v379, %v384
  %v400 = vmul.f32 %v380, %v384
  %v401 = vmul.f32 %v381, %v384
  %v402 = vld [vmem:[%s2] sm:$0x1]
  %v404 = vperm.slane %v402, 0
  %v406 = vadd.f32 %v386, %v404
  %v407 = vadd.f32 %v387, %v404
  %v408 = vadd.f32 %v388, %v404
  %v409 = vadd.f32 %v389, %v404
  %v410 = vadd.f32 %v390, %v404
  %v411 = vadd.f32 %v391, %v404
  %v412 = vadd.f32 %v392, %v404
  %v413 = vadd.f32 %v393, %v404
  %v414 = vadd.f32 %v394, %v404
  %v415 = vadd.f32 %v395, %v404
  %v416 = vadd.f32 %v396, %v404
  %v417 = vadd.f32 %v397, %v404
  %v418 = vadd.f32 %v398, %v404
  %v419 = vadd.f32 %v399, %v404
  %v420 = vadd.f32 %v400, %v404
  %v421 = vadd.f32 %v401, %v404
  %v422 = vpack.c.bf16 %v407, %v406
  %v423 = vpack.c.bf16 %v409, %v408
  %v424 = vpack.c.bf16 %v411, %v410
  %v425 = vpack.c.bf16 %v413, %v412
  %v426 = vpack.c.bf16 %v415, %v414
  %v427 = vpack.c.bf16 %v417, %v416
  %v428 = vpack.c.bf16 %v419, %v418
  %v429 = vpack.c.bf16 %v421, %v420
  %v430 = vld [vmem:[%s3] sm:$0xff]
  %v431 = vld [vmem:[%s3 + $0x8] sm:$0xf]
  %v432 = vld [vmem:[%s3 + $0xc] sm:$0xff]
  %v433 = vld [vmem:[%s3 + $0x14] sm:$0xf]
  %v434 = vld [vmem:[%s3 + $0x18] sm:$0xff]
  %v435 = vld [vmem:[%s3 + $0x20] sm:$0xf]
  %v436 = vld [vmem:[%s3 + $0x24] sm:$0xff]
  %v437 = vld [vmem:[%s3 + $0x2c] sm:$0xf]
  %v438 = vld [vmem:[%s3 + $0x30] sm:$0xff]
  %v439 = vld [vmem:[%s3 + $0x38] sm:$0xf]
  %v440 = vld [vmem:[%s3 + $0x3c] sm:$0xff]
  %v441 = vld [vmem:[%s3 + $0x44] sm:$0xf]
  %v442 = vld [vmem:[%s3 + $0x48] sm:$0xff]
  %v443 = vld [vmem:[%s3 + $0x50] sm:$0xf]
  %v444 = vld [vmem:[%s3 + $0x54] sm:$0xff]
  %v445 = vld [vmem:[%s3 + $0x5c] sm:$0xf]
  %v446 = vld [vmem:[%s3 + $0x60] sm:$0xff]
  %v447 = vld [vmem:[%s3 + $0x68] sm:$0xf]
  %v448 = vld [vmem:[%s3 + $0x6c] sm:$0xff]
  %v449 = vld [vmem:[%s3 + $0x74] sm:$0xf]
  %v450 = vld [vmem:[%s3 + $0x78] sm:$0xff]
  %v451 = vld [vmem:[%s3 + $0x80] sm:$0xf]
  %v452 = vld [vmem:[%s3 + $0x84] sm:$0xff]
  %v453 = vld [vmem:[%s3 + $0x8c] sm:$0xf]
  %v454 = vld [vmem:[%s3 + $0x90] sm:$0xff]
  %v455 = vld [vmem:[%s3 + $0x98] sm:$0xf]
  %v456 = vld [vmem:[%s3 + $0x9c] sm:$0xff]
  %v457 = vld [vmem:[%s3 + $0xa4] sm:$0xf]
  %v458 = vld [vmem:[%s3 + $0xa8] sm:$0xff]
  %v459 = vld [vmem:[%s3 + $0xb0] sm:$0xf]
  %v460 = vld [vmem:[%s3 + $0xb4] sm:$0xff]
  %v461 = vld [vmem:[%s3 + $0xbc] sm:$0xf]
  %v462 = vld [vmem:[%s4] sm:$0x7]
  %v464 = vperm.slane %v462, 0
  %v465 = vperm.slane %v462, 1
  %v466 = vperm.slane %v462, 2
  %v502 = vunpack.c.l.b16 %v430
  %v503 = vunpack.c.h.b16 %v430
  %v504 = vunpack.c.l.b16 %v431
  %v505 = vunpack.c.l.b16 %v432
  %v506 = vunpack.c.h.b16 %v432
  %v507 = vunpack.c.l.b16 %v433
  %v508 = vunpack.c.l.b16 %v434
  %v509 = vunpack.c.h.b16 %v434
  %v510 = vunpack.c.l.b16 %v435
  %v511 = vunpack.c.l.b16 %v436
  %v512 = vunpack.c.h.b16 %v436
  %v513 = vunpack.c.l.b16 %v437
  %v514 = vunpack.c.l.b16 %v438
  %v515 = vunpack.c.h.b16 %v438
  %v516 = vunpack.c.l.b16 %v439
  %v517 = vunpack.c.l.b16 %v440
  %v518 = vunpack.c.h.b16 %v440
  %v519 = vunpack.c.l.b16 %v441
  %v520 = vunpack.c.l.b16 %v442
  %v521 = vunpack.c.h.b16 %v442
  %v522 = vunpack.c.l.b16 %v443
  %v523 = vunpack.c.l.b16 %v444
  %v524 = vunpack.c.h.b16 %v444
  %v525 = vunpack.c.l.b16 %v445
  %v526 = vunpack.c.l.b16 %v446
  %v527 = vunpack.c.h.b16 %v446
  %v528 = vunpack.c.l.b16 %v447
  %v529 = vunpack.c.l.b16 %v448
  %v530 = vunpack.c.h.b16 %v448
  %v531 = vunpack.c.l.b16 %v449
  %v532 = vunpack.c.l.b16 %v450
  %v533 = vunpack.c.h.b16 %v450
  %v534 = vunpack.c.l.b16 %v451
  %v535 = vunpack.c.l.b16 %v452
  %v536 = vunpack.c.h.b16 %v452
  %v537 = vunpack.c.l.b16 %v453
  %v538 = vunpack.c.l.b16 %v454
  %v539 = vunpack.c.h.b16 %v454
  %v540 = vunpack.c.l.b16 %v455
  %v541 = vunpack.c.l.b16 %v456
  %v542 = vunpack.c.h.b16 %v456
  %v543 = vunpack.c.l.b16 %v457
  %v544 = vunpack.c.l.b16 %v458
  %v545 = vunpack.c.h.b16 %v458
  %v546 = vunpack.c.l.b16 %v459
  %v547 = vunpack.c.l.b16 %v460
  %v548 = vunpack.c.h.b16 %v460
  %v549 = vunpack.c.l.b16 %v461
  %v550 = vpack.c.b16 %v505, %v502
  %v551 = vpack.c.b16 %v506, %v503
  %v552 = vpack.c.b16 %v507, %v504
  %v553 = vpack.c.b16 %v511, %v508
  %v554 = vpack.c.b16 %v512, %v509
  %v555 = vpack.c.b16 %v513, %v510
  %v556 = vpack.c.b16 %v517, %v514
  %v557 = vpack.c.b16 %v518, %v515
  %v558 = vpack.c.b16 %v519, %v516
  %v559 = vpack.c.b16 %v523, %v520
  %v560 = vpack.c.b16 %v524, %v521
  %v561 = vpack.c.b16 %v525, %v522
  %v562 = vpack.c.b16 %v529, %v526
  %v563 = vpack.c.b16 %v530, %v527
  %v564 = vpack.c.b16 %v531, %v528
  %v565 = vpack.c.b16 %v535, %v532
  %v566 = vpack.c.b16 %v536, %v533
  %v567 = vpack.c.b16 %v537, %v534
  %v568 = vpack.c.b16 %v541, %v538
  %v569 = vpack.c.b16 %v542, %v539
  %v570 = vpack.c.b16 %v543, %v540
  %v571 = vpack.c.b16 %v547, %v544
  %v572 = vpack.c.b16 %v548, %v545
  %v573 = vpack.c.b16 %v549, %v546
  %598 = vmatpush.bf16.msra.mxu0 %v571
  %599 = vmatpush.bf16.msra.mxu0 %v568
  %600 = vmatpush.bf16.msra.mxu0 %v565
  %601 = vmatpush.bf16.msra.mxu0 %v562
  %602 = vmatpush.bf16.msra.mxu0 %v559
  %603 = vmatpush.bf16.msra.mxu0 %v556
  %604 = vmatpush.bf16.msra.mxu0 %v553
  %605 = vmatpush.bf16.msra.mxu0 %v550
  %606 = vmatmul.bf16.gmra.mxu0 %v422
  %v607 = vpop.f32.mrf.mxu0
  %v608 = vadd.f32 %v464, %v607
  %v609 = vpop.f32.mrf.mxu0
  %v610 = vadd.f32 %v464, %v609
  %611 = vmatmul.bf16.gmra.mxu0 %v423
  %v612 = vpop.f32.mrf.mxu0
  %v613 = vadd.f32 %v464, %v612
  %v614 = vpop.f32.mrf.mxu0
  %v615 = vadd.f32 %v464, %v614
  %616 = vmatmul.bf16.gmra.mxu0 %v424
  %v617 = vpop.f32.mrf.mxu0
  %v618 = vadd.f32 %v464, %v617
  %v619 = vpop.f32.mrf.mxu0
  %v620 = vadd.f32 %v464, %v619
  %621 = vmatmul.bf16.gmra.mxu0 %v425
  %v622 = vpop.f32.mrf.mxu0
  %v623 = vadd.f32 %v464, %v622
  %v624 = vpop.f32.mrf.mxu0
  %v625 = vadd.f32 %v464, %v624
  %626 = vmatmul.bf16.gmra.mxu0 %v426
  %v627 = vpop.f32.mrf.mxu0
  %v628 = vadd.f32 %v464, %v627
  %v629 = vpop.f32.mrf.mxu0
  %v630 = vadd.f32 %v464, %v629
  %631 = vmatmul.bf16.gmra.mxu0 %v427
  %v632 = vpop.f32.mrf.mxu0
  %v633 = vadd.f32 %v464, %v632
  %v634 = vpop.f32.mrf.mxu0
  %v635 = vadd.f32 %v464, %v634
  %636 = vmatmul.bf16.gmra.mxu0 %v428
  %v637 = vpop.f32.mrf.mxu0
  %v638 = vadd.f32 %v464, %v637
  %v639 = vpop.f32.mrf.mxu0
  %v640 = vadd.f32 %v464, %v639
  %641 = vmatmul.bf16.gmra.mxu0 %v429
  %v642 = vpop.f32.mrf.mxu0
  %v643 = vadd.f32 %v464, %v642
  %v644 = vpop.f32.mrf.mxu0
  %v645 = vadd.f32 %v464, %v644
  %646 = vdwg.mxu0
  %647 = vmatpush.bf16.msra.mxu0 %v572
  %648 = vmatpush.bf16.msra.mxu0 %v569
  %649 = vmatpush.bf16.msra.mxu0 %v566
  %650 = vmatpush.bf16.msra.mxu0 %v563
  %651 = vmatpush.bf16.msra.mxu0 %v560
  %652 = vmatpush.bf16.msra.mxu0 %v557
  %653 = vmatpush.bf16.msra.mxu0 %v554
  %654 = vmatpush.bf16.msra.mxu0 %v551
  %655 = vmatmul.bf16.gmra.mxu0 %v422
  %v656 = vpop.f32.mrf.mxu0
  %v657 = vadd.f32 %v465, %v656
  %v658 = vpop.f32.mrf.mxu0
  %v659 = vadd.f32 %v465, %v658
  %660 = vmatmul.bf16.gmra.mxu0 %v423
  %v661 = vpop.f32.mrf.mxu0
  %v662 = vadd.f32 %v465, %v661
  %v663 = vpop.f32.mrf.mxu0
  %v664 = vadd.f32 %v465, %v663
  %665 = vmatmul.bf16.gmra.mxu0 %v424
  %v666 = vpop.f32.mrf.mxu0
  %v667 = vadd.f32 %v465, %v666
  %v668 = vpop.f32.mrf.mxu0
  %v669 = vadd.f32 %v465, %v668
  %670 = vmatmul.bf16.gmra.mxu0 %v425
  %v671 = vpop.f32.mrf.mxu0
  %v672 = vadd.f32 %v465, %v671
  %v673 = vpop.f32.mrf.mxu0
  %v674 = vadd.f32 %v465, %v673
  %675 = vmatmul.bf16.gmra.mxu0 %v426
  %v676 = vpop.f32.mrf.mxu0
  %v677 = vadd.f32 %v465, %v676
  %v678 = vpop.f32.mrf.mxu0
  %v679 = vadd.f32 %v465, %v678
  %680 = vmatmul.bf16.gmra.mxu0 %v427
  %v681 = vpop.f32.mrf.mxu0
  %v682 = vadd.f32 %v465, %v681
  %v683 = vpop.f32.mrf.mxu0
  %v684 = vadd.f32 %v465, %v683
  %685 = vmatmul.bf16.gmra.mxu0 %v428
  %v686 = vpop.f32.mrf.mxu0
  %v687 = vadd.f32 %v465, %v686
  %v688 = vpop.f32.mrf.mxu0
  %v689 = vadd.f32 %v465, %v688
  %690 = vmatmul.bf16.gmra.mxu0 %v429
  %v691 = vpop.f32.mrf.mxu0
  %v692 = vadd.f32 %v465, %v691
  %v693 = vpop.f32.mrf.mxu0
  %v694 = vadd.f32 %v465, %v693
  %695 = vdwg.mxu0
  %696 = vmatpush.bf16.msra.mxu0 %v573
  %697 = vmatpush.bf16.msra.mxu0 %v570
  %698 = vmatpush.bf16.msra.mxu0 %v567
  %699 = vmatpush.bf16.msra.mxu0 %v564
  %700 = vmatpush.bf16.msra.mxu0 %v561
  %701 = vmatpush.bf16.msra.mxu0 %v558
  %702 = vmatpush.bf16.msra.mxu0 %v555
  %703 = vmatpush.bf16.msra.mxu0 %v552
  %704 = vmatmul.bf16.gmra.mxu0 %v422
  %v705 = vpop.f32.mrf.mxu0
  %v706 = vadd.f32 %v466, %v705
  %v707 = vpop.f32.mrf.mxu0
  %v708 = vadd.f32 %v466, %v707
  %709 = vmatmul.bf16.gmra.mxu0 %v423
  %v710 = vpop.f32.mrf.mxu0
  %v711 = vadd.f32 %v466, %v710
  %v712 = vpop.f32.mrf.mxu0
  %v713 = vadd.f32 %v466, %v712
  %714 = vmatmul.bf16.gmra.mxu0 %v424
  %v715 = vpop.f32.mrf.mxu0
  %v716 = vadd.f32 %v466, %v715
  %v717 = vpop.f32.mrf.mxu0
  %v718 = vadd.f32 %v466, %v717
  %719 = vmatmul.bf16.gmra.mxu0 %v425
  %v720 = vpop.f32.mrf.mxu0
  %v721 = vadd.f32 %v466, %v720
  %v722 = vpop.f32.mrf.mxu0
  %v723 = vadd.f32 %v466, %v722
  %724 = vmatmul.bf16.gmra.mxu0 %v426
  %v725 = vpop.f32.mrf.mxu0
  %v726 = vadd.f32 %v466, %v725
  %v727 = vpop.f32.mrf.mxu0
  %v728 = vadd.f32 %v466, %v727
  %729 = vmatmul.bf16.gmra.mxu0 %v427
  %v730 = vpop.f32.mrf.mxu0
  %v731 = vadd.f32 %v466, %v730
  %v732 = vpop.f32.mrf.mxu0
  %v733 = vadd.f32 %v466, %v732
  %734 = vmatmul.bf16.gmra.mxu0 %v428
  %v735 = vpop.f32.mrf.mxu0
  %v736 = vadd.f32 %v466, %v735
  %v737 = vpop.f32.mrf.mxu0
  %v738 = vadd.f32 %v466, %v737
  %739 = vmatmul.bf16.gmra.mxu0 %v429
  %v740 = vpop.f32.mrf.mxu0
  %v741 = vadd.f32 %v466, %v740
  %v742 = vpop.f32.mrf.mxu0
  %v743 = vadd.f32 %v466, %v742
  %744 = vdwg.mxu0
  %v745 = vmul.f32 %v608, 0.125
  %v746 = vmul.f32 %v610, 0.125
  %v747 = vmul.f32 %v613, 0.125
  %v748 = vmul.f32 %v615, 0.125
  %v749 = vmul.f32 %v618, 0.125
  %v750 = vmul.f32 %v620, 0.125
  %v751 = vmul.f32 %v623, 0.125
  %v752 = vmul.f32 %v625, 0.125
  %v753 = vmul.f32 %v628, 0.125
  %v754 = vmul.f32 %v630, 0.125
  %v755 = vmul.f32 %v633, 0.125
  %v756 = vmul.f32 %v635, 0.125
  %v757 = vmul.f32 %v638, 0.125
  %v758 = vmul.f32 %v640, 0.125
  %v759 = vmul.f32 %v643, 0.125
  %v760 = vmul.f32 %v645, 0.125
  %v761 = vpack.c.bf16 %v745, %v745
  %v762 = vpack.c.bf16 %v746, %v746
  %v763 = vpack.c.bf16 %v747, %v747
  %v764 = vpack.c.bf16 %v748, %v748
  %v765 = vpack.c.bf16 %v749, %v749
  %v766 = vpack.c.bf16 %v750, %v750
  %v767 = vpack.c.bf16 %v751, %v751
  %v768 = vpack.c.bf16 %v752, %v752
  %v769 = vpack.c.bf16 %v753, %v753
  %v770 = vpack.c.bf16 %v754, %v754
  %v771 = vpack.c.bf16 %v755, %v755
  %v772 = vpack.c.bf16 %v756, %v756
  %v773 = vpack.c.bf16 %v757, %v757
  %v774 = vpack.c.bf16 %v758, %v758
  %v775 = vpack.c.bf16 %v759, %v759
  %v776 = vpack.c.bf16 %v760, %v760
  %777 = vst [vmem:[%s5] sm:$0xf] %v761
  %778 = vst [vmem:[%s5 + $0x4] sm:$0xf] %v762
  %779 = vst [vmem:[%s5 + $0x8] sm:$0xf] %v763
  %780 = vst [vmem:[%s5 + $0xc] sm:$0xf] %v764
  %781 = vst [vmem:[%s5 + $0x10] sm:$0xf] %v765
  %782 = vst [vmem:[%s5 + $0x14] sm:$0xf] %v766
  %783 = vst [vmem:[%s5 + $0x18] sm:$0xf] %v767
  %784 = vst [vmem:[%s5 + $0x1c] sm:$0xf] %v768
  %785 = vst [vmem:[%s5 + $0x20] sm:$0xf] %v769
  %786 = vst [vmem:[%s5 + $0x24] sm:$0xf] %v770
  %787 = vst [vmem:[%s5 + $0x28] sm:$0xf] %v771
  %788 = vst [vmem:[%s5 + $0x2c] sm:$0xf] %v772
  %789 = vst [vmem:[%s5 + $0x30] sm:$0xf] %v773
  %790 = vst [vmem:[%s5 + $0x34] sm:$0xf] %v774
  %791 = vst [vmem:[%s5 + $0x38] sm:$0xf] %v775
  %792 = vst [vmem:[%s5 + $0x3c] sm:$0xf] %v776
  %v793 = vpack.c.bf16 %v657, %v657
  %v794 = vpack.c.bf16 %v659, %v659
  %v795 = vpack.c.bf16 %v662, %v662
  %v796 = vpack.c.bf16 %v664, %v664
  %v797 = vpack.c.bf16 %v667, %v667
  %v798 = vpack.c.bf16 %v669, %v669
  %v799 = vpack.c.bf16 %v672, %v672
  %v800 = vpack.c.bf16 %v674, %v674
  %v801 = vpack.c.bf16 %v677, %v677
  %v802 = vpack.c.bf16 %v679, %v679
  %v803 = vpack.c.bf16 %v682, %v682
  %v804 = vpack.c.bf16 %v684, %v684
  %v805 = vpack.c.bf16 %v687, %v687
  %v806 = vpack.c.bf16 %v689, %v689
  %v807 = vpack.c.bf16 %v692, %v692
  %v808 = vpack.c.bf16 %v694, %v694
  %809 = vst [vmem:[%s6] sm:$0xf] %v793
  %810 = vst [vmem:[%s6 + $0x4] sm:$0xf] %v794
  %811 = vst [vmem:[%s6 + $0x8] sm:$0xf] %v795
  %812 = vst [vmem:[%s6 + $0xc] sm:$0xf] %v796
  %813 = vst [vmem:[%s6 + $0x10] sm:$0xf] %v797
  %814 = vst [vmem:[%s6 + $0x14] sm:$0xf] %v798
  %815 = vst [vmem:[%s6 + $0x18] sm:$0xf] %v799
  %816 = vst [vmem:[%s6 + $0x1c] sm:$0xf] %v800
  %817 = vst [vmem:[%s6 + $0x20] sm:$0xf] %v801
  %818 = vst [vmem:[%s6 + $0x24] sm:$0xf] %v802
  %819 = vst [vmem:[%s6 + $0x28] sm:$0xf] %v803
  %820 = vst [vmem:[%s6 + $0x2c] sm:$0xf] %v804
  %821 = vst [vmem:[%s6 + $0x30] sm:$0xf] %v805
  %822 = vst [vmem:[%s6 + $0x34] sm:$0xf] %v806
  %823 = vst [vmem:[%s6 + $0x38] sm:$0xf] %v807
  %824 = vst [vmem:[%s6 + $0x3c] sm:$0xf] %v808
  %v825 = vpack.c.bf16 %v706, %v706
  %v826 = vpack.c.bf16 %v708, %v708
  %v827 = vpack.c.bf16 %v711, %v711
  %v828 = vpack.c.bf16 %v713, %v713
  %v829 = vpack.c.bf16 %v716, %v716
  %v830 = vpack.c.bf16 %v718, %v718
  %v831 = vpack.c.bf16 %v721, %v721
  %v832 = vpack.c.bf16 %v723, %v723
  %v833 = vpack.c.bf16 %v726, %v726
  %v834 = vpack.c.bf16 %v728, %v728
  %v835 = vpack.c.bf16 %v731, %v731
  %v836 = vpack.c.bf16 %v733, %v733
  %v837 = vpack.c.bf16 %v736, %v736
  %v838 = vpack.c.bf16 %v738, %v738
  %v839 = vpack.c.bf16 %v741, %v741
  %v840 = vpack.c.bf16 %v743, %v743
  %841 = vst [vmem:[%s7] sm:$0xf] %v825
  %842 = vst [vmem:[%s7 + $0x4] sm:$0xf] %v826
  %843 = vst [vmem:[%s7 + $0x8] sm:$0xf] %v827
  %844 = vst [vmem:[%s7 + $0xc] sm:$0xf] %v828
  %845 = vst [vmem:[%s7 + $0x10] sm:$0xf] %v829
  %846 = vst [vmem:[%s7 + $0x14] sm:$0xf] %v830
  %847 = vst [vmem:[%s7 + $0x18] sm:$0xf] %v831
  %848 = vst [vmem:[%s7 + $0x1c] sm:$0xf] %v832
  %849 = vst [vmem:[%s7 + $0x20] sm:$0xf] %v833
  %850 = vst [vmem:[%s7 + $0x24] sm:$0xf] %v834
  %851 = vst [vmem:[%s7 + $0x28] sm:$0xf] %v835
  %852 = vst [vmem:[%s7 + $0x2c] sm:$0xf] %v836
  %853 = vst [vmem:[%s7 + $0x30] sm:$0xf] %v837
  %854 = vst [vmem:[%s7 + $0x34] sm:$0xf] %v838
  %855 = vst [vmem:[%s7 + $0x38] sm:$0xf] %v839
  %856 = vst [vmem:[%s7 + $0x3c] sm:$0xf] %v840
  // Predicated region
  $region22: #{anyloc_forward.7} parent=0 // pred_check
    _
  $region23: #{anyloc_forward.7} parent=0 // pred_check_branch
    %858 = sbr.rel (0) target = $region25
  $region24: #{anyloc_forward.7} parent=0 // pred_region
    _
  $region25: #{anyloc_forward.7} parent=0 // pred_fallthru
    _
  // Predicated region
  $region26: #{anyloc_forward.7} parent=0 // pred_check
    _
  $region27: #{anyloc_forward.7} parent=0 // pred_check_branch
    %860 = sbr.rel (0) target = $region29
  $region28: #{anyloc_forward.7} parent=0 // pred_region
    _
  $region29: #{anyloc_forward.7} parent=0 // pred_fallthru
    _
  // Predicated region
  $region30: #{anyloc_forward.7} parent=0 // pred_check
    _
  $region31: #{anyloc_forward.7} parent=0 // pred_check_branch
    %862 = sbr.rel (0) target = $region33
  $region32: #{anyloc_forward.7} parent=0 // pred_region
    _
  $region33: #{anyloc_forward.7} parent=0 // pred_fallthru
    _
  // Predicated region
  $region34: #{anyloc_forward.7} parent=0 // pred_check
    _
  $region35: #{anyloc_forward.7} parent=0 // pred_check_branch
    %864 = sbr.rel (0) target = $region37
  $region36: #{anyloc_forward.7} parent=0 // pred_region
    _
  $region37: #{anyloc_forward.7} parent=0 // pred_fallthru
    _
  // Predicated region
  $region38: #{anyloc_forward.7} parent=0 // pred_check
    _
  $region39: #{anyloc_forward.7} parent=0 // pred_check_branch
    %866 = sbr.rel (0) target = $region41
  $region40: #{anyloc_forward.7} parent=0 // pred_region
    _
  $region41: #{anyloc_forward.7} parent=0 // pred_fallthru
    _
  // Predicated region
  $region42: #{anyloc_forward.7} parent=0 // pred_check
    _
  $region43: #{anyloc_forward.7} parent=0 // pred_check_branch
    %868 = sbr.rel (0) target = $region45
  $region44: #{anyloc_forward.7} parent=0 // pred_region
    _
  $region45: #{anyloc_forward.7} parent=0 // pred_fallthru
    _

// kernel: anyloc_forward.8
$region0: #{anyloc_forward.8}
  #allocation0 [shape = 'u32[]', space=smem, size = 0x4, offset = 0x4, fixed_abs, tag = 'smem constant byte address 0x4 - core index']
  #allocation1 [shape = 'u32[72,128]{1,0:T(1,128)}', space=vmem, size = 0x9000, scoped, tag = 'internal scratch']
  %s0 = inlined_call_operand.vmem [shape: bf16[128,128], index: 0, kind: input, shape index: {}]
  %s1 = inlined_call_operand.vmem [shape: bf16[128,128], index: 1, kind: input, shape index: {}]
  %s2 = inlined_call_operand.vmem [shape: bf16[128,128], index: 2, kind: input, shape index: {}]
  %s3 = inlined_call_operand.vmem [shape: bf16[128,128], index: 3, kind: input, shape index: {}]
  %s4 = inlined_call_operand.vmem [shape: bf16[128,128], index: 4, kind: input, shape index: {}]
  %s5 = inlined_call_operand.vmem [shape: f32[1,128], index: 5, kind: input, shape index: {}]
  %s6 = inlined_call_operand.vmem [shape: f32[1,128], index: 6, kind: input, shape index: {}]
  %s7 = inlined_call_operand.vmem [shape: f32[1,128], index: 7, kind: input, shape index: {}]
  %s8 = inlined_call_operand.vmem [shape: bf16[128,256], index: 8, kind: input, shape index: {}]
  %s9 = inlined_call_operand.vmem [shape: f32[1,256], index: 9, kind: input, shape index: {}]
  %s10 = inlined_call_operand.vmem [shape: bf16[256,128], index: 10, kind: input, shape index: {}]
  %s11 = inlined_call_operand.vmem [shape: f32[1,128], index: 11, kind: input, shape index: {}]
  %s12 = inlined_call_operand.vmem [shape: bf16[128,128], index: 12, kind: output, shape index: {}]
  %s13 = sld [smem:[#allocation0]]
  $region81: #{anyloc_forward.8} parent=0
    _
  %s15 = ssub.s32 1, %s13
  %s16 = scalar_select 0, %s15, %s13
  loop: start=0, step=1, limit=4
  $region2: #{anyloc_forward.8} parent=0 // loop_pre_header
    _
  $region3: #{anyloc_forward.8} parent=0 // loop_header
    %s18 = sphi 0, %s22
    %p19 = scmp.ge.s32.totalorder %s18, 4
    %s25 = sphi 0, %s37
    %s26 = sphi 0, %s33
    %s27 = sphi 0, %s25
    %s28 = sphi 0, %s26
    %s29 = sphi 0, %s27
    %s30 = sphi 0, %s28
    %s42 = sphi 0, %s44
    %s45 = sphi 0, %s42
    %s46 = sphi 0, %s45
    %s62 = sphi 0, %s46
    %s68 = sphi 0, %s70
    %s71 = sphi 0, %s68
    %s72 = sphi 0, %s71
    %s88 = sphi 0, %s72
    %s94 = sphi 0, %s96
    %s97 = sphi 0, %s94
    %s98 = sphi 0, %s97
    %s114 = sphi 0, %s98
    %s122 = sphi 0, %s124
    %s125 = sphi 0, %s122
    %s126 = sphi 0, %s125
    %s142 = sphi 0, %s126
    %s146 = sphi 0, %s146
    %s148 = sphi 0, %s146
    %s149 = sphi 0, %s148
    %s163 = sphi 0, %s149
    %s167 = sphi 0, %s167
    %s169 = sphi 0, %s167
    %s170 = sphi 0, %s169
    %s184 = sphi 0, %s170
    %s188 = sphi 0, %s188
    %s190 = sphi 0, %s188
    %s191 = sphi 0, %s190
    %s205 = sphi 0, %s191
    %s209 = sphi 0, %s209
    %s211 = sphi 0, %s209
    %s212 = sphi 0, %s211
    %s226 = sphi 0, %s212
    %s230 = sphi 0, %s230
    %s232 = sphi 0, %s230
    %s233 = sphi 0, %s232
    %s247 = sphi 0, %s233
    %s251 = sphi 0, %s251
    %s253 = sphi 0, %s251
    %s254 = sphi 0, %s253
    %s268 = sphi 0, %s254
    %s272 = sphi 0, %s272
    %s274 = sphi 0, %s272
    %s275 = sphi 0, %s274
    %s289 = sphi 0, %s275
    %s293 = sphi 0, %s293
    %s295 = sphi 0, %s293
    %s296 = sphi 0, %s295
    %s310 = sphi 0, %s296
    %s318 = sphi 0, %s320
    %s321 = sphi 0, %s318
    %s322 = sphi 0, %s321
    %s338 = sphi 0, %s322
  $region4: #{anyloc_forward.8} parent=0 // loop_header_branch
    %21 = sbr.rel (%p19) target = $region8
  $region5: #{anyloc_forward.8} parent=0 // loop_body
    %s23 = ssub.s32 %s18, 1
    %s24 = ssub.s32 %s18, 2
    %s31 = sadd.s32 1, %s26
    %p32 = scmp.ge.s32.totalorder %s31, 1
    %s33 = scalar_select %p32, 0, %s31
    %s34 = sadd.s32 1, %s25
    %s35 = scalar_select %p32, %s34, %s25
    %p36 = scmp.ge.s32.totalorder %s35, 2
    %s37 = scalar_select %p36, 0, %s35
    %s38 = sadd.s32 %s25, %s26
    %s39 = sadd.s32 %s37, %s33
    %s40 = ssub.s32 %s38, %s39
    %p41 = scmp.eq.s32.totalorder %s40, 0
    %s43 = sadd.s32 %s42, 1
    %s44 = scalar_select %p41, %s42, %s43
    %p47 = pneg %p41
    %p48 = scmp.eq.s32.totalorder %s18, 1
    %p49 = por %p47, %p48
    %p50 = scmp.ne.s32.totalorder %s42, %s45
    %p51 = scmp.eq.s32.totalorder %s18, 0
    %p52 = por %p50, %p51
    %p53 = scmp.ne.s32.totalorder %s42, %s45
    %p54 = scmp.eq.s32.totalorder %s23, 1
    %p55 = por %p53, %p54
    %p56 = scmp.ne.s32.totalorder %s45, %s46
    %p57 = scmp.eq.s32.totalorder %s23, 0
    %p58 = por %p56, %p57
    %p59 = scmp.ne.s32.totalorder %s45, %s46
    %p60 = scmp.eq.s32.totalorder %s24, 1
    %p61 = por %p59, %p60
    %p63 = scmp.ne.s32.totalorder %s46, %s62
    %p64 = scmp.eq.s32.totalorder %s24, 0
    %p65 = por %p63, %p64
    %s66 = ssub.s32 %s25, %s37
    %p67 = scmp.eq.s32.totalorder %s66, 0
    %s69 = sadd.s32 %s68, 1
    %s70 = scalar_select %p67, %s68, %s69
    %p73 = pneg %p67
    %p74 = scmp.eq.s32.totalorder %s18, 1
    %p75 = por %p73, %p74
    %p76 = scmp.ne.s32.totalorder %s68, %s71
    %p77 = scmp.eq.s32.totalorder %s18, 0
    %p78 = por %p76, %p77
    %p79 = scmp.ne.s32.totalorder %s68, %s71
    %p80 = scmp.eq.s32.totalorder %s23, 1
    %p81 = por %p79, %p80
    %p82 = scmp.ne.s32.totalorder %s71, %s72
    %p83 = scmp.eq.s32.totalorder %s23, 0
    %p84 = por %p82, %p83
    %p85 = scmp.ne.s32.totalorder %s71, %s72
    %p86 = scmp.eq.s32.totalorder %s24, 1
    %p87 = por %p85, %p86
    %p89 = scmp.ne.s32.totalorder %s72, %s88
    %p90 = scmp.eq.s32.totalorder %s24, 0
    %p91 = por %p89, %p90
    %s92 = ssub.s32 %s25, %s37
    %p93 = scmp.eq.s32.totalorder %s92, 0
    %s95 = sadd.s32 %s94, 1
    %s96 = scalar_select %p93, %s94, %s95
    %p99 = pneg %p93
    %p100 = scmp.eq.s32.totalorder %s18, 1
    %p101 = por %p99, %p100
    %p102 = scmp.ne.s32.totalorder %s94, %s97
    %p103 = scmp.eq.s32.totalorder %s18, 0
    %p104 = por %p102, %p103
    %p105 = scmp.ne.s32.totalorder %s94, %s97
    %p106 = scmp.eq.s32.totalorder %s23, 1
    %p107 = por %p105, %p106
    %p108 = scmp.ne.s32.totalorder %s97, %s98
    %p109 = scmp.eq.s32.totalorder %s23, 0
    %p110 = por %p108, %p109
    %p111 = scmp.ne.s32.totalorder %s97, %s98
    %p112 = scmp.eq.s32.totalorder %s24, 1
    %p113 = por %p111, %p112
    %p115 = scmp.ne.s32.totalorder %s98, %s114
    %p116 = scmp.eq.s32.totalorder %s24, 0
    %p117 = por %p115, %p116
    %s118 = sadd.s32 %s25, %s26
    %s119 = sadd.s32 %s37, %s33
    %s120 = ssub.s32 %s118, %s119
    %p121 = scmp.eq.s32.totalorder %s120, 0
    %s123 = sadd.s32 %s122, 1
    %s124 = scalar_select %p121, %s122, %s123
    %p127 = pneg %p121
    %p128 = scmp.eq.s32.totalorder %s18, 1
    %p129 = por %p127, %p128
    %p130 = scmp.ne.s32.totalorder %s122, %s125
    %p131 = scmp.eq.s32.totalorder %s18, 0
    %p132 = por %p130, %p131
    %p133 = scmp.ne.s32.totalorder %s122, %s125
    %p134 = scmp.eq.s32.totalorder %s23, 1
    %p135 = por %p133, %p134
    %p136 = scmp.ne.s32.totalorder %s125, %s126
    %p137 = scmp.eq.s32.totalorder %s23, 0
    %p138 = por %p136, %p137
    %p139 = scmp.ne.s32.totalorder %s125, %s126
    %p140 = scmp.eq.s32.totalorder %s24, 1
    %p141 = por %p139, %p140
    %p143 = scmp.ne.s32.totalorder %s126, %s142
    %p144 = scmp.eq.s32.totalorder %s24, 0
    %p145 = por %p143, %p144
    %s147 = sadd.s32 %s146, 1
    %p150 = scmp.eq.s32.totalorder %s18, 1
    %p151 = scmp.ne.s32.totalorder %s146, %s148
    %p152 = scmp.eq.s32.totalorder %s18, 0
    %p153 = por %p151, %p152
    %p154 = scmp.ne.s32.totalorder %s146, %s148
    %p155 = scmp.eq.s32.totalorder %s23, 1
    %p156 = por %p154, %p155
    %p157 = scmp.ne.s32.totalorder %s148, %s149
    %p158 = scmp.eq.s32.totalorder %s23, 0
    %p159 = por %p157, %p158
    %p160 = scmp.ne.s32.totalorder %s148, %s149
    %p161 = scmp.eq.s32.totalorder %s24, 1
    %p162 = por %p160, %p161
    %p164 = scmp.ne.s32.totalorder %s149, %s163
    %p165 = scmp.eq.s32.totalorder %s24, 0
    %p166 = por %p164, %p165
    %s168 = sadd.s32 %s167, 1
    %p171 = scmp.eq.s32.totalorder %s18, 1
    %p172 = scmp.ne.s32.totalorder %s167, %s169
    %p173 = scmp.eq.s32.totalorder %s18, 0
    %p174 = por %p172, %p173
    %p175 = scmp.ne.s32.totalorder %s167, %s169
    %p176 = scmp.eq.s32.totalorder %s23, 1
    %p177 = por %p175, %p176
    %p178 = scmp.ne.s32.totalorder %s169, %s170
    %p179 = scmp.eq.s32.totalorder %s23, 0
    %p180 = por %p178, %p179
    %p181 = scmp.ne.s32.totalorder %s169, %s170
    %p182 = scmp.eq.s32.totalorder %s24, 1
    %p183 = por %p181, %p182
    %p185 = scmp.ne.s32.totalorder %s170, %s184
    %p186 = scmp.eq.s32.totalorder %s24, 0
    %p187 = por %p185, %p186
    %s189 = sadd.s32 %s188, 1
    %p192 = scmp.eq.s32.totalorder %s18, 1
    %p193 = scmp.ne.s32.totalorder %s188, %s190
    %p194 = scmp.eq.s32.totalorder %s18, 0
    %p195 = por %p193, %p194
    %p196 = scmp.ne.s32.totalorder %s188, %s190
    %p197 = scmp.eq.s32.totalorder %s23, 1
    %p198 = por %p196, %p197
    %p199 = scmp.ne.s32.totalorder %s190, %s191
    %p200 = scmp.eq.s32.totalorder %s23, 0
    %p201 = por %p199, %p200
    %p202 = scmp.ne.s32.totalorder %s190, %s191
    %p203 = scmp.eq.s32.totalorder %s24, 1
    %p204 = por %p202, %p203
    %p206 = scmp.ne.s32.totalorder %s191, %s205
    %p207 = scmp.eq.s32.totalorder %s24, 0
    %p208 = por %p206, %p207
    %s210 = sadd.s32 %s209, 1
    %p213 = scmp.eq.s32.totalorder %s18, 1
    %p214 = scmp.ne.s32.totalorder %s209, %s211
    %p215 = scmp.eq.s32.totalorder %s18, 0
    %p216 = por %p214, %p215
    %p217 = scmp.ne.s32.totalorder %s209, %s211
    %p218 = scmp.eq.s32.totalorder %s23, 1
    %p219 = por %p217, %p218
    %p220 = scmp.ne.s32.totalorder %s211, %s212
    %p221 = scmp.eq.s32.totalorder %s23, 0
    %p222 = por %p220, %p221
    %p223 = scmp.ne.s32.totalorder %s211, %s212
    %p224 = scmp.eq.s32.totalorder %s24, 1
    %p225 = por %p223, %p224
    %p227 = scmp.ne.s32.totalorder %s212, %s226
    %p228 = scmp.eq.s32.totalorder %s24, 0
    %p229 = por %p227, %p228
    %s231 = sadd.s32 %s230, 1
    %p234 = scmp.eq.s32.totalorder %s18, 1
    %p235 = scmp.ne.s32.totalorder %s230, %s232
    %p236 = scmp.eq.s32.totalorder %s18, 0
    %p237 = por %p235, %p236
    %p238 = scmp.ne.s32.totalorder %s230, %s232
    %p239 = scmp.eq.s32.totalorder %s23, 1
    %p240 = por %p238, %p239
    %p241 = scmp.ne.s32.totalorder %s232, %s233
    %p242 = scmp.eq.s32.totalorder %s23, 0
    %p243 = por %p241, %p242
    %p244 = scmp.ne.s32.totalorder %s232, %s233
    %p245 = scmp.eq.s32.totalorder %s24, 1
    %p246 = por %p244, %p245
    %p248 = scmp.ne.s32.totalorder %s233, %s247
    %p249 = scmp.eq.s32.totalorder %s24, 0
    %p250 = por %p248, %p249
    %s252 = sadd.s32 %s251, 1
    %p255 = scmp.eq.s32.totalorder %s18, 1
    %p256 = scmp.ne.s32.totalorder %s251, %s253
    %p257 = scmp.eq.s32.totalorder %s18, 0
    %p258 = por %p256, %p257
    %p259 = scmp.ne.s32.totalorder %s251, %s253
    %p260 = scmp.eq.s32.totalorder %s23, 1
    %p261 = por %p259, %p260
    %p262 = scmp.ne.s32.totalorder %s253, %s254
    %p263 = scmp.eq.s32.totalorder %s23, 0
    %p264 = por %p262, %p263
    %p265 = scmp.ne.s32.totalorder %s253, %s254
    %p266 = scmp.eq.s32.totalorder %s24, 1
    %p267 = por %p265, %p266
    %p269 = scmp.ne.s32.totalorder %s254, %s268
    %p270 = scmp.eq.s32.totalorder %s24, 0
    %p271 = por %p269, %p270
    %s273 = sadd.s32 %s272, 1
    %p276 = scmp.eq.s32.totalorder %s18, 1
    %p277 = scmp.ne.s32.totalorder %s272, %s274
    %p278 = scmp.eq.s32.totalorder %s18, 0
    %p279 = por %p277, %p278
    %p280 = scmp.ne.s32.totalorder %s272, %s274
    %p281 = scmp.eq.s32.totalorder %s23, 1
    %p282 = por %p280, %p281
    %p283 = scmp.ne.s32.totalorder %s274, %s275
    %p284 = scmp.eq.s32.totalorder %s23, 0
    %p285 = por %p283, %p284
    %p286 = scmp.ne.s32.totalorder %s274, %s275
    %p287 = scmp.eq.s32.totalorder %s24, 1
    %p288 = por %p286, %p287
    %p290 = scmp.ne.s32.totalorder %s275, %s289
    %p291 = scmp.eq.s32.totalorder %s24, 0
    %p292 = por %p290, %p291
    %s294 = sadd.s32 %s293, 1
    %p297 = scmp.eq.s32.totalorder %s18, 1
    %p298 = scmp.ne.s32.totalorder %s293, %s295
    %p299 = scmp.eq.s32.totalorder %s18, 0
    %p300 = por %p298, %p299
    %p301 = scmp.ne.s32.totalorder %s293, %s295
    %p302 = scmp.eq.s32.totalorder %s23, 1
    %p303 = por %p301, %p302
    %p304 = scmp.ne.s32.totalorder %s295, %s296
    %p305 = scmp.eq.s32.totalorder %s23, 0
    %p306 = por %p304, %p305
    %p307 = scmp.ne.s32.totalorder %s295, %s296
    %p308 = scmp.eq.s32.totalorder %s24, 1
    %p309 = por %p307, %p308
    %p311 = scmp.ne.s32.totalorder %s296, %s310
    %p312 = scmp.eq.s32.totalorder %s24, 0
    %p313 = por %p311, %p312
    %s314 = sadd.s32 %s25, %s26
    %s315 = sadd.s32 %s37, %s33
    %s316 = ssub.s32 %s314, %s315
    %p317 = scmp.eq.s32.totalorder %s316, 0
    %s319 = sadd.s32 %s318, 1
    %s320 = scalar_select %p317, %s318, %s319
    %p323 = pneg %p317
    %p324 = scmp.eq.s32.totalorder %s18, 1
    %p325 = por %p323, %p324
    %p326 = scmp.ne.s32.totalorder %s318, %s321
    %p327 = scmp.eq.s32.totalorder %s18, 0
    %p328 = por %p326, %p327
    %p329 = scmp.ne.s32.totalorder %s318, %s321
    %p330 = scmp.eq.s32.totalorder %s23, 1
    %p331 = por %p329, %p330
    %p332 = scmp.ne.s32.totalorder %s321, %s322
    %p333 = scmp.eq.s32.totalorder %s23, 0
    %p334 = por %p332, %p333
    %p335 = scmp.ne.s32.totalorder %s321, %s322
    %p336 = scmp.eq.s32.totalorder %s24, 1
    %p337 = por %p335, %p336
    %p339 = scmp.ne.s32.totalorder %s322, %s338
    %p340 = scmp.eq.s32.totalorder %s24, 0
    %p341 = por %p339, %p340
    %p342 = scmp.le.s32.totalorder 1, %s18
    %p343 = scmp.lt.s32.totalorder %s18, 3
    %p344 = pnand %p342, %p343
    %p345 = pneg %p344
    // Predicated region
    $region9: #{anyloc_forward.8} parent=5 // pred_check
      _
    $region10: #{anyloc_forward.8} parent=5 // pred_check_branch
      %347 = sbr.rel (%p344) target = $region12
    $region11: #{anyloc_forward.8} parent=5 // pred_region
      %s348 = ssub.s32 %s18, 1
      // Predicated region
      $region13: #{anyloc_forward.8} parent=11 // pred_check
        %p349 = pneg %p159
      $region14: #{anyloc_forward.8} parent=11 // pred_check_branch
        %351 = sbr.rel (%p349) target = $region16
      $region15: #{anyloc_forward.8} parent=11 // pred_region
        _
      $region16: #{anyloc_forward.8} parent=11 // pred_fallthru
        _
      // Predicated region
      $region17: #{anyloc_forward.8} parent=11 // pred_check
        %p352 = pneg %p180
      $region18: #{anyloc_forward.8} parent=11 // pred_check_branch
        %354 = sbr.rel (%p352) target = $region20
      $region19: #{anyloc_forward.8} parent=11 // pred_region
        _
      $region20: #{anyloc_forward.8} parent=11 // pred_fallthru
        _
      // Predicated region
      $region21: #{anyloc_forward.8} parent=11 // pred_check
        %p355 = pneg %p201
      $region22: #{anyloc_forward.8} parent=11 // pred_check_branch
        %357 = sbr.rel (%p355) target = $region24
      $region23: #{anyloc_forward.8} parent=11 // pred_region
        _
      $region24: #{anyloc_forward.8} parent=11 // pred_fallthru
        _
      // Predicated region
      $region25: #{anyloc_forward.8} parent=11 // pred_check
        %p358 = pneg %p222
      $region26: #{anyloc_forward.8} parent=11 // pred_check_branch
        %360 = sbr.rel (%p358) target = $region28
      $region27: #{anyloc_forward.8} parent=11 // pred_region
        _
      $region28: #{anyloc_forward.8} parent=11 // pred_fallthru
        _
      // Predicated region
      $region29: #{anyloc_forward.8} parent=11 // pred_check
        %p361 = pneg %p243
      $region30: #{anyloc_forward.8} parent=11 // pred_check_branch
        %363 = sbr.rel (%p361) target = $region32
      $region31: #{anyloc_forward.8} parent=11 // pred_region
        _
      $region32: #{anyloc_forward.8} parent=11 // pred_fallthru
        _
      // Predicated region
      $region33: #{anyloc_forward.8} parent=11 // pred_check
        %p364 = pneg %p264
      $region34: #{anyloc_forward.8} parent=11 // pred_check_branch
        %366 = sbr.rel (%p364) target = $region36
      $region35: #{anyloc_forward.8} parent=11 // pred_region
        _
      $region36: #{anyloc_forward.8} parent=11 // pred_fallthru
        _
      // Predicated region
      $region37: #{anyloc_forward.8} parent=11 // pred_check
        %p367 = pneg %p285
      $region38: #{anyloc_forward.8} parent=11 // pred_check_branch
        %369 = sbr.rel (%p367) target = $region40
      $region39: #{anyloc_forward.8} parent=11 // pred_region
        _
      $region40: #{anyloc_forward.8} parent=11 // pred_fallthru
        _
      // Predicated region
      $region41: #{anyloc_forward.8} parent=11 // pred_check
        %p370 = pneg %p306
      $region42: #{anyloc_forward.8} parent=11 // pred_check_branch
        %372 = sbr.rel (%p370) target = $region44
      $region43: #{anyloc_forward.8} parent=11 // pred_region
        _
      $region44: #{anyloc_forward.8} parent=11 // pred_fallthru
        _
    $region12: #{anyloc_forward.8} parent=5 // pred_fallthru
      _
    %p373 = scmp.lt.s32.totalorder %s18, 2
    // Predicated region
    $region45: #{anyloc_forward.8} parent=5 // pred_check
      %p374 = pneg %p373
    $region46: #{anyloc_forward.8} parent=5 // pred_check_branch
      %376 = sbr.rel (%p374) target = $region48
    $region47: #{anyloc_forward.8} parent=5 // pred_region
      // Predicated region
      $region49: #{anyloc_forward.8} parent=47 // pred_check
        %p377 = pneg %p52
      $region50: #{anyloc_forward.8} parent=47 // pred_check_branch
        %379 = sbr.rel (%p377) target = $region52
      $region51: #{anyloc_forward.8} parent=47 // pred_region
        %s380 = sadd.s32 %s25, %s26
        %s381 = smul.u32 8, %s380
        %p382 = scmp.lt.s32.totalorder %s381, 15
        %s383 = scalar_select %p382, %s381, 15
        %s384 = smul.addr %s383, 4
        %s385 = scalar_lea.vmem %s0, %s384
        %s386 = sadd.s32 %s25, %s26
        %s387 = smul.u32 8, %s386
      $region52: #{anyloc_forward.8} parent=47 // pred_fallthru
        _
      // Predicated region
      $region53: #{anyloc_forward.8} parent=47 // pred_check
        %p388 = pneg %p78
      $region54: #{anyloc_forward.8} parent=47 // pred_check_branch
        %390 = sbr.rel (%p388) target = $region56
      $region55: #{anyloc_forward.8} parent=47 // pred_region
        %s391 = smul.u32 8, %s25
        %p392 = scmp.lt.s32.totalorder %s391, 15
        %s393 = scalar_select %p392, %s391, 15
        %s394 = smul.addr %s393, 4
        %s395 = scalar_lea.vmem %s1, %s394
        %s396 = smul.u32 8, %s25
      $region56: #{anyloc_forward.8} parent=47 // pred_fallthru
        _
      // Predicated region
      $region57: #{anyloc_forward.8} parent=47 // pred_check
        %p397 = pneg %p104
      $region58: #{anyloc_forward.8} parent=47 // pred_check_branch
        %399 = sbr.rel (%p397) target = $region60
      $region59: #{anyloc_forward.8} parent=47 // pred_region
        %s400 = smul.u32 8, %s25
        %p401 = scmp.lt.s32.totalorder %s400, 15
        %s402 = scalar_select %p401, %s400, 15
        %s403 = smul.addr %s402, 4
        %s404 = scalar_lea.vmem %s2, %s403
        %s405 = smul.u32 8, %s25
      $region60: #{anyloc_forward.8} parent=47 // pred_fallthru
        _
      // Predicated region
      $region61: #{anyloc_forward.8} parent=47 // pred_check
        %p406 = pneg %p132
      $region62: #{anyloc_forward.8} parent=47 // pred_check_branch
        %408 = sbr.rel (%p406) target = $region64
      $region63: #{anyloc_forward.8} parent=47 // pred_region
        %s409 = sadd.s32 %s25, %s26
        %s410 = smul.u32 8, %s409
        %p411 = scmp.lt.s32.totalorder %s410, 15
        %s412 = scalar_select %p411, %s410, 15
        %s413 = smul.addr %s412, 4
        %s414 = scalar_lea.vmem %s3, %s413
        %s415 = sadd.s32 %s25, %s26
        %s416 = smul.u32 8, %s415
      $region64: #{anyloc_forward.8} parent=47 // pred_fallthru
        _
    $region48: #{anyloc_forward.8} parent=5 // pred_fallthru
      _
    %p417 = scmp.le.s32.totalorder 1, %s18
    %p418 = scmp.lt.s32.totalorder %s18, 3
    %p419 = pnand %p417, %p418
    %p420 = pneg %p419
    // Predicated region
    $region65: #{anyloc_forward.8} parent=5 // pred_check
      _
    $region66: #{anyloc_forward.8} parent=5 // pred_check_branch
      %422 = sbr.rel (%p419) target = $region68
    $region67: #{anyloc_forward.8} parent=5 // pred_region
      %s423 = ssub.s32 %s18, 1
      %s424 = sadd.s32 %s27, %s28
      %s425 = smul.u32 8, %s424
      %p426 = scmp.lt.s32.totalorder %s425, 15
      %s427 = scalar_select %p426, %s425, 15
      %s428 = smul.addr %s427, 4
      %s429 = scalar_lea.vmem %s0, %s428
      %p430 = pneg %p58
      %p431 = pneg %p55
      %s432 = smul.u32 8, %s27
      %p433 = scmp.lt.s32.totalorder %s432, 15
      %s434 = scalar_select %p433, %s432, 15
      %s435 = smul.addr %s434, 4
      %s436 = scalar_lea.vmem %s1, %s435
      %p437 = pneg %p84
      %p438 = pneg %p81
      %s439 = smul.u32 8, %s27
      %p440 = scmp.lt.s32.totalorder %s439, 15
      %s441 = scalar_select %p440, %s439, 15
      %s442 = smul.addr %s441, 4
      %s443 = scalar_lea.vmem %s2, %s442
      %p444 = pneg %p110
      %p445 = pneg %p107
      %s446 = sadd.s32 %s27, %s28
      %s447 = smul.u32 8, %s446
      %p448 = scmp.lt.s32.totalorder %s447, 15
      %s449 = scalar_select %p448, %s447, 15
      %s450 = smul.addr %s449, 4
      %s451 = scalar_lea.vmem %s3, %s450
      %p452 = pneg %p138
      %p453 = pneg %p135
      %p454 = pneg %p159
      %p455 = pneg %p156
      %p456 = pneg %p180
      %p457 = pneg %p177
      %p458 = pneg %p201
      %p459 = pneg %p198
      %p460 = pneg %p222
      %p461 = pneg %p219
      %p462 = pneg %p243
      %p463 = pneg %p240
      %p464 = pneg %p264
      %p465 = pneg %p261
      %p466 = pneg %p285
      %p467 = pneg %p282
      %p468 = pneg %p306
      %p469 = pneg %p303
      %p470 = pneg %p334
      %p471 = pneg %p331
      %s472 = sadd.s32 %s27, %s28
      %s473 = smul.u32 8, %s472
      %p474 = scmp.lt.s32.totalorder %s473, 15
      %s475 = scalar_select %p474, %s473, 15
      %s476 = smul.addr %s475, 4
      %s477 = scalar_lea.vmem %s12, %s476
      %s478 = sadd.s32 %s27, %s28
      %s479 = smul.u32 8, %s478
      %p480 = scmp.lt.s32.totalorder %s479, 15
      %s481 = scalar_select %p480, %s479, 15
      %s482 = smul.addr %s481, 4
      %s483 = scalar_lea.vmem %s0, %s482
      %s484 = sadd.s32 %s27, %s28
      %s485 = smul.u32 8, %s484
      %s486 = smul.u32 8, %s27
      %p487 = scmp.lt.s32.totalorder %s486, 15
      %s488 = scalar_select %p487, %s486, 15
      %s489 = smul.addr %s488, 4
      %s490 = scalar_lea.vmem %s1, %s489
      %s491 = smul.u32 8, %s27
      %s492 = smul.u32 8, %s27
      %p493 = scmp.lt.s32.totalorder %s492, 15
      %s494 = scalar_select %p493, %s492, 15
      %s495 = smul.addr %s494, 4
      %s496 = scalar_lea.vmem %s2, %s495
      %s497 = smul.u32 8, %s27
      %s498 = sadd.s32 %s27, %s28
      %s499 = smul.u32 8, %s498
      %p500 = scmp.lt.s32.totalorder %s499, 15
      %s501 = scalar_select %p500, %s499, 15
      %s502 = smul.addr %s501, 4
      %s503 = scalar_lea.vmem %s3, %s502
      %s504 = sadd.s32 %s27, %s28
      %s505 = smul.u32 8, %s504
      %s506 = sadd.s32 %s27, %s28
      %s507 = smul.u32 8, %s506
      %p508 = scmp.lt.s32.totalorder %s507, 15
      %s509 = scalar_select %p508, %s507, 15
      %s510 = smul.addr %s509, 4
      %s511 = scalar_lea.vmem %s12, %s510
      %s512 = sadd.s32 %s27, %s28
      %s513 = smul.u32 8, %s512
      %v515 = vld [vmem:[%s503] sm:$0xf]
      %v516 = vld [vmem:[%s503 + $0x4] sm:$0xf]
      %v517 = vld [vmem:[%s503 + $0x8] sm:$0xf]
      %v518 = vld [vmem:[%s503 + $0xc] sm:$0xf]
      %v519 = vld [vmem:[%s503 + $0x10] sm:$0xf]
      %v520 = vld [vmem:[%s503 + $0x14] sm:$0xf]
      %v521 = vld [vmem:[%s503 + $0x18] sm:$0xf]
      %v522 = vld [vmem:[%s503 + $0x1c] sm:$0xf]
      %v523 = vunpack.c.l.bf16 %v515
      %v524 = vunpack.c.l.bf16 %v516
      %v525 = vunpack.c.l.bf16 %v517
      %v526 = vunpack.c.l.bf16 %v518
      %v527 = vunpack.c.l.bf16 %v519
      %v528 = vunpack.c.l.bf16 %v520
      %v529 = vunpack.c.l.bf16 %v521
      %v530 = vunpack.c.l.bf16 %v522
      %v531 = vld [vmem:[%s5] sm:$0x1]
      %v533 = vperm.slane %v531, 0
      %v535 = vadd.f32 %v523, %v533
      %v536 = vadd.f32 %v524, %v533
      %v537 = vadd.f32 %v525, %v533
      %v538 = vadd.f32 %v526, %v533
      %v539 = vadd.f32 %v527, %v533
      %v540 = vadd.f32 %v528, %v533
      %v541 = vadd.f32 %v529, %v533
      %v542 = vadd.f32 %v530, %v533
      %v543 = vld [vmem:[%s483] sm:$0xf]
      %v544 = vld [vmem:[%s483 + $0x4] sm:$0xf]
      %v545 = vld [vmem:[%s483 + $0x8] sm:$0xf]
      %v546 = vld [vmem:[%s483 + $0xc] sm:$0xf]
      %v547 = vld [vmem:[%s483 + $0x10] sm:$0xf]
      %v548 = vld [vmem:[%s483 + $0x14] sm:$0xf]
      %v549 = vld [vmem:[%s483 + $0x18] sm:$0xf]
      %v550 = vld [vmem:[%s483 + $0x1c] sm:$0xf]
      %v551 = vld [vmem:[%s490] sm:$0xf]
      %v552 = vld [vmem:[%s490 + $0x4] sm:$0xf]
      %v553 = vld [vmem:[%s490 + $0x8] sm:$0xf]
      %v554 = vld [vmem:[%s490 + $0xc] sm:$0xf]
      %v555 = vld [vmem:[%s490 + $0x10] sm:$0xf]
      %v556 = vld [vmem:[%s490 + $0x14] sm:$0xf]
      %v557 = vld [vmem:[%s490 + $0x18] sm:$0xf]
      %v558 = vld [vmem:[%s490 + $0x1c] sm:$0xf]
      %v559 = vld [vmem:[%s496] sm:$0xf]
      %v560 = vld [vmem:[%s496 + $0x4] sm:$0xf]
      %v561 = vld [vmem:[%s496 + $0x8] sm:$0xf]
      %v562 = vld [vmem:[%s496 + $0xc] sm:$0xf]
      %v563 = vld [vmem:[%s496 + $0x10] sm:$0xf]
      %v564 = vld [vmem:[%s496 + $0x14] sm:$0xf]
      %v565 = vld [vmem:[%s496 + $0x18] sm:$0xf]
      %v566 = vld [vmem:[%s496 + $0x1c] sm:$0xf]
      %v575 = vunpack.c.l.b16 %v543
      %v576 = vunpack.c.l.b16 %v544
      %v577 = vunpack.c.l.b16 %v545
      %v578 = vunpack.c.l.b16 %v546
      %v579 = vunpack.c.l.b16 %v547
      %v580 = vunpack.c.l.b16 %v548
      %v581 = vunpack.c.l.b16 %v549
      %v582 = vunpack.c.l.b16 %v550
      %v583 = vpack.c.b16 %v576, %v575
      %v584 = vpack.c.b16 %v578, %v577
      %v585 = vpack.c.b16 %v580, %v579
      %v586 = vpack.c.b16 %v582, %v581
      %v595 = vunpack.c.l.b16 %v551
      %v596 = vunpack.c.l.b16 %v552
      %v597 = vunpack.c.l.b16 %v553
      %v598 = vunpack.c.l.b16 %v554
      %v599 = vunpack.c.l.b16 %v555
      %v600 = vunpack.c.l.b16 %v556
      %v601 = vunpack.c.l.b16 %v557
      %v602 = vunpack.c.l.b16 %v558
      %v603 = vpack.c.b16 %v596, %v595
      %v604 = vpack.c.b16 %v598, %v597
      %v605 = vpack.c.b16 %v600, %v599
      %v606 = vpack.c.b16 %v602, %v601
      %vm607 = vcmask 523264
      %v609 = vsel %vm607, %v583, 0
      %v612 = vsel %vm607, %v584, 0
      %v615 = vsel %vm607, %v585, 0
      %v618 = vsel %vm607, %v586, 0
      %v621 = vsel %vm607, %v603, 0
      %v624 = vsel %vm607, %v604, 0
      %v627 = vsel %vm607, %v605, 0
      %v630 = vsel %vm607, %v606, 0
      %632 = vmatpush.bf16.xpose.msra.mxu0 0
      %633 = vmatpush.bf16.xpose.msra.mxu0 0
      %634 = vmatpush.bf16.xpose.msra.mxu0 0
      %635 = vmatpush.bf16.xpose.msra.mxu0 0
      %636 = vmatpush.bf16.xpose.msra.mxu0 %v630
      %637 = vmatpush.bf16.xpose.msra.mxu0 %v627
      %638 = vmatpush.bf16.xpose.msra.mxu0 %v624
      %639 = vmatpush.bf16.xpose.msra.mxu0 %v621
      %640 = vmatmul.bf16.gmra.mxu0 %v609
      %v641 = vpop.f32.mrf.mxu0
      %v642 = vadd.f32 0.0, %v641
      %v643 = vpop.f32.mrf.mxu0
      %v644 = vadd.f32 0.0, %v643
      %645 = vmatmul.bf16.gmra.mxu0 %v612
      %v646 = vpop.f32.mrf.mxu0
      %v647 = vadd.f32 0.0, %v646
      %v648 = vpop.f32.mrf.mxu0
      %v649 = vadd.f32 0.0, %v648
      %650 = vmatmul.bf16.gmra.mxu0 %v615
      %v651 = vpop.f32.mrf.mxu0
      %v652 = vadd.f32 0.0, %v651
      %v653 = vpop.f32.mrf.mxu0
      %v654 = vadd.f32 0.0, %v653
      %655 = vmatmul.bf16.gmra.mxu0 %v618
      %v656 = vpop.f32.mrf.mxu0
      %v657 = vadd.f32 0.0, %v656
      %v658 = vpop.f32.mrf.mxu0
      %v659 = vadd.f32 0.0, %v658
      %660 = vdwg.mxu0
      %v661 = vsel %vm607, %v642, -inf
      %662 = vmax.xlane.f32.xlu0 %v661
      %v663 = vpop.xlane.xlu0 %662
      %v664 = vsel %vm607, %v644, -inf
      %665 = vmax.xlane.f32.xlu0 %v664
      %v666 = vpop.xlane.xlu0 %665
      %v667 = vsel %vm607, %v647, -inf
      %668 = vmax.xlane.f32.xlu0 %v667
      %v669 = vpop.xlane.xlu0 %668
      %v670 = vsel %vm607, %v649, -inf
      %671 = vmax.xlane.f32.xlu0 %v670
      %v672 = vpop.xlane.xlu0 %671
      %v673 = vsel %vm607, %v652, -inf
      %674 = vmax.xlane.f32.xlu0 %v673
      %v675 = vpop.xlane.xlu0 %674
      %v676 = vsel %vm607, %v654, -inf
      %677 = vmax.xlane.f32.xlu0 %v676
      %v678 = vpop.xlane.xlu0 %677
      %v679 = vsel %vm607, %v657, -inf
      %680 = vmax.xlane.f32.xlu0 %v679
      %v681 = vpop.xlane.xlu0 %680
      %v682 = vsel %vm607, %v659, -inf
      %683 = vmax.xlane.f32.xlu0 %v682
      %v684 = vpop.xlane.xlu0 %683
      %v685 = vsub.f32 %v642, %v663
      %v686 = vsub.f32 %v644, %v666
      %v687 = vsub.f32 %v647, %v669
      %v688 = vsub.f32 %v649, %v672
      %v689 = vsub.f32 %v652, %v675
      %v690 = vsub.f32 %v654, %v678
      %v691 = vsub.f32 %v657, %v681
      %v692 = vsub.f32 %v659, %v684
      %v693 = vmul.f32 %v685, 1.442695
      %v694 = vpow.pop %v693
      %v695 = vmul.f32 %v686, 1.442695
      %v696 = vpow.pop %v695
      %v697 = vmul.f32 %v687, 1.442695
      %v698 = vpow.pop %v697
      %v699 = vmul.f32 %v688, 1.442695
      %v700 = vpow.pop %v699
      %v701 = vmul.f32 %v689, 1.442695
      %v702 = vpow.pop %v701
      %v703 = vmul.f32 %v690, 1.442695
      %v704 = vpow.pop %v703
      %v705 = vmul.f32 %v691, 1.442695
      %v706 = vpow.pop %v705
      %v707 = vmul.f32 %v692, 1.442695
      %v708 = vpow.pop %v707
      %v709 = vsel %vm607, %v694, 0.0
      %710 = vadd.xlane.f32.xlu0 %v709
      %v711 = vpop.xlane.xlu0 %710
      %v712 = vsel %vm607, %v696, 0.0
      %713 = vadd.xlane.f32.xlu0 %v712
      %v714 = vpop.xlane.xlu0 %713
      %v715 = vsel %vm607, %v698, 0.0
      %716 = vadd.xlane.f32.xlu0 %v715
      %v717 = vpop.xlane.xlu0 %716
      %v718 = vsel %vm607, %v700, 0.0
      %719 = vadd.xlane.f32.xlu0 %v718
      %v720 = vpop.xlane.xlu0 %719
      %v721 = vsel %vm607, %v702, 0.0
      %722 = vadd.xlane.f32.xlu0 %v721
      %v723 = vpop.xlane.xlu0 %722
      %v724 = vsel %vm607, %v704, 0.0
      %725 = vadd.xlane.f32.xlu0 %v724
      %v726 = vpop.xlane.xlu0 %725
      %v727 = vsel %vm607, %v706, 0.0
      %728 = vadd.xlane.f32.xlu0 %v727
      %v729 = vpop.xlane.xlu0 %728
      %v730 = vsel %vm607, %v708, 0.0
      %731 = vadd.xlane.f32.xlu0 %v730
      %v732 = vpop.xlane.xlu0 %731
      %v733 = vpack.c.bf16 %v696, %v694
      %v734 = vpack.c.bf16 %v700, %v698
      %v735 = vpack.c.bf16 %v704, %v702
      %v736 = vpack.c.bf16 %v708, %v706
      %v745 = vunpack.c.l.b16 %v559
      %v746 = vunpack.c.l.b16 %v560
      %v747 = vunpack.c.l.b16 %v561
      %v748 = vunpack.c.l.b16 %v562
      %v749 = vunpack.c.l.b16 %v563
      %v750 = vunpack.c.l.b16 %v564
      %v751 = vunpack.c.l.b16 %v565
      %v752 = vunpack.c.l.b16 %v566
      %v753 = vpack.c.b16 %v746, %v745
      %v754 = vpack.c.b16 %v748, %v747
      %v755 = vpack.c.b16 %v750, %v749
      %v756 = vpack.c.b16 %v752, %v751
      %v762 = vsel %vm607, %v733, 0
      %v765 = vsel %vm607, %v734, 0
      %v768 = vsel %vm607, %v735, 0
      %v771 = vsel %vm607, %v736, 0
      %773 = vmatpush.bf16.msra.mxu0 0
      %774 = vmatpush.bf16.msra.mxu0 0
      %775 = vmatpush.bf16.msra.mxu0 0
      %776 = vmatpush.bf16.msra.mxu0 0
      %777 = vmatpush.bf16.msra.mxu0 %v756
      %778 = vmatpush.bf16.msra.mxu0 %v755
      %779 = vmatpush.bf16.msra.mxu0 %v754
      %780 = vmatpush.bf16.msra.mxu0 %v753
      %781 = vmatmul.bf16.gmra.mxu0 %v762
      %v782 = vpop.f32.mrf.mxu0
      %v783 = vadd.f32 0.0, %v782
      %v784 = vpop.f32.mrf.mxu0
      %v785 = vadd.f32 0.0, %v784
      %786 = vmatmul.bf16.gmra.mxu0 %v765
      %v787 = vpop.f32.mrf.mxu0
      %v788 = vadd.f32 0.0, %v787
      %v789 = vpop.f32.mrf.mxu0
      %v790 = vadd.f32 0.0, %v789
      %791 = vmatmul.bf16.gmra.mxu0 %v768
      %v792 = vpop.f32.mrf.mxu0
      %v793 = vadd.f32 0.0, %v792
      %v794 = vpop.f32.mrf.mxu0
      %v795 = vadd.f32 0.0, %v794
      %796 = vmatmul.bf16.gmra.mxu0 %v771
      %v797 = vpop.f32.mrf.mxu0
      %v798 = vadd.f32 0.0, %v797
      %v799 = vpop.f32.mrf.mxu0
      %v800 = vadd.f32 0.0, %v799
      %801 = vdwg.mxu0
      %v802 = vrcp.pop %v711
      %v803 = vrcp.pop %v714
      %v804 = vrcp.pop %v717
      %v805 = vrcp.pop %v720
      %v806 = vrcp.pop %v723
      %v807 = vrcp.pop %v726
      %v808 = vrcp.pop %v729
      %v809 = vrcp.pop %v732
      %v810 = vmul.f32 %v783, %v802
      %v811 = vmul.f32 %v785, %v803
      %v812 = vmul.f32 %v788, %v804
      %v813 = vmul.f32 %v790, %v805
      %v814 = vmul.f32 %v793, %v806
      %v815 = vmul.f32 %v795, %v807
      %v816 = vmul.f32 %v798, %v808
      %v817 = vmul.f32 %v800, %v809
      %v818 = vpack.c.bf16 %v811, %v810
      %v819 = vpack.c.bf16 %v813, %v812
      %v820 = vpack.c.bf16 %v815, %v814
      %v821 = vpack.c.bf16 %v817, %v816
      %v822 = vld [vmem:[%s4] sm:$0xf]
      %v823 = vld [vmem:[%s4 + $0x4] sm:$0xf]
      %v824 = vld [vmem:[%s4 + $0x8] sm:$0xf]
      %v825 = vld [vmem:[%s4 + $0xc] sm:$0xf]
      %v826 = vld [vmem:[%s4 + $0x10] sm:$0xf]
      %v827 = vld [vmem:[%s4 + $0x14] sm:$0xf]
      %v828 = vld [vmem:[%s4 + $0x18] sm:$0xf]
      %v829 = vld [vmem:[%s4 + $0x1c] sm:$0xf]
      %v838 = vunpack.c.l.b16 %v822
      %v839 = vunpack.c.l.b16 %v823
      %v840 = vunpack.c.l.b16 %v824
      %v841 = vunpack.c.l.b16 %v825
      %v842 = vunpack.c.l.b16 %v826
      %v843 = vunpack.c.l.b16 %v827
      %v844 = vunpack.c.l.b16 %v828
      %v845 = vunpack.c.l.b16 %v829
      %v846 = vpack.c.b16 %v839, %v838
      %v847 = vpack.c.b16 %v841, %v840
      %v848 = vpack.c.b16 %v843, %v842
      %v849 = vpack.c.b16 %v845, %v844
      %v855 = vsel %vm607, %v818, 0
      %v858 = vsel %vm607, %v819, 0
      %v861 = vsel %vm607, %v820, 0
      %v864 = vsel %vm607, %v821, 0
      %866 = vmatpush.bf16.msra.mxu0 0
      %867 = vmatpush.bf16.msra.mxu0 0
      %868 = vmatpush.bf16.msra.mxu0 0
      %869 = vmatpush.bf16.msra.mxu0 0
      %870 = vmatpush.bf16.msra.mxu0 %v849
      %871 = vmatpush.bf16.msra.mxu0 %v848
      %872 = vmatpush.bf16.msra.mxu0 %v847
      %873 = vmatpush.bf16.msra.mxu0 %v846
      %874 = vmatmul.bf16.gmra.mxu0 %v855
      %v875 = vpop.f32.mrf.mxu0
      %v876 = vadd.f32 0.0, %v875
      %v877 = vpop.f32.mrf.mxu0
      %v878 = vadd.f32 0.0, %v877
      %879 = vmatmul.bf16.gmra.mxu0 %v858
      %v880 = vpop.f32.mrf.mxu0
      %v881 = vadd.f32 0.0, %v880
      %v882 = vpop.f32.mrf.mxu0
      %v883 = vadd.f32 0.0, %v882
      %884 = vmatmul.bf16.gmra.mxu0 %v861
      %v885 = vpop.f32.mrf.mxu0
      %v886 = vadd.f32 0.0, %v885
      %v887 = vpop.f32.mrf.mxu0
      %v888 = vadd.f32 0.0, %v887
      %889 = vmatmul.bf16.gmra.mxu0 %v864
      %v890 = vpop.f32.mrf.mxu0
      %v891 = vadd.f32 0.0, %v890
      %v892 = vpop.f32.mrf.mxu0
      %v893 = vadd.f32 0.0, %v892
      %894 = vdwg.mxu0
      %v895 = vadd.f32 %v535, %v876
      %v896 = vadd.f32 %v536, %v878
      %v897 = vadd.f32 %v537, %v881
      %v898 = vadd.f32 %v538, %v883
      %v899 = vadd.f32 %v539, %v886
      %v900 = vadd.f32 %v540, %v888
      %v901 = vadd.f32 %v541, %v891
      %v902 = vadd.f32 %v542, %v893
      %903 = vrot.lane.b32.xlu0 %v583, 64
      %v904 = vpop.permute.xlu0 %903
      %905 = vrot.lane.b32.xlu0 %v584, 64
      %v906 = vpop.permute.xlu0 %905
      %907 = vrot.lane.b32.xlu0 %v585, 64
      %v908 = vpop.permute.xlu0 %907
      %909 = vrot.lane.b32.xlu0 %v586, 64
      %v910 = vpop.permute.xlu0 %909
      %911 = vrot.lane.b32.xlu0 %v603, 64
      %v912 = vpop.permute.xlu0 %911
      %913 = vrot.lane.b32.xlu0 %v604, 64
      %v914 = vpop.permute.xlu0 %913
      %915 = vrot.lane.b32.xlu0 %v605, 64
      %v916 = vpop.permute.xlu0 %915
      %917 = vrot.lane.b32.xlu0 %v606, 64
      %v918 = vpop.permute.xlu0 %917
      %v920 = vsel %vm607, %v904, 0
      %v923 = vsel %vm607, %v906, 0
      %v926 = vsel %vm607, %v908, 0
      %v929 = vsel %vm607, %v910, 0
      %v932 = vsel %vm607, %v912, 0
      %v935 = vsel %vm607, %v914, 0
      %v938 = vsel %vm607, %v916, 0
      %v941 = vsel %vm607, %v918, 0
      %943 = vmatpush.bf16.xpose.msra.mxu0 0
      %944 = vmatpush.bf16.xpose.msra.mxu0 0
      %945 = vmatpush.bf16.xpose.msra.mxu0 0
      %946 = vmatpush.bf16.xpose.msra.mxu0 0
      %947 = vmatpush.bf16.xpose.msra.mxu0 %v941
      %948 = vmatpush.bf16.xpose.msra.mxu0 %v938
      %949 = vmatpush.bf16.xpose.msra.mxu0 %v935
      %950 = vmatpush.bf16.xpose.msra.mxu0 %v932
      %951 = vmatmul.bf16.gmra.mxu0 %v920
      %v952 = vpop.f32.mrf.mxu0
      %v953 = vadd.f32 0.0, %v952
      %v954 = vpop.f32.mrf.mxu0
      %v955 = vadd.f32 0.0, %v954
      %956 = vmatmul.bf16.gmra.mxu0 %v923
      %v957 = vpop.f32.mrf.mxu0
      %v958 = vadd.f32 0.0, %v957
      %v959 = vpop.f32.mrf.mxu0
      %v960 = vadd.f32 0.0, %v959
      %961 = vmatmul.bf16.gmra.mxu0 %v926
      %v962 = vpop.f32.mrf.mxu0
      %v963 = vadd.f32 0.0, %v962
      %v964 = vpop.f32.mrf.mxu0
      %v965 = vadd.f32 0.0, %v964
      %966 = vmatmul.bf16.gmra.mxu0 %v929
      %v967 = vpop.f32.mrf.mxu0
      %v968 = vadd.f32 0.0, %v967
      %v969 = vpop.f32.mrf.mxu0
      %v970 = vadd.f32 0.0, %v969
      %971 = vdwg.mxu0
      %v972 = vsel %vm607, %v953, -inf
      %973 = vmax.xlane.f32.xlu0 %v972
      %v974 = vpop.xlane.xlu0 %973
      %v975 = vsel %vm607, %v955, -inf
      %976 = vmax.xlane.f32.xlu0 %v975
      %v977 = vpop.xlane.xlu0 %976
      %v978 = vsel %vm607, %v958, -inf
      %979 = vmax.xlane.f32.xlu0 %v978
      %v980 = vpop.xlane.xlu0 %979
      %v981 = vsel %vm607, %v960, -inf
      %982 = vmax.xlane.f32.xlu0 %v981
      %v983 = vpop.xlane.xlu0 %982
      %v984 = vsel %vm607, %v963, -inf
      %985 = vmax.xlane.f32.xlu0 %v984
      %v986 = vpop.xlane.xlu0 %985
      %v987 = vsel %vm607, %v965, -inf
      %988 = vmax.xlane.f32.xlu0 %v987
      %v989 = vpop.xlane.xlu0 %988
      %v990 = vsel %vm607, %v968, -inf
      %991 = vmax.xlane.f32.xlu0 %v990
      %v992 = vpop.xlane.xlu0 %991
      %v993 = vsel %vm607, %v970, -inf
      %994 = vmax.xlane.f32.xlu0 %v993
      %v995 = vpop.xlane.xlu0 %994
      %v996 = vsub.f32 %v953, %v974
      %v997 = vsub.f32 %v955, %v977
      %v998 = vsub.f32 %v958, %v980
      %v999 = vsub.f32 %v960, %v983
      %v1000 = vsub.f32 %v963, %v986
      %v1001 = vsub.f32 %v965, %v989
      %v1002 = vsub.f32 %v968, %v992
      %v1003 = vsub.f32 %v970, %v995
      %v1004 = vmul.f32 %v996, 1.442695
      %v1005 = vpow.pop %v1004
      %v1006 = vmul.f32 %v997, 1.442695
      %v1007 = vpow.pop %v1006
      %v1008 = vmul.f32 %v998, 1.442695
      %v1009 = vpow.pop %v1008
      %v1010 = vmul.f32 %v999, 1.442695
      %v1011 = vpow.pop %v1010
      %v1012 = vmul.f32 %v1000, 1.442695
      %v1013 = vpow.pop %v1012
      %v1014 = vmul.f32 %v1001, 1.442695
      %v1015 = vpow.pop %v1014
      %v1016 = vmul.f32 %v1002, 1.442695
      %v1017 = vpow.pop %v1016
      %v1018 = vmul.f32 %v1003, 1.442695
      %v1019 = vpow.pop %v1018
      %v1020 = vsel %vm607, %v1005, 0.0
      %1021 = vadd.xlane.f32.xlu0 %v1020
      %v1022 = vpop.xlane.xlu0 %1021
      %v1023 = vsel %vm607, %v1007, 0.0
      %1024 = vadd.xlane.f32.xlu0 %v1023
      %v1025 = vpop.xlane.xlu0 %1024
      %v1026 = vsel %vm607, %v1009, 0.0
      %1027 = vadd.xlane.f32.xlu0 %v1026
      %v1028 = vpop.xlane.xlu0 %1027
      %v1029 = vsel %vm607, %v1011, 0.0
      %1030 = vadd.xlane.f32.xlu0 %v1029
      %v1031 = vpop.xlane.xlu0 %1030
      %v1032 = vsel %vm607, %v1013, 0.0
      %1033 = vadd.xlane.f32.xlu0 %v1032
      %v1034 = vpop.xlane.xlu0 %1033
      %v1035 = vsel %vm607, %v1015, 0.0
      %1036 = vadd.xlane.f32.xlu0 %v1035
      %v1037 = vpop.xlane.xlu0 %1036
      %v1038 = vsel %vm607, %v1017, 0.0
      %1039 = vadd.xlane.f32.xlu0 %v1038
      %v1040 = vpop.xlane.xlu0 %1039
      %v1041 = vsel %vm607, %v1019, 0.0
      %1042 = vadd.xlane.f32.xlu0 %v1041
      %v1043 = vpop.xlane.xlu0 %1042
      %v1044 = vpack.c.bf16 %v1007, %v1005
      %v1045 = vpack.c.bf16 %v1011, %v1009
      %v1046 = vpack.c.bf16 %v1015, %v1013
      %v1047 = vpack.c.bf16 %v1019, %v1017
      %1048 = vrot.lane.b32.xlu0 %v753, 64
      %v1049 = vpop.permute.xlu0 %1048
      %1050 = vrot.lane.b32.xlu0 %v754, 64
      %v1051 = vpop.permute.xlu0 %1050
      %1052 = vrot.lane.b32.xlu0 %v755, 64
      %v1053 = vpop.permute.xlu0 %1052
      %1054 = vrot.lane.b32.xlu0 %v756, 64
      %v1055 = vpop.permute.xlu0 %1054
      %v1061 = vsel %vm607, %v1044, 0
      %v1064 = vsel %vm607, %v1045, 0
      %v1067 = vsel %vm607, %v1046, 0
      %v1070 = vsel %vm607, %v1047, 0
      %1072 = vmatpush.bf16.msra.mxu0 0
      %1073 = vmatpush.bf16.msra.mxu0 0
      %1074 = vmatpush.bf16.msra.mxu0 0
      %1075 = vmatpush.bf16.msra.mxu0 0
      %1076 = vmatpush.bf16.msra.mxu0 %v1055
      %1077 = vmatpush.bf16.msra.mxu0 %v1053
      %1078 = vmatpush.bf16.msra.mxu0 %v1051
      %1079 = vmatpush.bf16.msra.mxu0 %v1049
      %1080 = vmatmul.bf16.gmra.mxu0 %v1061
      %v1081 = vpop.f32.mrf.mxu0
      %v1082 = vadd.f32 0.0, %v1081
      %v1083 = vpop.f32.mrf.mxu0
      %v1084 = vadd.f32 0.0, %v1083
      %1085 = vmatmul.bf16.gmra.mxu0 %v1064
      %v1086 = vpop.f32.mrf.mxu0
      %v1087 = vadd.f32 0.0, %v1086
      %v1088 = vpop.f32.mrf.mxu0
      %v1089 = vadd.f32 0.0, %v1088
      %1090 = vmatmul.bf16.gmra.mxu0 %v1067
      %v1091 = vpop.f32.mrf.mxu0
      %v1092 = vadd.f32 0.0, %v1091
      %v1093 = vpop.f32.mrf.mxu0
      %v1094 = vadd.f32 0.0, %v1093
      %1095 = vmatmul.bf16.gmra.mxu0 %v1070
      %v1096 = vpop.f32.mrf.mxu0
      %v1097 = vadd.f32 0.0, %v1096
      %v1098 = vpop.f32.mrf.mxu0
      %v1099 = vadd.f32 0.0, %v1098
      %1100 = vdwg.mxu0
      %v1101 = vrcp.pop %v1022
      %v1102 = vrcp.pop %v1025
      %v1103 = vrcp.pop %v1028
      %v1104 = vrcp.pop %v1031
      %v1105 = vrcp.pop %v1034
      %v1106 = vrcp.pop %v1037
      %v1107 = vrcp.pop %v1040
      %v1108 = vrcp.pop %v1043
      %v1109 = vmul.f32 %v1082, %v1101
      %v1110 = vmul.f32 %v1084, %v1102
      %v1111 = vmul.f32 %v1087, %v1103
      %v1112 = vmul.f32 %v1089, %v1104
      %v1113 = vmul.f32 %v1092, %v1105
      %v1114 = vmul.f32 %v1094, %v1106
      %v1115 = vmul.f32 %v1097, %v1107
      %v1116 = vmul.f32 %v1099, %v1108
      %v1117 = vpack.c.bf16 %v1110, %v1109
      %v1118 = vpack.c.bf16 %v1112, %v1111
      %v1119 = vpack.c.bf16 %v1114, %v1113
      %v1120 = vpack.c.bf16 %v1116, %v1115
      %v1121 = vld [vmem:[%s4 + $0x20] sm:$0xf]
      %v1122 = vld [vmem:[%s4 + $0x24] sm:$0xf]
      %v1123 = vld [vmem:[%s4 + $0x28] sm:$0xf]
      %v1124 = vld [vmem:[%s4 + $0x2c] sm:$0xf]
      %v1125 = vld [vmem:[%s4 + $0x30] sm:$0xf]
      %v1126 = vld [vmem:[%s4 + $0x34] sm:$0xf]
      %v1127 = vld [vmem:[%s4 + $0x38] sm:$0xf]
      %v1128 = vld [vmem:[%s4 + $0x3c] sm:$0xf]
      %v1137 = vunpack.c.l.b16 %v1121
      %v1138 = vunpack.c.l.b16 %v1122
      %v1139 = vunpack.c.l.b16 %v1123
      %v1140 = vunpack.c.l.b16 %v1124
      %v1141 = vunpack.c.l.b16 %v1125
      %v1142 = vunpack.c.l.b16 %v1126
      %v1143 = vunpack.c.l.b16 %v1127
      %v1144 = vunpack.c.l.b16 %v1128
      %v1145 = vpack.c.b16 %v1138, %v1137
      %v1146 = vpack.c.b16 %v1140, %v1139
      %v1147 = vpack.c.b16 %v1142, %v1141
      %v1148 = vpack.c.b16 %v1144, %v1143
      %v1154 = vsel %vm607, %v1117, 0
      %v1157 = vsel %vm607, %v1118, 0
      %v1160 = vsel %vm607, %v1119, 0
      %v1163 = vsel %vm607, %v1120, 0
      %1165 = vmatpush.bf16.msra.mxu0 0
      %1166 = vmatpush.bf16.msra.mxu0 0
      %1167 = vmatpush.bf16.msra.mxu0 0
      %1168 = vmatpush.bf16.msra.mxu0 0
      %1169 = vmatpush.bf16.msra.mxu0 %v1148
      %1170 = vmatpush.bf16.msra.mxu0 %v1147
      %1171 = vmatpush.bf16.msra.mxu0 %v1146
      %1172 = vmatpush.bf16.msra.mxu0 %v1145
      %1173 = vmatmul.bf16.gmra.mxu0 %v1154
      %v1174 = vpop.f32.mrf.mxu0
      %v1175 = vadd.f32 0.0, %v1174
      %v1176 = vpop.f32.mrf.mxu0
      %v1177 = vadd.f32 0.0, %v1176
      %1178 = vmatmul.bf16.gmra.mxu0 %v1157
      %v1179 = vpop.f32.mrf.mxu0
      %v1180 = vadd.f32 0.0, %v1179
      %v1181 = vpop.f32.mrf.mxu0
      %v1182 = vadd.f32 0.0, %v1181
      %1183 = vmatmul.bf16.gmra.mxu0 %v1160
      %v1184 = vpop.f32.mrf.mxu0
      %v1185 = vadd.f32 0.0, %v1184
      %v1186 = vpop.f32.mrf.mxu0
      %v1187 = vadd.f32 0.0, %v1186
      %1188 = vmatmul.bf16.gmra.mxu0 %v1163
      %v1189 = vpop.f32.mrf.mxu0
      %v1190 = vadd.f32 0.0, %v1189
      %v1191 = vpop.f32.mrf.mxu0
      %v1192 = vadd.f32 0.0, %v1191
      %1193 = vdwg.mxu0
      %v1194 = vadd.f32 %v895, %v1175
      %v1195 = vadd.f32 %v896, %v1177
      %v1196 = vadd.f32 %v897, %v1180
      %v1197 = vadd.f32 %v898, %v1182
      %v1198 = vadd.f32 %v899, %v1185
      %v1199 = vadd.f32 %v900, %v1187
      %v1200 = vadd.f32 %v901, %v1190
      %v1201 = vadd.f32 %v902, %v1192
      %1202 = vadd.xlane.f32.xlu0 %v1194
      %v1203 = vpop.xlane.xlu0 %1202
      %1204 = vadd.xlane.f32.xlu0 %v1195
      %v1205 = vpop.xlane.xlu0 %1204
      %1206 = vadd.xlane.f32.xlu0 %v1196
      %v1207 = vpop.xlane.xlu0 %1206
      %1208 = vadd.xlane.f32.xlu0 %v1197
      %v1209 = vpop.xlane.xlu0 %1208
      %1210 = vadd.xlane.f32.xlu0 %v1198
      %v1211 = vpop.xlane.xlu0 %1210
      %1212 = vadd.xlane.f32.xlu0 %v1199
      %v1213 = vpop.xlane.xlu0 %1212
      %1214 = vadd.xlane.f32.xlu0 %v1200
      %v1215 = vpop.xlane.xlu0 %1214
      %1216 = vadd.xlane.f32.xlu0 %v1201
      %v1217 = vpop.xlane.xlu0 %1216
      %v1218 = vrcp.pop 128.0
      %v1219 = vmul.f32 128.0, %v1218
      %v1220 = vsub.f32 1.0, %v1219
      %v1221 = vmul.f32 %v1218, %v1220
      %v1222 = vadd.f32 %v1218, %v1221
      %vm1223 = vweird.f32 %v1218
      %v1224 = vsel %vm1223, %v1218, %v1222
      %v1225 = vmul.f32 %v1203, %v1224
      %v1226 = vmul.f32 %v1205, %v1224
      %v1227 = vmul.f32 %v1207, %v1224
      %v1228 = vmul.f32 %v1209, %v1224
      %v1229 = vmul.f32 %v1211, %v1224
      %v1230 = vmul.f32 %v1213, %v1224
      %v1231 = vmul.f32 %v1215, %v1224
      %v1232 = vmul.f32 %v1217, %v1224
      %v1233 = vsub.f32 %v1194, %v1225
      %v1234 = vsub.f32 %v1195, %v1226
      %v1235 = vsub.f32 %v1196, %v1227
      %v1236 = vsub.f32 %v1197, %v1228
      %v1237 = vsub.f32 %v1198, %v1229
      %v1238 = vsub.f32 %v1199, %v1230
      %v1239 = vsub.f32 %v1200, %v1231
      %v1240 = vsub.f32 %v1201, %v1232
      %v1241 = vmul.f32 %v1233, %v1233
      %v1242 = vmul.f32 %v1234, %v1234
      %v1243 = vmul.f32 %v1235, %v1235
      %v1244 = vmul.f32 %v1236, %v1236
      %v1245 = vmul.f32 %v1237, %v1237
      %v1246 = vmul.f32 %v1238, %v1238
      %v1247 = vmul.f32 %v1239, %v1239
      %v1248 = vmul.f32 %v1240, %v1240
      %1249 = vadd.xlane.f32.xlu0 %v1241
      %v1250 = vpop.xlane.xlu0 %1249
      %1251 = vadd.xlane.f32.xlu0 %v1242
      %v1252 = vpop.xlane.xlu0 %1251
      %1253 = vadd.xlane.f32.xlu0 %v1243
      %v1254 = vpop.xlane.xlu0 %1253
      %1255 = vadd.xlane.f32.xlu0 %v1244
      %v1256 = vpop.xlane.xlu0 %1255
      %1257 = vadd.xlane.f32.xlu0 %v1245
      %v1258 = vpop.xlane.xlu0 %1257
      %1259 = vadd.xlane.f32.xlu0 %v1246
      %v1260 = vpop.xlane.xlu0 %1259
      %1261 = vadd.xlane.f32.xlu0 %v1247
      %v1262 = vpop.xlane.xlu0 %1261
      %1263 = vadd.xlane.f32.xlu0 %v1248
      %v1264 = vpop.xlane.xlu0 %1263
      %v1265 = vmul.f32 %v1250, %v1224
      %v1266 = vmul.f32 %v1252, %v1224
      %v1267 = vmul.f32 %v1254, %v1224
      %v1268 = vmul.f32 %v1256, %v1224
      %v1269 = vmul.f32 %v1258, %v1224
      %v1270 = vmul.f32 %v1260, %v1224
      %v1271 = vmul.f32 %v1262, %v1224
      %v1272 = vmul.f32 %v1264, %v1224
      %v1273 = vadd.f32 %v1265, 1e-06
      %v1274 = vadd.f32 %v1266, 1e-06
      %v1275 = vadd.f32 %v1267, 1e-06
      %v1276 = vadd.f32 %v1268, 1e-06
      %v1277 = vadd.f32 %v1269, 1e-06
      %v1278 = vadd.f32 %v1270, 1e-06
      %v1279 = vadd.f32 %v1271, 1e-06
      %v1280 = vadd.f32 %v1272, 1e-06
      %v1281 = vrsqrt.pop %v1273
      %v1282 = vmul.f32 %v1281, %v1273
      %v1283 = vmul.f32 %v1282, %v1281
      %v1284 = vmul.f32 0.5, %v1283
      %v1285 = vsub.f32 1.5, %v1284
      %v1286 = vmul.f32 %v1281, %v1285
      %vm1287 = vweird.f32 %v1273
      %vm1288 = vweird.f32 %v1281
      %vm1289 = vmor %vm1287, %vm1288
      %v1290 = vsel %vm1289, %v1281, %v1286
      %v1291 = vrsqrt.pop %v1274
      %v1292 = vmul.f32 %v1291, %v1274
      %v1293 = vmul.f32 %v1292, %v1291
      %v1294 = vmul.f32 0.5, %v1293
      %v1295 = vsub.f32 1.5, %v1294
      %v1296 = vmul.f32 %v1291, %v1295
      %vm1297 = vweird.f32 %v1274
      %vm1298 = vweird.f32 %v1291
      %vm1299 = vmor %vm1297, %vm1298
      %v1300 = vsel %vm1299, %v1291, %v1296
      %v1301 = vrsqrt.pop %v1275
      %v1302 = vmul.f32 %v1301, %v1275
      %v1303 = vmul.f32 %v1302, %v1301
      %v1304 = vmul.f32 0.5, %v1303
      %v1305 = vsub.f32 1.5, %v1304
      %v1306 = vmul.f32 %v1301, %v1305
      %vm1307 = vweird.f32 %v1275
      %vm1308 = vweird.f32 %v1301
      %vm1309 = vmor %vm1307, %vm1308
      %v1310 = vsel %vm1309, %v1301, %v1306
      %v1311 = vrsqrt.pop %v1276
      %v1312 = vmul.f32 %v1311, %v1276
      %v1313 = vmul.f32 %v1312, %v1311
      %v1314 = vmul.f32 0.5, %v1313
      %v1315 = vsub.f32 1.5, %v1314
      %v1316 = vmul.f32 %v1311, %v1315
      %vm1317 = vweird.f32 %v1276
      %vm1318 = vweird.f32 %v1311
      %vm1319 = vmor %vm1317, %vm1318
      %v1320 = vsel %vm1319, %v1311, %v1316
      %v1321 = vrsqrt.pop %v1277
      %v1322 = vmul.f32 %v1321, %v1277
      %v1323 = vmul.f32 %v1322, %v1321
      %v1324 = vmul.f32 0.5, %v1323
      %v1325 = vsub.f32 1.5, %v1324
      %v1326 = vmul.f32 %v1321, %v1325
      %vm1327 = vweird.f32 %v1277
      %vm1328 = vweird.f32 %v1321
      %vm1329 = vmor %vm1327, %vm1328
      %v1330 = vsel %vm1329, %v1321, %v1326
      %v1331 = vrsqrt.pop %v1278
      %v1332 = vmul.f32 %v1331, %v1278
      %v1333 = vmul.f32 %v1332, %v1331
      %v1334 = vmul.f32 0.5, %v1333
      %v1335 = vsub.f32 1.5, %v1334
      %v1336 = vmul.f32 %v1331, %v1335
      %vm1337 = vweird.f32 %v1278
      %vm1338 = vweird.f32 %v1331
      %vm1339 = vmor %vm1337, %vm1338
      %v1340 = vsel %vm1339, %v1331, %v1336
      %v1341 = vrsqrt.pop %v1279
      %v1342 = vmul.f32 %v1341, %v1279
      %v1343 = vmul.f32 %v1342, %v1341
      %v1344 = vmul.f32 0.5, %v1343
      %v1345 = vsub.f32 1.5, %v1344
      %v1346 = vmul.f32 %v1341, %v1345
      %vm1347 = vweird.f32 %v1279
      %vm1348 = vweird.f32 %v1341
      %vm1349 = vmor %vm1347, %vm1348
      %v1350 = vsel %vm1349, %v1341, %v1346
      %v1351 = vrsqrt.pop %v1280
      %v1352 = vmul.f32 %v1351, %v1280
      %v1353 = vmul.f32 %v1352, %v1351
      %v1354 = vmul.f32 0.5, %v1353
      %v1355 = vsub.f32 1.5, %v1354
      %v1356 = vmul.f32 %v1351, %v1355
      %vm1357 = vweird.f32 %v1280
      %vm1358 = vweird.f32 %v1351
      %vm1359 = vmor %vm1357, %vm1358
      %v1360 = vsel %vm1359, %v1351, %v1356
      %v1361 = vmul.f32 %v1233, %v1290
      %v1362 = vmul.f32 %v1234, %v1300
      %v1363 = vmul.f32 %v1235, %v1310
      %v1364 = vmul.f32 %v1236, %v1320
      %v1365 = vmul.f32 %v1237, %v1330
      %v1366 = vmul.f32 %v1238, %v1340
      %v1367 = vmul.f32 %v1239, %v1350
      %v1368 = vmul.f32 %v1240, %v1360
      %v1369 = vld [vmem:[%s6] sm:$0x1]
      %v1371 = vperm.slane %v1369, 0
      %v1373 = vmul.f32 %v1361, %v1371
      %v1374 = vmul.f32 %v1362, %v1371
      %v1375 = vmul.f32 %v1363, %v1371
      %v1376 = vmul.f32 %v1364, %v1371
      %v1377 = vmul.f32 %v1365, %v1371
      %v1378 = vmul.f32 %v1366, %v1371
      %v1379 = vmul.f32 %v1367, %v1371
      %v1380 = vmul.f32 %v1368, %v1371
      %v1381 = vld [vmem:[%s7] sm:$0x1]
      %v1383 = vperm.slane %v1381, 0
      %v1385 = vadd.f32 %v1373, %v1383
      %v1386 = vadd.f32 %v1374, %v1383
      %v1387 = vadd.f32 %v1375, %v1383
      %v1388 = vadd.f32 %v1376, %v1383
      %v1389 = vadd.f32 %v1377, %v1383
      %v1390 = vadd.f32 %v1378, %v1383
      %v1391 = vadd.f32 %v1379, %v1383
      %v1392 = vadd.f32 %v1380, %v1383
      %v1393 = vpack.c.bf16 %v1386, %v1385
      %v1394 = vpack.c.bf16 %v1388, %v1387
      %v1395 = vpack.c.bf16 %v1390, %v1389
      %v1396 = vpack.c.bf16 %v1392, %v1391
      %v1397 = vld [vmem:[%s8] sm:$0xff]
      %v1398 = vld [vmem:[%s8 + $0x8] sm:$0xff]
      %v1399 = vld [vmem:[%s8 + $0x10] sm:$0xff]
      %v1400 = vld [vmem:[%s8 + $0x18] sm:$0xff]
      %v1401 = vld [vmem:[%s8 + $0x20] sm:$0xff]
      %v1402 = vld [vmem:[%s8 + $0x28] sm:$0xff]
      %v1403 = vld [vmem:[%s8 + $0x30] sm:$0xff]
      %v1404 = vld [vmem:[%s8 + $0x38] sm:$0xff]
      %v1405 = vld [vmem:[%s8 + $0x40] sm:$0xff]
      %v1406 = vld [vmem:[%s8 + $0x48] sm:$0xff]
      %v1407 = vld [vmem:[%s8 + $0x50] sm:$0xff]
      %v1408 = vld [vmem:[%s8 + $0x58] sm:$0xff]
      %v1409 = vld [vmem:[%s8 + $0x60] sm:$0xff]
      %v1410 = vld [vmem:[%s8 + $0x68] sm:$0xff]
      %v1411 = vld [vmem:[%s8 + $0x70] sm:$0xff]
      %v1412 = vld [vmem:[%s8 + $0x78] sm:$0xff]
      %v1413 = vld [vmem:[%s9] sm:$0x3]
      %v1415 = vperm.slane %v1413, 0
      %v1416 = vperm.slane %v1413, 1
      %v1435 = vunpack.c.l.b16 %v1397
      %v1436 = vunpack.c.h.b16 %v1397
      %v1437 = vunpack.c.l.b16 %v1398
      %v1438 = vunpack.c.h.b16 %v1398
      %v1439 = vunpack.c.l.b16 %v1399
      %v1440 = vunpack.c.h.b16 %v1399
      %v1441 = vunpack.c.l.b16 %v1400
      %v1442 = vunpack.c.h.b16 %v1400
      %v1443 = vunpack.c.l.b16 %v1401
      %v1444 = vunpack.c.h.b16 %v1401
      %v1445 = vunpack.c.l.b16 %v1402
      %v1446 = vunpack.c.h.b16 %v1402
      %v1447 = vunpack.c.l.b16 %v1403
      %v1448 = vunpack.c.h.b16 %v1403
      %v1449 = vunpack.c.l.b16 %v1404
      %v1450 = vunpack.c.h.b16 %v1404
      %v1451 = vunpack.c.l.b16 %v1405
      %v1452 = vunpack.c.h.b16 %v1405
      %v1453 = vunpack.c.l.b16 %v1406
      %v1454 = vunpack.c.h.b16 %v1406
      %v1455 = vunpack.c.l.b16 %v1407
      %v1456 = vunpack.c.h.b16 %v1407
      %v1457 = vunpack.c.l.b16 %v1408
      %v1458 = vunpack.c.h.b16 %v1408
      %v1459 = vunpack.c.l.b16 %v1409
      %v1460 = vunpack.c.h.b16 %v1409
      %v1461 = vunpack.c.l.b16 %v1410
      %v1462 = vunpack.c.h.b16 %v1410
      %v1463 = vunpack.c.l.b16 %v1411
      %v1464 = vunpack.c.h.b16 %v1411
      %v1465 = vunpack.c.l.b16 %v1412
      %v1466 = vunpack.c.h.b16 %v1412
      %v1467 = vpack.c.b16 %v1437, %v1435
      %v1468 = vpack.c.b16 %v1438, %v1436
      %v1469 = vpack.c.b16 %v1441, %v1439
      %v1470 = vpack.c.b16 %v1442, %v1440
      %v1471 = vpack.c.b16 %v1445, %v1443
      %v1472 = vpack.c.b16 %v1446, %v1444
      %v1473 = vpack.c.b16 %v1449, %v1447
      %v1474 = vpack.c.b16 %v1450, %v1448
      %v1475 = vpack.c.b16 %v1453, %v1451
      %v1476 = vpack.c.b16 %v1454, %v1452
      %v1477 = vpack.c.b16 %v1457, %v1455
      %v1478 = vpack.c.b16 %v1458, %v1456
      %v1479 = vpack.c.b16 %v1461, %v1459
      %v1480 = vpack.c.b16 %v1462, %v1460
      %v1481 = vpack.c.b16 %v1465, %v1463
      %v1482 = vpack.c.b16 %v1466, %v1464
      %1499 = vmatpush.bf16.msra.mxu0 %v1481
      %1500 = vmatpush.bf16.msra.mxu0 %v1479
      %1501 = vmatpush.bf16.msra.mxu0 %v1477
      %1502 = vmatpush.bf16.msra.mxu0 %v1475
      %1503 = vmatpush.bf16.msra.mxu0 %v1473
      %1504 = vmatpush.bf16.msra.mxu0 %v1471
      %1505 = vmatpush.bf16.msra.mxu0 %v1469
      %1506 = vmatpush.bf16.msra.mxu0 %v1467
      %1507 = vmatmul.bf16.gmra.mxu0 %v1393
      %v1508 = vpop.f32.mrf.mxu0
      %v1509 = vadd.f32 %v1415, %v1508
      %v1510 = vpop.f32.mrf.mxu0
      %v1511 = vadd.f32 %v1415, %v1510
      %1512 = vmatmul.bf16.gmra.mxu0 %v1394
      %v1513 = vpop.f32.mrf.mxu0
      %v1514 = vadd.f32 %v1415, %v1513
      %v1515 = vpop.f32.mrf.mxu0
      %v1516 = vadd.f32 %v1415, %v1515
      %1517 = vmatmul.bf16.gmra.mxu0 %v1395
      %v1518 = vpop.f32.mrf.mxu0
      %v1519 = vadd.f32 %v1415, %v1518
      %v1520 = vpop.f32.mrf.mxu0
      %v1521 = vadd.f32 %v1415, %v1520
      %1522 = vmatmul.bf16.gmra.mxu0 %v1396
      %v1523 = vpop.f32.mrf.mxu0
      %v1524 = vadd.f32 %v1415, %v1523
      %v1525 = vpop.f32.mrf.mxu0
      %v1526 = vadd.f32 %v1415, %v1525
      %1527 = vdwg.mxu0
      %1528 = vmatpush.bf16.msra.mxu0 %v1482
      %1529 = vmatpush.bf16.msra.mxu0 %v1480
      %1530 = vmatpush.bf16.msra.mxu0 %v1478
      %1531 = vmatpush.bf16.msra.mxu0 %v1476
      %1532 = vmatpush.bf16.msra.mxu0 %v1474
      %1533 = vmatpush.bf16.msra.mxu0 %v1472
      %1534 = vmatpush.bf16.msra.mxu0 %v1470
      %1535 = vmatpush.bf16.msra.mxu0 %v1468
      %1536 = vmatmul.bf16.gmra.mxu0 %v1393
      %v1537 = vpop.f32.mrf.mxu0
      %v1538 = vadd.f32 %v1416, %v1537
      %v1539 = vpop.f32.mrf.mxu0
      %v1540 = vadd.f32 %v1416, %v1539
      %1541 = vmatmul.bf16.gmra.mxu0 %v1394
      %v1542 = vpop.f32.mrf.mxu0
      %v1543 = vadd.f32 %v1416, %v1542
      %v1544 = vpop.f32.mrf.mxu0
      %v1545 = vadd.f32 %v1416, %v1544
      %1546 = vmatmul.bf16.gmra.mxu0 %v1395
      %v1547 = vpop.f32.mrf.mxu0
      %v1548 = vadd.f32 %v1416, %v1547
      %v1549 = vpop.f32.mrf.mxu0
      %v1550 = vadd.f32 %v1416, %v1549
      %1551 = vmatmul.bf16.gmra.mxu0 %v1396
      %v1552 = vpop.f32.mrf.mxu0
      %v1553 = vadd.f32 %v1416, %v1552
      %v1554 = vpop.f32.mrf.mxu0
      %v1555 = vadd.f32 %v1416, %v1554
      %1556 = vdwg.mxu0
      %v1557 = vmul.f32 %v1509, %v1509
      %v1558 = vmul.f32 %v1538, %v1538
      %v1559 = vmul.f32 %v1511, %v1511
      %v1560 = vmul.f32 %v1540, %v1540
      %v1561 = vmul.f32 %v1514, %v1514
      %v1562 = vmul.f32 %v1543, %v1543
      %v1563 = vmul.f32 %v1516, %v1516
      %v1564 = vmul.f32 %v1545, %v1545
      %v1565 = vmul.f32 %v1519, %v1519
      %v1566 = vmul.f32 %v1548, %v1548
      %v1567 = vmul.f32 %v1521, %v1521
      %v1568 = vmul.f32 %v1550, %v1550
      %v1569 = vmul.f32 %v1524, %v1524
      %v1570 = vmul.f32 %v1553, %v1553
      %v1571 = vmul.f32 %v1526, %v1526
      %v1572 = vmul.f32 %v1555, %v1555
      %v1573 = vmul.f32 %v1509, %v1557
      %v1574 = vmul.f32 %v1538, %v1558
      %v1575 = vmul.f32 %v1511, %v1559
      %v1576 = vmul.f32 %v1540, %v1560
      %v1577 = vmul.f32 %v1514, %v1561
      %v1578 = vmul.f32 %v1543, %v1562
      %v1579 = vmul.f32 %v1516, %v1563
      %v1580 = vmul.f32 %v1545, %v1564
      %v1581 = vmul.f32 %v1519, %v1565
      %v1582 = vmul.f32 %v1548, %v1566
      %v1583 = vmul.f32 %v1521, %v1567
      %v1584 = vmul.f32 %v1550, %v1568
      %v1585 = vmul.f32 %v1524, %v1569
      %v1586 = vmul.f32 %v1553, %v1570
      %v1587 = vmul.f32 %v1526, %v1571
      %v1588 = vmul.f32 %v1555, %v1572
      %v1589 = vmul.f32 %v1573, 0.044715
      %v1590 = vmul.f32 %v1574, 0.044715
      %v1591 = vmul.f32 %v1575, 0.044715
      %v1592 = vmul.f32 %v1576, 0.044715
      %v1593 = vmul.f32 %v1577, 0.044715
      %v1594 = vmul.f32 %v1578, 0.044715
      %v1595 = vmul.f32 %v1579, 0.044715
      %v1596 = vmul.f32 %v1580, 0.044715
      %v1597 = vmul.f32 %v1581, 0.044715
      %v1598 = vmul.f32 %v1582, 0.044715
      %v1599 = vmul.f32 %v1583, 0.044715
      %v1600 = vmul.f32 %v1584, 0.044715
      %v1601 = vmul.f32 %v1585, 0.044715
      %v1602 = vmul.f32 %v1586, 0.044715
      %v1603 = vmul.f32 %v1587, 0.044715
      %v1604 = vmul.f32 %v1588, 0.044715
      %v1605 = vadd.f32 %v1509, %v1589
      %v1606 = vadd.f32 %v1538, %v1590
      %v1607 = vadd.f32 %v1511, %v1591
      %v1608 = vadd.f32 %v1540, %v1592
      %v1609 = vadd.f32 %v1514, %v1593
      %v1610 = vadd.f32 %v1543, %v1594
      %v1611 = vadd.f32 %v1516, %v1595
      %v1612 = vadd.f32 %v1545, %v1596
      %v1613 = vadd.f32 %v1519, %v1597
      %v1614 = vadd.f32 %v1548, %v1598
      %v1615 = vadd.f32 %v1521, %v1599
      %v1616 = vadd.f32 %v1550, %v1600
      %v1617 = vadd.f32 %v1524, %v1601
      %v1618 = vadd.f32 %v1553, %v1602
      %v1619 = vadd.f32 %v1526, %v1603
      %v1620 = vadd.f32 %v1555, %v1604
      %v1621 = vmul.f32 %v1605, 0.7978846
      %v1622 = vmul.f32 %v1606, 0.7978846
      %v1623 = vmul.f32 %v1607, 0.7978846
      %v1624 = vmul.f32 %v1608, 0.7978846
      %v1625 = vmul.f32 %v1609, 0.7978846
      %v1626 = vmul.f32 %v1610, 0.7978846
      %v1627 = vmul.f32 %v1611, 0.7978846
      %v1628 = vmul.f32 %v1612, 0.7978846
      %v1629 = vmul.f32 %v1613, 0.7978846
      %v1630 = vmul.f32 %v1614, 0.7978846
      %v1631 = vmul.f32 %v1615, 0.7978846
      %v1632 = vmul.f32 %v1616, 0.7978846
      %v1633 = vmul.f32 %v1617, 0.7978846
      %v1634 = vmul.f32 %v1618, 0.7978846
      %v1635 = vmul.f32 %v1619, 0.7978846
      %v1636 = vmul.f32 %v1620, 0.7978846
      %v1637 = vtanh.pop %v1621
      %v1638 = vtanh.pop %v1622
      %v1639 = vtanh.pop %v1623
      %v1640 = vtanh.pop %v1624
      %v1641 = vtanh.pop %v1625
      %v1642 = vtanh.pop %v1626
      %v1643 = vtanh.pop %v1627
      %v1644 = vtanh.pop %v1628
      %v1645 = vtanh.pop %v1629
      %v1646 = vtanh.pop %v1630
      %v1647 = vtanh.pop %v1631
      %v1648 = vtanh.pop %v1632
      %v1649 = vtanh.pop %v1633
      %v1650 = vtanh.pop %v1634
      %v1651 = vtanh.pop %v1635
      %v1652 = vtanh.pop %v1636
      %v1653 = vadd.f32 %v1637, 1.0
      %v1654 = vadd.f32 %v1638, 1.0
      %v1655 = vadd.f32 %v1639, 1.0
      %v1656 = vadd.f32 %v1640, 1.0
      %v1657 = vadd.f32 %v1641, 1.0
      %v1658 = vadd.f32 %v1642, 1.0
      %v1659 = vadd.f32 %v1643, 1.0
      %v1660 = vadd.f32 %v1644, 1.0
      %v1661 = vadd.f32 %v1645, 1.0
      %v1662 = vadd.f32 %v1646, 1.0
      %v1663 = vadd.f32 %v1647, 1.0
      %v1664 = vadd.f32 %v1648, 1.0
      %v1665 = vadd.f32 %v1649, 1.0
      %v1666 = vadd.f32 %v1650, 1.0
      %v1667 = vadd.f32 %v1651, 1.0
      %v1668 = vadd.f32 %v1652, 1.0
      %v1669 = vmul.f32 %v1653, 0.5
      %v1670 = vmul.f32 %v1654, 0.5
      %v1671 = vmul.f32 %v1655, 0.5
      %v1672 = vmul.f32 %v1656, 0.5
      %v1673 = vmul.f32 %v1657, 0.5
      %v1674 = vmul.f32 %v1658, 0.5
      %v1675 = vmul.f32 %v1659, 0.5
      %v1676 = vmul.f32 %v1660, 0.5
      %v1677 = vmul.f32 %v1661, 0.5
      %v1678 = vmul.f32 %v1662, 0.5
      %v1679 = vmul.f32 %v1663, 0.5
      %v1680 = vmul.f32 %v1664, 0.5
      %v1681 = vmul.f32 %v1665, 0.5
      %v1682 = vmul.f32 %v1666, 0.5
      %v1683 = vmul.f32 %v1667, 0.5
      %v1684 = vmul.f32 %v1668, 0.5
      %v1685 = vmul.f32 %v1509, %v1669
      %v1686 = vmul.f32 %v1538, %v1670
      %v1687 = vmul.f32 %v1511, %v1671
      %v1688 = vmul.f32 %v1540, %v1672
      %v1689 = vmul.f32 %v1514, %v1673
      %v1690 = vmul.f32 %v1543, %v1674
      %v1691 = vmul.f32 %v1516, %v1675
      %v1692 = vmul.f32 %v1545, %v1676
      %v1693 = vmul.f32 %v1519, %v1677
      %v1694 = vmul.f32 %v1548, %v1678
      %v1695 = vmul.f32 %v1521, %v1679
      %v1696 = vmul.f32 %v1550, %v1680
      %v1697 = vmul.f32 %v1524, %v1681
      %v1698 = vmul.f32 %v1553, %v1682
      %v1699 = vmul.f32 %v1526, %v1683
      %v1700 = vmul.f32 %v1555, %v1684
      %v1701 = vpack.c.bf16 %v1687, %v1685
      %v1702 = vpack.c.bf16 %v1688, %v1686
      %v1703 = vpack.c.bf16 %v1691, %v1689
      %v1704 = vpack.c.bf16 %v1692, %v1690
      %v1705 = vpack.c.bf16 %v1695, %v1693
      %v1706 = vpack.c.bf16 %v1696, %v1694
      %v1707 = vpack.c.bf16 %v1699, %v1697
      %v1708 = vpack.c.bf16 %v1700, %v1698
      %v1709 = vld [vmem:[%s10] sm:$0xf]
      %v1710 = vld [vmem:[%s10 + $0x4] sm:$0xf]
      %v1711 = vld [vmem:[%s10 + $0x8] sm:$0xf]
      %v1712 = vld [vmem:[%s10 + $0xc] sm:$0xf]
      %v1713 = vld [vmem:[%s10 + $0x10] sm:$0xf]
      %v1714 = vld [vmem:[%s10 + $0x14] sm:$0xf]
      %v1715 = vld [vmem:[%s10 + $0x18] sm:$0xf]
      %v1716 = vld [vmem:[%s10 + $0x1c] sm:$0xf]
      %v1717 = vld [vmem:[%s10 + $0x20] sm:$0xf]
      %v1718 = vld [vmem:[%s10 + $0x24] sm:$0xf]
      %v1719 = vld [vmem:[%s10 + $0x28] sm:$0xf]
      %v1720 = vld [vmem:[%s10 + $0x2c] sm:$0xf]
      %v1721 = vld [vmem:[%s10 + $0x30] sm:$0xf]
      %v1722 = vld [vmem:[%s10 + $0x34] sm:$0xf]
      %v1723 = vld [vmem:[%s10 + $0x38] sm:$0xf]
      %v1724 = vld [vmem:[%s10 + $0x3c] sm:$0xf]
      %v1725 = vld [vmem:[%s10 + $0x40] sm:$0xf]
      %v1726 = vld [vmem:[%s10 + $0x44] sm:$0xf]
      %v1727 = vld [vmem:[%s10 + $0x48] sm:$0xf]
      %v1728 = vld [vmem:[%s10 + $0x4c] sm:$0xf]
      %v1729 = vld [vmem:[%s10 + $0x50] sm:$0xf]
      %v1730 = vld [vmem:[%s10 + $0x54] sm:$0xf]
      %v1731 = vld [vmem:[%s10 + $0x58] sm:$0xf]
      %v1732 = vld [vmem:[%s10 + $0x5c] sm:$0xf]
      %v1733 = vld [vmem:[%s10 + $0x60] sm:$0xf]
      %v1734 = vld [vmem:[%s10 + $0x64] sm:$0xf]
      %v1735 = vld [vmem:[%s10 + $0x68] sm:$0xf]
      %v1736 = vld [vmem:[%s10 + $0x6c] sm:$0xf]
      %v1737 = vld [vmem:[%s10 + $0x70] sm:$0xf]
      %v1738 = vld [vmem:[%s10 + $0x74] sm:$0xf]
      %v1739 = vld [vmem:[%s10 + $0x78] sm:$0xf]
      %v1740 = vld [vmem:[%s10 + $0x7c] sm:$0xf]
      %v1741 = vld [vmem:[%s11] sm:$0x1]
      %v1743 = vperm.slane %v1741, 0
      %v1777 = vunpack.c.l.b16 %v1709
      %v1778 = vunpack.c.l.b16 %v1710
      %v1779 = vunpack.c.l.b16 %v1711
      %v1780 = vunpack.c.l.b16 %v1712
      %v1781 = vunpack.c.l.b16 %v1713
      %v1782 = vunpack.c.l.b16 %v1714
      %v1783 = vunpack.c.l.b16 %v1715
      %v1784 = vunpack.c.l.b16 %v1716
      %v1785 = vunpack.c.l.b16 %v1717
      %v1786 = vunpack.c.l.b16 %v1718
      %v1787 = vunpack.c.l.b16 %v1719
      %v1788 = vunpack.c.l.b16 %v1720
      %v1789 = vunpack.c.l.b16 %v1721
      %v1790 = vunpack.c.l.b16 %v1722
      %v1791 = vunpack.c.l.b16 %v1723
      %v1792 = vunpack.c.l.b16 %v1724
      %v1793 = vunpack.c.l.b16 %v1725
      %v1794 = vunpack.c.l.b16 %v1726
      %v1795 = vunpack.c.l.b16 %v1727
      %v1796 = vunpack.c.l.b16 %v1728
      %v1797 = vunpack.c.l.b16 %v1729
      %v1798 = vunpack.c.l.b16 %v1730
      %v1799 = vunpack.c.l.b16 %v1731
      %v1800 = vunpack.c.l.b16 %v1732
      %v1801 = vunpack.c.l.b16 %v1733
      %v1802 = vunpack.c.l.b16 %v1734
      %v1803 = vunpack.c.l.b16 %v1735
      %v1804 = vunpack.c.l.b16 %v1736
      %v1805 = vunpack.c.l.b16 %v1737
      %v1806 = vunpack.c.l.b16 %v1738
      %v1807 = vunpack.c.l.b16 %v1739
      %v1808 = vunpack.c.l.b16 %v1740
      %v1809 = vpack.c.b16 %v1778, %v1777
      %v1810 = vpack.c.b16 %v1780, %v1779
      %v1811 = vpack.c.b16 %v1782, %v1781
      %v1812 = vpack.c.b16 %v1784, %v1783
      %v1813 = vpack.c.b16 %v1786, %v1785
      %v1814 = vpack.c.b16 %v1788, %v1787
      %v1815 = vpack.c.b16 %v1790, %v1789
      %v1816 = vpack.c.b16 %v1792, %v1791
      %v1817 = vpack.c.b16 %v1794, %v1793
      %v1818 = vpack.c.b16 %v1796, %v1795
      %v1819 = vpack.c.b16 %v1798, %v1797
      %v1820 = vpack.c.b16 %v1800, %v1799
      %v1821 = vpack.c.b16 %v1802, %v1801
      %v1822 = vpack.c.b16 %v1804, %v1803
      %v1823 = vpack.c.b16 %v1806, %v1805
      %v1824 = vpack.c.b16 %v1808, %v1807
      %1841 = vmatpush.bf16.msra.mxu0 %v1816
      %1842 = vmatpush.bf16.msra.mxu0 %v1815
      %1843 = vmatpush.bf16.msra.mxu0 %v1814
      %1844 = vmatpush.bf16.msra.mxu0 %v1813
      %1845 = vmatpush.bf16.msra.mxu0 %v1812
      %1846 = vmatpush.bf16.msra.mxu0 %v1811
      %1847 = vmatpush.bf16.msra.mxu0 %v1810
      %1848 = vmatpush.bf16.msra.mxu0 %v1809
      %1849 = vmatmul.bf16.gmra.mxu0 %v1701
      %v1850 = vpop.f32.mrf.mxu0
      %v1851 = vadd.f32 %v1743, %v1850
      %v1852 = vpop.f32.mrf.mxu0
      %v1853 = vadd.f32 %v1743, %v1852
      %1854 = vmatmul.bf16.gmra.mxu0 %v1703
      %v1855 = vpop.f32.mrf.mxu0
      %v1856 = vadd.f32 %v1743, %v1855
      %v1857 = vpop.f32.mrf.mxu0
      %v1858 = vadd.f32 %v1743, %v1857
      %1859 = vmatmul.bf16.gmra.mxu0 %v1705
      %v1860 = vpop.f32.mrf.mxu0
      %v1861 = vadd.f32 %v1743, %v1860
      %v1862 = vpop.f32.mrf.mxu0
      %v1863 = vadd.f32 %v1743, %v1862
      %1864 = vmatmul.bf16.gmra.mxu0 %v1707
      %v1865 = vpop.f32.mrf.mxu0
      %v1866 = vadd.f32 %v1743, %v1865
      %v1867 = vpop.f32.mrf.mxu0
      %v1868 = vadd.f32 %v1743, %v1867
      %1869 = vdwg.mxu0
      %1870 = vmatpush.bf16.msra.mxu0 %v1824
      %1871 = vmatpush.bf16.msra.mxu0 %v1823
      %1872 = vmatpush.bf16.msra.mxu0 %v1822
      %1873 = vmatpush.bf16.msra.mxu0 %v1821
      %1874 = vmatpush.bf16.msra.mxu0 %v1820
      %1875 = vmatpush.bf16.msra.mxu0 %v1819
      %1876 = vmatpush.bf16.msra.mxu0 %v1818
      %1877 = vmatpush.bf16.msra.mxu0 %v1817
      %1878 = vmatmul.bf16.gmra.mxu0 %v1702
      %v1879 = vpop.f32.mrf.mxu0
      %v1880 = vadd.f32 %v1851, %v1879
      %v1881 = vpop.f32.mrf.mxu0
      %v1882 = vadd.f32 %v1853, %v1881
      %1883 = vmatmul.bf16.gmra.mxu0 %v1704
      %v1884 = vpop.f32.mrf.mxu0
      %v1885 = vadd.f32 %v1856, %v1884
      %v1886 = vpop.f32.mrf.mxu0
      %v1887 = vadd.f32 %v1858, %v1886
      %1888 = vmatmul.bf16.gmra.mxu0 %v1706
      %v1889 = vpop.f32.mrf.mxu0
      %v1890 = vadd.f32 %v1861, %v1889
      %v1891 = vpop.f32.mrf.mxu0
      %v1892 = vadd.f32 %v1863, %v1891
      %1893 = vmatmul.bf16.gmra.mxu0 %v1708
      %v1894 = vpop.f32.mrf.mxu0
      %v1895 = vadd.f32 %v1866, %v1894
      %v1896 = vpop.f32.mrf.mxu0
      %v1897 = vadd.f32 %v1868, %v1896
      %1898 = vdwg.mxu0
      %v1899 = vadd.f32 %v1194, %v1880
      %v1900 = vadd.f32 %v1195, %v1882
      %v1901 = vadd.f32 %v1196, %v1885
      %v1902 = vadd.f32 %v1197, %v1887
      %v1903 = vadd.f32 %v1198, %v1890
      %v1904 = vadd.f32 %v1199, %v1892
      %v1905 = vadd.f32 %v1200, %v1895
      %v1906 = vadd.f32 %v1201, %v1897
      %v1907 = vpack.c.bf16 %v1899, %v1899
      %v1908 = vpack.c.bf16 %v1900, %v1900
      %v1909 = vpack.c.bf16 %v1901, %v1901
      %v1910 = vpack.c.bf16 %v1902, %v1902
      %v1911 = vpack.c.bf16 %v1903, %v1903
      %v1912 = vpack.c.bf16 %v1904, %v1904
      %v1913 = vpack.c.bf16 %v1905, %v1905
      %v1914 = vpack.c.bf16 %v1906, %v1906
      %1915 = vst [vmem:[%s511] sm:$0xf] %v1907
      %1916 = vst [vmem:[%s511 + $0x4] sm:$0xf] %v1908
      %1917 = vst [vmem:[%s511 + $0x8] sm:$0xf] %v1909
      %1918 = vst [vmem:[%s511 + $0xc] sm:$0xf] %v1910
      %1919 = vst [vmem:[%s511 + $0x10] sm:$0xf] %v1911
      %1920 = vst [vmem:[%s511 + $0x14] sm:$0xf] %v1912
      %1921 = vst [vmem:[%s511 + $0x18] sm:$0xf] %v1913
      %1922 = vst [vmem:[%s511 + $0x1c] sm:$0xf] %v1914
      %s1923 = sadd.s32 %s27, %s28
      %s1924 = smul.u32 8, %s1923
      %p1925 = scmp.lt.s32.totalorder %s1924, 15
      %s1926 = scalar_select %p1925, %s1924, 15
      %s1927 = smul.addr %s1926, 4
      %s1928 = scalar_lea.vmem %s12, %s1927
      // Predicated region
      $region69: #{anyloc_forward.8} parent=67 // pred_check
        %p1929 = pneg %p331
      $region70: #{anyloc_forward.8} parent=67 // pred_check_branch
        %1931 = sbr.rel (%p1929) target = $region72
      $region71: #{anyloc_forward.8} parent=67 // pred_region
        %s1932 = sadd.s32 %s27, %s28
        %s1933 = smul.u32 8, %s1932
      $region72: #{anyloc_forward.8} parent=67 // pred_fallthru
        _
    $region68: #{anyloc_forward.8} parent=5 // pred_fallthru
      _
    %p1934 = scmp.le.s32.totalorder 2, %s18
    // Predicated region
    $region73: #{anyloc_forward.8} parent=5 // pred_check
      %p1935 = pneg %p1934
    $region74: #{anyloc_forward.8} parent=5 // pred_check_branch
      %1937 = sbr.rel (%p1935) target = $region76
    $region75: #{anyloc_forward.8} parent=5 // pred_region
      %s1938 = ssub.s32 %s18, 2
      // Predicated region
      $region77: #{anyloc_forward.8} parent=75 // pred_check
        %p1939 = pneg %p337
      $region78: #{anyloc_forward.8} parent=75 // pred_check_branch
        %1941 = sbr.rel (%p1939) target = $region80
      $region79: #{anyloc_forward.8} parent=75 // pred_region
        %s1942 = sadd.s32 %s29, %s30
        %s1943 = smul.u32 8, %s1942
        %p1944 = scmp.lt.s32.totalorder %s1943, 15
        %s1945 = scalar_select %p1944, %s1943, 15
        %s1946 = smul.addr %s1945, 4
        %s1947 = scalar_lea.vmem %s12, %s1946
      $region80: #{anyloc_forward.8} parent=75 // pred_fallthru
        _
    $region76: #{anyloc_forward.8} parent=5 // pred_fallthru
      _
  $region6: #{anyloc_forward.8} parent=0 // loop_footer
    %s22 = sadd.s32 1, %s18
  $region7: #{anyloc_forward.8} parent=0 // loop_footer_branch
    %17 = sbr.rel target = $region3
  $region8: #{anyloc_forward.8} parent=0 // loop_exit
    _

// kernel: anyloc_forward.11
$region0: #{anyloc_forward.11}
  #allocation0 [shape = 'u32[]', space=smem, size = 0x4, offset = 0x4, fixed_abs, tag = 'smem constant byte address 0x4 - core index']
  #allocation1 [shape = 'u32[72,128]{1,0:T(1,128)}', space=vmem, size = 0x9000, scoped, tag = 'internal scratch']
  %s0 = inlined_call_operand.vmem [shape: bf16[128,128], index: 0, kind: input, shape index: {}]
  %s1 = inlined_call_operand.vmem [shape: f32[1,128], index: 1, kind: input, shape index: {}]
  %s2 = inlined_call_operand.vmem [shape: f32[1,128], index: 2, kind: input, shape index: {}]
  %s3 = inlined_call_operand.vmem [shape: f32[8,128], index: 3, kind: input, shape index: {}]
  %s4 = inlined_call_operand.vmem [shape: f32[2,8,128], index: 4, kind: output, shape index: {}]
  %s5 = sld [smem:[#allocation0]]
  $region49: #{anyloc_forward.11} parent=0
    _
  %s7 = ssub.s32 1, %s5
  %s8 = scalar_select 0, %s7, %s5
  loop: start=0, step=1, limit=4
  $region2: #{anyloc_forward.11} parent=0 // loop_pre_header
    _
  $region3: #{anyloc_forward.11} parent=0 // loop_header
    %s10 = sphi 0, %s14
    %p11 = scmp.ge.s32.totalorder %s10, 4
    %s20 = sphi 0, %s22
    %s23 = sphi 0, %s20
    %s24 = sphi 0, %s23
    %s40 = sphi 0, %s24
    %s44 = sphi 0, %s44
    %s46 = sphi 0, %s44
    %s47 = sphi 0, %s46
    %s61 = sphi 0, %s47
    %s65 = sphi 0, %s65
    %s67 = sphi 0, %s65
    %s68 = sphi 0, %s67
    %s82 = sphi 0, %s68
    %s86 = sphi 0, %s86
    %s88 = sphi 0, %s86
    %s89 = sphi 0, %s88
    %s103 = sphi 0, %s89
    %s109 = sphi 0, %s111
    %s112 = sphi 0, %s109
    %s113 = sphi 0, %s112
    %s129 = sphi 0, %s113
  $region4: #{anyloc_forward.11} parent=0 // loop_header_branch
    %13 = sbr.rel (%p11) target = $region8
  $region5: #{anyloc_forward.11} parent=0 // loop_body
    %s15 = ssub.s32 %s10, 1
    %s16 = ssub.s32 %s10, 2
    %s17 = sadd.s32 %s10, 1
    %s18 = ssub.s32 %s10, %s17
    %p19 = scmp.eq.s32.totalorder %s18, 0
    %s21 = sadd.s32 %s20, 1
    %s22 = scalar_select %p19, %s20, %s21
    %p25 = pneg %p19
    %p26 = scmp.eq.s32.totalorder %s10, 1
    %p27 = por %p25, %p26
    %p28 = scmp.ne.s32.totalorder %s20, %s23
    %p29 = scmp.eq.s32.totalorder %s10, 0
    %p30 = por %p28, %p29
    %p31 = scmp.ne.s32.totalorder %s20, %s23
    %p32 = scmp.eq.s32.totalorder %s15, 1
    %p33 = por %p31, %p32
    %p34 = scmp.ne.s32.totalorder %s23, %s24
    %p35 = scmp.eq.s32.totalorder %s15, 0
    %p36 = por %p34, %p35
    %p37 = scmp.ne.s32.totalorder %s23, %s24
    %p38 = scmp.eq.s32.totalorder %s16, 1
    %p39 = por %p37, %p38
    %p41 = scmp.ne.s32.totalorder %s24, %s40
    %p42 = scmp.eq.s32.totalorder %s16, 0
    %p43 = por %p41, %p42
    %s45 = sadd.s32 %s44, 1
    %p48 = scmp.eq.s32.totalorder %s10, 1
    %p49 = scmp.ne.s32.totalorder %s44, %s46
    %p50 = scmp.eq.s32.totalorder %s10, 0
    %p51 = por %p49, %p50
    %p52 = scmp.ne.s32.totalorder %s44, %s46
    %p53 = scmp.eq.s32.totalorder %s15, 1
    %p54 = por %p52, %p53
    %p55 = scmp.ne.s32.totalorder %s46, %s47
    %p56 = scmp.eq.s32.totalorder %s15, 0
    %p57 = por %p55, %p56
    %p58 = scmp.ne.s32.totalorder %s46, %s47
    %p59 = scmp.eq.s32.totalorder %s16, 1
    %p60 = por %p58, %p59
    %p62 = scmp.ne.s32.totalorder %s47, %s61
    %p63 = scmp.eq.s32.totalorder %s16, 0
    %p64 = por %p62, %p63
    %s66 = sadd.s32 %s65, 1
    %p69 = scmp.eq.s32.totalorder %s10, 1
    %p70 = scmp.ne.s32.totalorder %s65, %s67
    %p71 = scmp.eq.s32.totalorder %s10, 0
    %p72 = por %p70, %p71
    %p73 = scmp.ne.s32.totalorder %s65, %s67
    %p74 = scmp.eq.s32.totalorder %s15, 1
    %p75 = por %p73, %p74
    %p76 = scmp.ne.s32.totalorder %s67, %s68
    %p77 = scmp.eq.s32.totalorder %s15, 0
    %p78 = por %p76, %p77
    %p79 = scmp.ne.s32.totalorder %s67, %s68
    %p80 = scmp.eq.s32.totalorder %s16, 1
    %p81 = por %p79, %p80
    %p83 = scmp.ne.s32.totalorder %s68, %s82
    %p84 = scmp.eq.s32.totalorder %s16, 0
    %p85 = por %p83, %p84
    %s87 = sadd.s32 %s86, 1
    %p90 = scmp.eq.s32.totalorder %s10, 1
    %p91 = scmp.ne.s32.totalorder %s86, %s88
    %p92 = scmp.eq.s32.totalorder %s10, 0
    %p93 = por %p91, %p92
    %p94 = scmp.ne.s32.totalorder %s86, %s88
    %p95 = scmp.eq.s32.totalorder %s15, 1
    %p96 = por %p94, %p95
    %p97 = scmp.ne.s32.totalorder %s88, %s89
    %p98 = scmp.eq.s32.totalorder %s15, 0
    %p99 = por %p97, %p98
    %p100 = scmp.ne.s32.totalorder %s88, %s89
    %p101 = scmp.eq.s32.totalorder %s16, 1
    %p102 = por %p100, %p101
    %p104 = scmp.ne.s32.totalorder %s89, %s103
    %p105 = scmp.eq.s32.totalorder %s16, 0
    %p106 = por %p104, %p105
    %s107 = ssub.s32 %s10, %s17
    %p108 = scmp.eq.s32.totalorder %s107, 0
    %s110 = sadd.s32 %s109, 1
    %s111 = scalar_select %p108, %s109, %s110
    %p114 = pneg %p108
    %p115 = scmp.eq.s32.totalorder %s10, 1
    %p116 = por %p114, %p115
    %p117 = scmp.ne.s32.totalorder %s109, %s112
    %p118 = scmp.eq.s32.totalorder %s10, 0
    %p119 = por %p117, %p118
    %p120 = scmp.ne.s32.totalorder %s109, %s112
    %p121 = scmp.eq.s32.totalorder %s15, 1
    %p122 = por %p120, %p121
    %p123 = scmp.ne.s32.totalorder %s112, %s113
    %p124 = scmp.eq.s32.totalorder %s15, 0
    %p125 = por %p123, %p124
    %p126 = scmp.ne.s32.totalorder %s112, %s113
    %p127 = scmp.eq.s32.totalorder %s16, 1
    %p128 = por %p126, %p127
    %p130 = scmp.ne.s32.totalorder %s113, %s129
    %p131 = scmp.eq.s32.totalorder %s16, 0
    %p132 = por %p130, %p131
    %p133 = scmp.le.s32.totalorder 1, %s10
    %p134 = scmp.lt.s32.totalorder %s10, 3
    %p135 = pnand %p133, %p134
    %p136 = pneg %p135
    // Predicated region
    $region9: #{anyloc_forward.11} parent=5 // pred_check
      _
    $region10: #{anyloc_forward.11} parent=5 // pred_check_branch
      %138 = sbr.rel (%p135) target = $region12
    $region11: #{anyloc_forward.11} parent=5 // pred_region
      %s139 = ssub.s32 %s10, 1
      // Predicated region
      $region13: #{anyloc_forward.11} parent=11 // pred_check
        %p140 = pneg %p57
      $region14: #{anyloc_forward.11} parent=11 // pred_check_branch
        %142 = sbr.rel (%p140) target = $region16
      $region15: #{anyloc_forward.11} parent=11 // pred_region
        _
      $region16: #{anyloc_forward.11} parent=11 // pred_fallthru
        _
      // Predicated region
      $region17: #{anyloc_forward.11} parent=11 // pred_check
        %p143 = pneg %p78
      $region18: #{anyloc_forward.11} parent=11 // pred_check_branch
        %145 = sbr.rel (%p143) target = $region20
      $region19: #{anyloc_forward.11} parent=11 // pred_region
        _
      $region20: #{anyloc_forward.11} parent=11 // pred_fallthru
        _
      // Predicated region
      $region21: #{anyloc_forward.11} parent=11 // pred_check
        %p146 = pneg %p99
      $region22: #{anyloc_forward.11} parent=11 // pred_check_branch
        %148 = sbr.rel (%p146) target = $region24
      $region23: #{anyloc_forward.11} parent=11 // pred_region
        _
      $region24: #{anyloc_forward.11} parent=11 // pred_fallthru
        _
    $region12: #{anyloc_forward.11} parent=5 // pred_fallthru
      _
    %p149 = scmp.lt.s32.totalorder %s10, 2
    // Predicated region
    $region25: #{anyloc_forward.11} parent=5 // pred_check
      %p150 = pneg %p149
    $region26: #{anyloc_forward.11} parent=5 // pred_check_branch
      %152 = sbr.rel (%p150) target = $region28
    $region27: #{anyloc_forward.11} parent=5 // pred_region
      // Predicated region
      $region29: #{anyloc_forward.11} parent=27 // pred_check
        %p153 = pneg %p30
      $region30: #{anyloc_forward.11} parent=27 // pred_check_branch
        %155 = sbr.rel (%p153) target = $region32
      $region31: #{anyloc_forward.11} parent=27 // pred_region
        %s156 = smul.u32 8, %s10
        %p157 = scmp.lt.s32.totalorder %s156, 15
        %s158 = scalar_select %p157, %s156, 15
        %s159 = smul.addr %s158, 4
        %s160 = scalar_lea.vmem %s0, %s159
        %s161 = smul.u32 8, %s10
      $region32: #{anyloc_forward.11} parent=27 // pred_fallthru
        _
    $region28: #{anyloc_forward.11} parent=5 // pred_fallthru
      _
    %p162 = scmp.le.s32.totalorder 1, %s10
    %p163 = scmp.lt.s32.totalorder %s10, 3
    %p164 = pnand %p162, %p163
    %p165 = pneg %p164
    // Predicated region
    $region33: #{anyloc_forward.11} parent=5 // pred_check
      _
    $region34: #{anyloc_forward.11} parent=5 // pred_check_branch
      %167 = sbr.rel (%p164) target = $region36
    $region35: #{anyloc_forward.11} parent=5 // pred_region
      %s168 = ssub.s32 %s10, 1
      %s169 = smul.u32 8, %s15
      %p170 = scmp.lt.s32.totalorder %s169, 15
      %s171 = scalar_select %p170, %s169, 15
      %s172 = smul.addr %s171, 4
      %s173 = scalar_lea.vmem %s0, %s172
      %p174 = pneg %p36
      %p175 = pneg %p33
      %p176 = pneg %p57
      %p177 = pneg %p54
      %p178 = pneg %p78
      %p179 = pneg %p75
      %p180 = pneg %p99
      %p181 = pneg %p96
      %p182 = pneg %p125
      %p183 = pneg %p122
      %p184 = scmp.lt.s32.totalorder %s15, 1
      %s185 = scalar_select %p184, %s15, 1
      %s186 = smul.addr %s185, 8
      %s187 = scalar_lea.vmem %s4, %s186
      %s188 = smul.u32 8, %s15
      %p189 = scmp.lt.s32.totalorder %s188, 15
      %s190 = scalar_select %p189, %s188, 15
      %s191 = smul.addr %s190, 4
      %s192 = scalar_lea.vmem %s0, %s191
      %s193 = smul.u32 8, %s15
      %p194 = scmp.lt.s32.totalorder %s15, 1
      %s195 = scalar_select %p194, %s15, 1
      %s196 = smul.addr %s195, 8
      %s197 = scalar_lea.vmem %s4, %s196
      %v198 = vld [vmem:[%s192] sm:$0xf]
      %v199 = vld [vmem:[%s192 + $0x4] sm:$0xf]
      %v200 = vld [vmem:[%s192 + $0x8] sm:$0xf]
      %v201 = vld [vmem:[%s192 + $0xc] sm:$0xf]
      %v202 = vld [vmem:[%s192 + $0x10] sm:$0xf]
      %v203 = vld [vmem:[%s192 + $0x14] sm:$0xf]
      %v204 = vld [vmem:[%s192 + $0x18] sm:$0xf]
      %v205 = vld [vmem:[%s192 + $0x1c] sm:$0xf]
      %v206 = vunpack.c.l.bf16 %v198
      %v207 = vunpack.c.l.bf16 %v199
      %v208 = vunpack.c.l.bf16 %v200
      %v209 = vunpack.c.l.bf16 %v201
      %v210 = vunpack.c.l.bf16 %v202
      %v211 = vunpack.c.l.bf16 %v203
      %v212 = vunpack.c.l.bf16 %v204
      %v213 = vunpack.c.l.bf16 %v205
      %214 = vadd.xlane.f32.xlu0 %v206
      %v215 = vpop.xlane.xlu0 %214
      %216 = vadd.xlane.f32.xlu0 %v207
      %v217 = vpop.xlane.xlu0 %216
      %218 = vadd.xlane.f32.xlu0 %v208
      %v219 = vpop.xlane.xlu0 %218
      %220 = vadd.xlane.f32.xlu0 %v209
      %v221 = vpop.xlane.xlu0 %220
      %222 = vadd.xlane.f32.xlu0 %v210
      %v223 = vpop.xlane.xlu0 %222
      %224 = vadd.xlane.f32.xlu0 %v211
      %v225 = vpop.xlane.xlu0 %224
      %226 = vadd.xlane.f32.xlu0 %v212
      %v227 = vpop.xlane.xlu0 %226
      %228 = vadd.xlane.f32.xlu0 %v213
      %v229 = vpop.xlane.xlu0 %228
      %v230 = vrcp.pop 128.0
      %v231 = vmul.f32 128.0, %v230
      %v232 = vsub.f32 1.0, %v231
      %v233 = vmul.f32 %v230, %v232
      %v234 = vadd.f32 %v230, %v233
      %vm235 = vweird.f32 %v230
      %v236 = vsel %vm235, %v230, %v234
      %v237 = vmul.f32 %v215, %v236
      %v238 = vmul.f32 %v217, %v236
      %v239 = vmul.f32 %v219, %v236
      %v240 = vmul.f32 %v221, %v236
      %v241 = vmul.f32 %v223, %v236
      %v242 = vmul.f32 %v225, %v236
      %v243 = vmul.f32 %v227, %v236
      %v244 = vmul.f32 %v229, %v236
      %v245 = vsub.f32 %v206, %v237
      %v246 = vsub.f32 %v207, %v238
      %v247 = vsub.f32 %v208, %v239
      %v248 = vsub.f32 %v209, %v240
      %v249 = vsub.f32 %v210, %v241
      %v250 = vsub.f32 %v211, %v242
      %v251 = vsub.f32 %v212, %v243
      %v252 = vsub.f32 %v213, %v244
      %v253 = vmul.f32 %v245, %v245
      %v254 = vmul.f32 %v246, %v246
      %v255 = vmul.f32 %v247, %v247
      %v256 = vmul.f32 %v248, %v248
      %v257 = vmul.f32 %v249, %v249
      %v258 = vmul.f32 %v250, %v250
      %v259 = vmul.f32 %v251, %v251
      %v260 = vmul.f32 %v252, %v252
      %261 = vadd.xlane.f32.xlu0 %v253
      %v262 = vpop.xlane.xlu0 %261
      %263 = vadd.xlane.f32.xlu0 %v254
      %v264 = vpop.xlane.xlu0 %263
      %265 = vadd.xlane.f32.xlu0 %v255
      %v266 = vpop.xlane.xlu0 %265
      %267 = vadd.xlane.f32.xlu0 %v256
      %v268 = vpop.xlane.xlu0 %267
      %269 = vadd.xlane.f32.xlu0 %v257
      %v270 = vpop.xlane.xlu0 %269
      %271 = vadd.xlane.f32.xlu0 %v258
      %v272 = vpop.xlane.xlu0 %271
      %273 = vadd.xlane.f32.xlu0 %v259
      %v274 = vpop.xlane.xlu0 %273
      %275 = vadd.xlane.f32.xlu0 %v260
      %v276 = vpop.xlane.xlu0 %275
      %v277 = vmul.f32 %v262, %v236
      %v278 = vmul.f32 %v264, %v236
      %v279 = vmul.f32 %v266, %v236
      %v280 = vmul.f32 %v268, %v236
      %v281 = vmul.f32 %v270, %v236
      %v282 = vmul.f32 %v272, %v236
      %v283 = vmul.f32 %v274, %v236
      %v284 = vmul.f32 %v276, %v236
      %v285 = vadd.f32 %v277, 1e-06
      %v286 = vadd.f32 %v278, 1e-06
      %v287 = vadd.f32 %v279, 1e-06
      %v288 = vadd.f32 %v280, 1e-06
      %v289 = vadd.f32 %v281, 1e-06
      %v290 = vadd.f32 %v282, 1e-06
      %v291 = vadd.f32 %v283, 1e-06
      %v292 = vadd.f32 %v284, 1e-06
      %v293 = vrsqrt.pop %v285
      %v294 = vmul.f32 %v293, %v285
      %v295 = vmul.f32 %v294, %v293
      %v296 = vmul.f32 0.5, %v295
      %v297 = vsub.f32 1.5, %v296
      %v298 = vmul.f32 %v293, %v297
      %vm299 = vweird.f32 %v285
      %vm300 = vweird.f32 %v293
      %vm301 = vmor %vm299, %vm300
      %v302 = vsel %vm301, %v293, %v298
      %v303 = vrsqrt.pop %v286
      %v304 = vmul.f32 %v303, %v286
      %v305 = vmul.f32 %v304, %v303
      %v306 = vmul.f32 0.5, %v305
      %v307 = vsub.f32 1.5, %v306
      %v308 = vmul.f32 %v303, %v307
      %vm309 = vweird.f32 %v286
      %vm310 = vweird.f32 %v303
      %vm311 = vmor %vm309, %vm310
      %v312 = vsel %vm311, %v303, %v308
      %v313 = vrsqrt.pop %v287
      %v314 = vmul.f32 %v313, %v287
      %v315 = vmul.f32 %v314, %v313
      %v316 = vmul.f32 0.5, %v315
      %v317 = vsub.f32 1.5, %v316
      %v318 = vmul.f32 %v313, %v317
      %vm319 = vweird.f32 %v287
      %vm320 = vweird.f32 %v313
      %vm321 = vmor %vm319, %vm320
      %v322 = vsel %vm321, %v313, %v318
      %v323 = vrsqrt.pop %v288
      %v324 = vmul.f32 %v323, %v288
      %v325 = vmul.f32 %v324, %v323
      %v326 = vmul.f32 0.5, %v325
      %v327 = vsub.f32 1.5, %v326
      %v328 = vmul.f32 %v323, %v327
      %vm329 = vweird.f32 %v288
      %vm330 = vweird.f32 %v323
      %vm331 = vmor %vm329, %vm330
      %v332 = vsel %vm331, %v323, %v328
      %v333 = vrsqrt.pop %v289
      %v334 = vmul.f32 %v333, %v289
      %v335 = vmul.f32 %v334, %v333
      %v336 = vmul.f32 0.5, %v335
      %v337 = vsub.f32 1.5, %v336
      %v338 = vmul.f32 %v333, %v337
      %vm339 = vweird.f32 %v289
      %vm340 = vweird.f32 %v333
      %vm341 = vmor %vm339, %vm340
      %v342 = vsel %vm341, %v333, %v338
      %v343 = vrsqrt.pop %v290
      %v344 = vmul.f32 %v343, %v290
      %v345 = vmul.f32 %v344, %v343
      %v346 = vmul.f32 0.5, %v345
      %v347 = vsub.f32 1.5, %v346
      %v348 = vmul.f32 %v343, %v347
      %vm349 = vweird.f32 %v290
      %vm350 = vweird.f32 %v343
      %vm351 = vmor %vm349, %vm350
      %v352 = vsel %vm351, %v343, %v348
      %v353 = vrsqrt.pop %v291
      %v354 = vmul.f32 %v353, %v291
      %v355 = vmul.f32 %v354, %v353
      %v356 = vmul.f32 0.5, %v355
      %v357 = vsub.f32 1.5, %v356
      %v358 = vmul.f32 %v353, %v357
      %vm359 = vweird.f32 %v291
      %vm360 = vweird.f32 %v353
      %vm361 = vmor %vm359, %vm360
      %v362 = vsel %vm361, %v353, %v358
      %v363 = vrsqrt.pop %v292
      %v364 = vmul.f32 %v363, %v292
      %v365 = vmul.f32 %v364, %v363
      %v366 = vmul.f32 0.5, %v365
      %v367 = vsub.f32 1.5, %v366
      %v368 = vmul.f32 %v363, %v367
      %vm369 = vweird.f32 %v292
      %vm370 = vweird.f32 %v363
      %vm371 = vmor %vm369, %vm370
      %v372 = vsel %vm371, %v363, %v368
      %v373 = vmul.f32 %v245, %v302
      %v374 = vmul.f32 %v246, %v312
      %v375 = vmul.f32 %v247, %v322
      %v376 = vmul.f32 %v248, %v332
      %v377 = vmul.f32 %v249, %v342
      %v378 = vmul.f32 %v250, %v352
      %v379 = vmul.f32 %v251, %v362
      %v380 = vmul.f32 %v252, %v372
      %v381 = vld [vmem:[%s1] sm:$0x1]
      %v383 = vperm.slane %v381, 0
      %v385 = vmul.f32 %v373, %v383
      %v386 = vmul.f32 %v374, %v383
      %v387 = vmul.f32 %v375, %v383
      %v388 = vmul.f32 %v376, %v383
      %v389 = vmul.f32 %v377, %v383
      %v390 = vmul.f32 %v378, %v383
      %v391 = vmul.f32 %v379, %v383
      %v392 = vmul.f32 %v380, %v383
      %v393 = vld [vmem:[%s2] sm:$0x1]
      %v395 = vperm.slane %v393, 0
      %v397 = vadd.f32 %v385, %v395
      %v398 = vadd.f32 %v386, %v395
      %v399 = vadd.f32 %v387, %v395
      %v400 = vadd.f32 %v388, %v395
      %v401 = vadd.f32 %v389, %v395
      %v402 = vadd.f32 %v390, %v395
      %v403 = vadd.f32 %v391, %v395
      %v404 = vadd.f32 %v392, %v395
      %v405 = vld [vmem:[%s3] sm:$0xff]
      %v406 = vmul.f32 %v397, %v397
      %v407 = vmul.f32 %v398, %v398
      %v408 = vmul.f32 %v399, %v399
      %v409 = vmul.f32 %v400, %v400
      %v410 = vmul.f32 %v401, %v401
      %v411 = vmul.f32 %v402, %v402
      %v412 = vmul.f32 %v403, %v403
      %v413 = vmul.f32 %v404, %v404
      %414 = vadd.xlane.f32.xlu0 %v406
      %v415 = vpop.xlane.xlu0 %414
      %416 = vadd.xlane.f32.xlu0 %v407
      %v417 = vpop.xlane.xlu0 %416
      %418 = vadd.xlane.f32.xlu0 %v408
      %v419 = vpop.xlane.xlu0 %418
      %420 = vadd.xlane.f32.xlu0 %v409
      %v421 = vpop.xlane.xlu0 %420
      %422 = vadd.xlane.f32.xlu0 %v410
      %v423 = vpop.xlane.xlu0 %422
      %424 = vadd.xlane.f32.xlu0 %v411
      %v425 = vpop.xlane.xlu0 %424
      %426 = vadd.xlane.f32.xlu0 %v412
      %v427 = vpop.xlane.xlu0 %426
      %428 = vadd.xlane.f32.xlu0 %v413
      %v429 = vpop.xlane.xlu0 %428
      %v430 = vadd.f32 %v415, 1e-12
      %v431 = vadd.f32 %v417, 1e-12
      %v432 = vadd.f32 %v419, 1e-12
      %v433 = vadd.f32 %v421, 1e-12
      %v434 = vadd.f32 %v423, 1e-12
      %v435 = vadd.f32 %v425, 1e-12
      %v436 = vadd.f32 %v427, 1e-12
      %v437 = vadd.f32 %v429, 1e-12
      %v438 = vrsqrt.pop %v430
      %v439 = vmul.f32 %v438, %v430
      %v440 = vmul.f32 %v439, %v438
      %v441 = vmul.f32 0.5, %v440
      %v442 = vsub.f32 1.5, %v441
      %v443 = vmul.f32 %v438, %v442
      %vm444 = vweird.f32 %v430
      %vm445 = vweird.f32 %v438
      %vm446 = vmor %vm444, %vm445
      %v447 = vsel %vm446, %v438, %v443
      %v448 = vrsqrt.pop %v431
      %v449 = vmul.f32 %v448, %v431
      %v450 = vmul.f32 %v449, %v448
      %v451 = vmul.f32 0.5, %v450
      %v452 = vsub.f32 1.5, %v451
      %v453 = vmul.f32 %v448, %v452
      %vm454 = vweird.f32 %v431
      %vm455 = vweird.f32 %v448
      %vm456 = vmor %vm454, %vm455
      %v457 = vsel %vm456, %v448, %v453
      %v458 = vrsqrt.pop %v432
      %v459 = vmul.f32 %v458, %v432
      %v460 = vmul.f32 %v459, %v458
      %v461 = vmul.f32 0.5, %v460
      %v462 = vsub.f32 1.5, %v461
      %v463 = vmul.f32 %v458, %v462
      %vm464 = vweird.f32 %v432
      %vm465 = vweird.f32 %v458
      %vm466 = vmor %vm464, %vm465
      %v467 = vsel %vm466, %v458, %v463
      %v468 = vrsqrt.pop %v433
      %v469 = vmul.f32 %v468, %v433
      %v470 = vmul.f32 %v469, %v468
      %v471 = vmul.f32 0.5, %v470
      %v472 = vsub.f32 1.5, %v471
      %v473 = vmul.f32 %v468, %v472
      %vm474 = vweird.f32 %v433
      %vm475 = vweird.f32 %v468
      %vm476 = vmor %vm474, %vm475
      %v477 = vsel %vm476, %v468, %v473
      %v478 = vrsqrt.pop %v434
      %v479 = vmul.f32 %v478, %v434
      %v480 = vmul.f32 %v479, %v478
      %v481 = vmul.f32 0.5, %v480
      %v482 = vsub.f32 1.5, %v481
      %v483 = vmul.f32 %v478, %v482
      %vm484 = vweird.f32 %v434
      %vm485 = vweird.f32 %v478
      %vm486 = vmor %vm484, %vm485
      %v487 = vsel %vm486, %v478, %v483
      %v488 = vrsqrt.pop %v435
      %v489 = vmul.f32 %v488, %v435
      %v490 = vmul.f32 %v489, %v488
      %v491 = vmul.f32 0.5, %v490
      %v492 = vsub.f32 1.5, %v491
      %v493 = vmul.f32 %v488, %v492
      %vm494 = vweird.f32 %v435
      %vm495 = vweird.f32 %v488
      %vm496 = vmor %vm494, %vm495
      %v497 = vsel %vm496, %v488, %v493
      %v498 = vrsqrt.pop %v436
      %v499 = vmul.f32 %v498, %v436
      %v500 = vmul.f32 %v499, %v498
      %v501 = vmul.f32 0.5, %v500
      %v502 = vsub.f32 1.5, %v501
      %v503 = vmul.f32 %v498, %v502
      %vm504 = vweird.f32 %v436
      %vm505 = vweird.f32 %v498
      %vm506 = vmor %vm504, %vm505
      %v507 = vsel %vm506, %v498, %v503
      %v508 = vrsqrt.pop %v437
      %v509 = vmul.f32 %v508, %v437
      %v510 = vmul.f32 %v509, %v508
      %v511 = vmul.f32 0.5, %v510
      %v512 = vsub.f32 1.5, %v511
      %v513 = vmul.f32 %v508, %v512
      %vm514 = vweird.f32 %v437
      %vm515 = vweird.f32 %v508
      %vm516 = vmor %vm514, %vm515
      %v517 = vsel %vm516, %v508, %v513
      %v518 = vmul.f32 %v397, %v447
      %v519 = vmul.f32 %v398, %v457
      %v520 = vmul.f32 %v399, %v467
      %v521 = vmul.f32 %v400, %v477
      %v522 = vmul.f32 %v401, %v487
      %v523 = vmul.f32 %v402, %v497
      %v524 = vmul.f32 %v403, %v507
      %v525 = vmul.f32 %v404, %v517
      %526 = vmatpush.xpose.msra.mxu0 0.0
      %527 = vmatpush.xpose.msra.mxu0 0.0
      %528 = vmatpush.xpose.msra.mxu0 0.0
      %529 = vmatpush.xpose.msra.mxu0 0.0
      %530 = vmatpush.xpose.msra.mxu0 0.0
      %531 = vmatpush.xpose.msra.mxu0 0.0
      %532 = vmatpush.xpose.msra.mxu0 0.0
      %533 = vmatpush.xpose.msra.mxu0 0.0
      %534 = vmatpush.xpose.msra.mxu0 0.0
      %535 = vmatpush.xpose.msra.mxu0 0.0
      %536 = vmatpush.xpose.msra.mxu0 0.0
      %537 = vmatpush.xpose.msra.mxu0 0.0
      %538 = vmatpush.xpose.msra.mxu0 0.0
      %539 = vmatpush.xpose.msra.mxu0 0.0
      %540 = vmatpush.xpose.msra.mxu0 0.0
      %541 = vmatpush.xpose.msra.mxu0 %v405
      %542 = vmatmul.f32.gmra.mxu0 %v518
      %v543 = vpop.f32.mrf.mxu0
      %v544 = vadd.f32 0.0, %v543
      %545 = vmatmul.f32.gmra.mxu0 %v519
      %v546 = vpop.f32.mrf.mxu0
      %v547 = vadd.f32 0.0, %v546
      %548 = vmatmul.f32.gmra.mxu0 %v520
      %v549 = vpop.f32.mrf.mxu0
      %v550 = vadd.f32 0.0, %v549
      %551 = vmatmul.f32.gmra.mxu0 %v521
      %v552 = vpop.f32.mrf.mxu0
      %v553 = vadd.f32 0.0, %v552
      %554 = vmatmul.f32.gmra.mxu0 %v522
      %v555 = vpop.f32.mrf.mxu0
      %v556 = vadd.f32 0.0, %v555
      %557 = vmatmul.f32.gmra.mxu0 %v523
      %v558 = vpop.f32.mrf.mxu0
      %v559 = vadd.f32 0.0, %v558
      %560 = vmatmul.f32.gmra.mxu0 %v524
      %v561 = vpop.f32.mrf.mxu0
      %v562 = vadd.f32 0.0, %v561
      %563 = vmatmul.f32.gmra.mxu0 %v525
      %v564 = vpop.f32.mrf.mxu0
      %v565 = vadd.f32 0.0, %v564
      %566 = vdwg.mxu0
      %v567 = vmul.f32 %v405, %v405
      %568 = vadd.xlane.f32.xlu0 %v567
      %v569 = vpop.xlane.xlu0 %568
      %v570 = vmul.f32 %v569, 0.5
      %v572 = vlaneseq
      %v573 = vand.u32 %v572, 127
      %v574 = vperm.slane %v570, %v573
      %vm575 = vcmask 1042434
      %v576 = vsel %vm575, %v574, %v574
      %vm577 = vcmask 1043459
      %v578 = vsel %vm577, %v574, %v576
      %vm579 = vcmask 1044484
      %v580 = vsel %vm579, %v574, %v578
      %vm581 = vcmask 1045509
      %v582 = vsel %vm581, %v574, %v580
      %vm583 = vcmask 1046534
      %v584 = vsel %vm583, %v574, %v582
      %vm585 = vcmask 1047559
      %v586 = vsel %vm585, %v574, %v584
      %v588 = vsub.f32 %v544, %v586
      %v589 = vsub.f32 %v547, %v586
      %v590 = vsub.f32 %v550, %v586
      %v591 = vsub.f32 %v553, %v586
      %v592 = vsub.f32 %v556, %v586
      %v593 = vsub.f32 %v559, %v586
      %v594 = vsub.f32 %v562, %v586
      %v595 = vsub.f32 %v565, %v586
      %vm596 = vcmask 64512
      %v597 = vsel %vm596, %v588, -inf
      %598 = vmax.xlane.f32.xlu0 %v597
      %v599 = vpop.xlane.xlu0 %598
      %v600 = vsel %vm596, %v589, -inf
      %601 = vmax.xlane.f32.xlu0 %v600
      %v602 = vpop.xlane.xlu0 %601
      %v603 = vsel %vm596, %v590, -inf
      %604 = vmax.xlane.f32.xlu0 %v603
      %v605 = vpop.xlane.xlu0 %604
      %v606 = vsel %vm596, %v591, -inf
      %607 = vmax.xlane.f32.xlu0 %v606
      %v608 = vpop.xlane.xlu0 %607
      %v609 = vsel %vm596, %v592, -inf
      %610 = vmax.xlane.f32.xlu0 %v609
      %v611 = vpop.xlane.xlu0 %610
      %v612 = vsel %vm596, %v593, -inf
      %613 = vmax.xlane.f32.xlu0 %v612
      %v614 = vpop.xlane.xlu0 %613
      %v615 = vsel %vm596, %v594, -inf
      %616 = vmax.xlane.f32.xlu0 %v615
      %v617 = vpop.xlane.xlu0 %616
      %v618 = vsel %vm596, %v595, -inf
      %619 = vmax.xlane.f32.xlu0 %v618
      %v620 = vpop.xlane.xlu0 %619
      %vm621 = vcmp.ge.f32.partialorder %v588, %v599
      %vm622 = vcmp.ge.f32.partialorder %v589, %v602
      %vm623 = vcmp.ge.f32.partialorder %v590, %v605
      %vm624 = vcmp.ge.f32.partialorder %v591, %v608
      %vm625 = vcmp.ge.f32.partialorder %v592, %v611
      %vm626 = vcmp.ge.f32.partialorder %v593, %v614
      %vm627 = vcmp.ge.f32.partialorder %v594, %v617
      %vm628 = vcmp.ge.f32.partialorder %v595, %v620
      %v629 = vsel %vm621, %v573, 8
      %v630 = vsel %vm622, %v573, 8
      %v631 = vsel %vm623, %v573, 8
      %v632 = vsel %vm624, %v573, 8
      %v633 = vsel %vm625, %v573, 8
      %v634 = vsel %vm626, %v573, 8
      %v635 = vsel %vm627, %v573, 8
      %v636 = vsel %vm628, %v573, 8
      %v637 = vsel %vm596, %v629, 2147483647
      %v638 = vand.u32 %v637, 65535
      %v639 = vshra.s32 %v637, 16
      %v640 = vcvt.s32.f32 %v638
      %v641 = vcvt.s32.f32 %v639
      %642 = vmin.xlane.f32.xlu0 %v641
      %v643 = vpop.xlane.xlu0 %642
      %vm644 = vcmp.eq.f32.partialorder %v641, %v643
      %v645 = vsel %vm644, %v640, inf
      %646 = vmin.xlane.f32.xlu0 %v645
      %v647 = vpop.xlane.xlu0 %646
      %v648 = vcvt.f32.s32 %v647
      %v649 = vcvt.f32.s32 %v643
      %v650 = vshll.u32 %v649, 16
      %v651 = vadd.s32 %v650, %v648
      %v652 = vsel %vm596, %v630, 2147483647
      %v653 = vand.u32 %v652, 65535
      %v654 = vshra.s32 %v652, 16
      %v655 = vcvt.s32.f32 %v653
      %v656 = vcvt.s32.f32 %v654
      %657 = vmin.xlane.f32.xlu0 %v656
      %v658 = vpop.xlane.xlu0 %657
      %vm659 = vcmp.eq.f32.partialorder %v656, %v658
      %v660 = vsel %vm659, %v655, inf
      %661 = vmin.xlane.f32.xlu0 %v660
      %v662 = vpop.xlane.xlu0 %661
      %v663 = vcvt.f32.s32 %v662
      %v664 = vcvt.f32.s32 %v658
      %v665 = vshll.u32 %v664, 16
      %v666 = vadd.s32 %v665, %v663
      %v667 = vsel %vm596, %v631, 2147483647
      %v668 = vand.u32 %v667, 65535
      %v669 = vshra.s32 %v667, 16
      %v670 = vcvt.s32.f32 %v668
      %v671 = vcvt.s32.f32 %v669
      %672 = vmin.xlane.f32.xlu0 %v671
      %v673 = vpop.xlane.xlu0 %672
      %vm674 = vcmp.eq.f32.partialorder %v671, %v673
      %v675 = vsel %vm674, %v670, inf
      %676 = vmin.xlane.f32.xlu0 %v675
      %v677 = vpop.xlane.xlu0 %676
      %v678 = vcvt.f32.s32 %v677
      %v679 = vcvt.f32.s32 %v673
      %v680 = vshll.u32 %v679, 16
      %v681 = vadd.s32 %v680, %v678
      %v682 = vsel %vm596, %v632, 2147483647
      %v683 = vand.u32 %v682, 65535
      %v684 = vshra.s32 %v682, 16
      %v685 = vcvt.s32.f32 %v683
      %v686 = vcvt.s32.f32 %v684
      %687 = vmin.xlane.f32.xlu0 %v686
      %v688 = vpop.xlane.xlu0 %687
      %vm689 = vcmp.eq.f32.partialorder %v686, %v688
      %v690 = vsel %vm689, %v685, inf
      %691 = vmin.xlane.f32.xlu0 %v690
      %v692 = vpop.xlane.xlu0 %691
      %v693 = vcvt.f32.s32 %v692
      %v694 = vcvt.f32.s32 %v688
      %v695 = vshll.u32 %v694, 16
      %v696 = vadd.s32 %v695, %v693
      %v697 = vsel %vm596, %v633, 2147483647
      %v698 = vand.u32 %v697, 65535
      %v699 = vshra.s32 %v697, 16
      %v700 = vcvt.s32.f32 %v698
      %v701 = vcvt.s32.f32 %v699
      %702 = vmin.xlane.f32.xlu0 %v701
      %v703 = vpop.xlane.xlu0 %702
      %vm704 = vcmp.eq.f32.partialorder %v701, %v703
      %v705 = vsel %vm704, %v700, inf
      %706 = vmin.xlane.f32.xlu0 %v705
      %v707 = vpop.xlane.xlu0 %706
      %v708 = vcvt.f32.s32 %v707
      %v709 = vcvt.f32.s32 %v703
      %v710 = vshll.u32 %v709, 16
      %v711 = vadd.s32 %v710, %v708
      %v712 = vsel %vm596, %v634, 2147483647
      %v713 = vand.u32 %v712, 65535
      %v714 = vshra.s32 %v712, 16
      %v715 = vcvt.s32.f32 %v713
      %v716 = vcvt.s32.f32 %v714
      %717 = vmin.xlane.f32.xlu0 %v716
      %v718 = vpop.xlane.xlu0 %717
      %vm719 = vcmp.eq.f32.partialorder %v716, %v718
      %v720 = vsel %vm719, %v715, inf
      %721 = vmin.xlane.f32.xlu0 %v720
      %v722 = vpop.xlane.xlu0 %721
      %v723 = vcvt.f32.s32 %v722
      %v724 = vcvt.f32.s32 %v718
      %v725 = vshll.u32 %v724, 16
      %v726 = vadd.s32 %v725, %v723
      %v727 = vsel %vm596, %v635, 2147483647
      %v728 = vand.u32 %v727, 65535
      %v729 = vshra.s32 %v727, 16
      %v730 = vcvt.s32.f32 %v728
      %v731 = vcvt.s32.f32 %v729
      %732 = vmin.xlane.f32.xlu0 %v731
      %v733 = vpop.xlane.xlu0 %732
      %vm734 = vcmp.eq.f32.partialorder %v731, %v733
      %v735 = vsel %vm734, %v730, inf
      %736 = vmin.xlane.f32.xlu0 %v735
      %v737 = vpop.xlane.xlu0 %736
      %v738 = vcvt.f32.s32 %v737
      %v739 = vcvt.f32.s32 %v733
      %v740 = vshll.u32 %v739, 16
      %v741 = vadd.s32 %v740, %v738
      %v742 = vsel %vm596, %v636, 2147483647
      %v743 = vand.u32 %v742, 65535
      %v744 = vshra.s32 %v742, 16
      %v745 = vcvt.s32.f32 %v743
      %v746 = vcvt.s32.f32 %v744
      %747 = vmin.xlane.f32.xlu0 %v746
      %v748 = vpop.xlane.xlu0 %747
      %vm749 = vcmp.eq.f32.partialorder %v746, %v748
      %v750 = vsel %vm749, %v745, inf
      %751 = vmin.xlane.f32.xlu0 %v750
      %v752 = vpop.xlane.xlu0 %751
      %v753 = vcvt.f32.s32 %v752
      %v754 = vcvt.f32.s32 %v748
      %v755 = vshll.u32 %v754, 16
      %v756 = vadd.s32 %v755, %v753
      %vm757 = vcmp.eq.s32.totalorder %v573, %v651
      %vm758 = vcmp.eq.s32.totalorder %v573, %v666
      %vm759 = vcmp.eq.s32.totalorder %v573, %v681
      %vm760 = vcmp.eq.s32.totalorder %v573, %v696
      %vm761 = vcmp.eq.s32.totalorder %v573, %v711
      %vm762 = vcmp.eq.s32.totalorder %v573, %v726
      %vm763 = vcmp.eq.s32.totalorder %v573, %v741
      %vm764 = vcmp.eq.s32.totalorder %v573, %v756
      %v765 = vsel %vm757, 1, 0
      %v766 = vsel %vm758, 1, 0
      %v767 = vsel %vm759, 1, 0
      %v768 = vsel %vm760, 1, 0
      %v769 = vsel %vm761, 1, 0
      %v770 = vsel %vm762, 1, 0
      %v771 = vsel %vm763, 1, 0
      %v772 = vsel %vm764, 1, 0
      %v773 = vcvt.s32.f32 %v765
      %v774 = vcvt.s32.f32 %v766
      %v775 = vcvt.s32.f32 %v767
      %v776 = vcvt.s32.f32 %v768
      %v777 = vcvt.s32.f32 %v769
      %v778 = vcvt.s32.f32 %v770
      %v779 = vcvt.s32.f32 %v771
      %v780 = vcvt.s32.f32 %v772
      %781 = vxpose.xlu0.b32.start [1/16] %v773, 128
      %782 = vxpose.xlu0.b32.cont [2/16] %v774, 128
      %783 = vxpose.xlu0.b32.cont [3/16] %v775, 128
      %784 = vxpose.xlu0.b32.cont [4/16] %v776, 128
      %785 = vxpose.xlu0.b32.cont [5/16] %v777, 128
      %786 = vxpose.xlu0.b32.cont [6/16] %v778, 128
      %787 = vxpose.xlu0.b32.cont [7/16] %v779, 128
      %788 = vxpose.xlu0.b32.cont [8/16] %v780, 128
      %789 = vxpose.xlu0.b32.cont [9/16] 0.0, 128
      %790 = vxpose.xlu0.b32.cont [10/16] 0.0, 128
      %791 = vxpose.xlu0.b32.cont [11/16] 0.0, 128
      %792 = vxpose.xlu0.b32.cont [12/16] 0.0, 128
      %793 = vxpose.xlu0.b32.cont [13/16] 0.0, 128
      %794 = vxpose.xlu0.b32.cont [14/16] 0.0, 128
      %795 = vxpose.xlu0.b32.cont [15/16] 0.0, 128
      %796 = vxpose.xlu0.b32.end [16/16] 0.0, 128
      %v797 = vpop.trf.xlu0
      %v798 = vpop.trf.xlu0
      %v799 = vpop.trf.xlu0
      %v800 = vpop.trf.xlu0
      %v801 = vpop.trf.xlu0
      %v802 = vpop.trf.xlu0
      %v803 = vpop.trf.xlu0
      %v804 = vpop.trf.xlu0
      %v805 = vpop.trf.xlu0
      %v806 = vpop.trf.xlu0
      %v807 = vpop.trf.xlu0
      %v808 = vpop.trf.xlu0
      %v809 = vpop.trf.xlu0
      %v810 = vpop.trf.xlu0
      %v811 = vpop.trf.xlu0
      %v812 = vpop.trf.xlu0
      %vm813 = vcmask 523264
      %v815 = vsel %vm813, %v797, 0
      %817 = vmatpush.msra.mxu0 0.0
      %818 = vmatpush.msra.mxu0 0.0
      %819 = vmatpush.msra.mxu0 0.0
      %820 = vmatpush.msra.mxu0 0.0
      %821 = vmatpush.msra.mxu0 0.0
      %822 = vmatpush.msra.mxu0 0.0
      %823 = vmatpush.msra.mxu0 0.0
      %824 = vmatpush.msra.mxu0 0.0
      %825 = vmatpush.msra.mxu0 %v525
      %826 = vmatpush.msra.mxu0 %v524
      %827 = vmatpush.msra.mxu0 %v523
      %828 = vmatpush.msra.mxu0 %v522
      %829 = vmatpush.msra.mxu0 %v521
      %830 = vmatpush.msra.mxu0 %v520
      %831 = vmatpush.msra.mxu0 %v519
      %832 = vmatpush.msra.mxu0 %v518
      %833 = vmatmul.f32.gmra.mxu0 %v815
      %v834 = vpop.f32.mrf.mxu0
      %v835 = vadd.f32 0.0, %v834
      %836 = vdwg.mxu0
      %v837 = vsel %vm596, %v773, 0.0
      %v838 = vsel %vm596, %v774, 0.0
      %v839 = vadd.f32 %v837, %v838
      %v840 = vsel %vm596, %v775, 0.0
      %v841 = vadd.f32 %v839, %v840
      %v842 = vsel %vm596, %v776, 0.0
      %v843 = vadd.f32 %v841, %v842
      %v844 = vsel %vm596, %v777, 0.0
      %v845 = vadd.f32 %v843, %v844
      %v846 = vsel %vm596, %v778, 0.0
      %v847 = vadd.f32 %v845, %v846
      %v848 = vsel %vm596, %v779, 0.0
      %v849 = vadd.f32 %v847, %v848
      %v850 = vsel %vm596, %v780, 0.0
      %v851 = vadd.f32 %v849, %v850
      %v852 = vrot.slane %v851, 4
      %v853 = vadd.f32 %v851, %v852
      %v854 = vrot.slane %v853, 2
      %v855 = vadd.f32 %v853, %v854
      %v856 = vrot.slane %v855, 1
      %v857 = vadd.f32 %v855, %v856
      %v858 = vlaneseq
      %v859 = vshrl.u32 %v858, 7
      %861 = vset.pattern.permute.xlu0 %v859
      %862 = vperm.xlu0 %861, %v857
      %v863 = vpop.permute.xlu0 %862
      %v864 = vmul.f32 %v863, %v405
      %v865 = vsub.f32 %v835, %v864
      %v866 = vmul.f32 %v865, %v865
      %867 = vadd.xlane.f32.xlu0 %v866
      %v868 = vpop.xlane.xlu0 %867
      %v869 = vadd.f32 %v868, 1e-12
      %v870 = vrsqrt.pop %v869
      %v871 = vmul.f32 %v870, %v869
      %v872 = vmul.f32 %v871, %v870
      %v873 = vmul.f32 0.5, %v872
      %v874 = vsub.f32 1.5, %v873
      %v875 = vmul.f32 %v870, %v874
      %vm876 = vweird.f32 %v869
      %vm877 = vweird.f32 %v870
      %vm878 = vmor %vm876, %vm877
      %v879 = vsel %vm878, %v870, %v875
      %v880 = vmul.f32 %v865, %v879
      %v881 = vmul.f32 %v880, %v880
      %882 = vadd.xlane.f32.xlu0 %v881
      %v883 = vpop.xlane.xlu0 %882
      %v884 = vrot.slane %v883, 4
      %v885 = vadd.f32 %v883, %v884
      %v886 = vrot.slane %v885, 2
      %v887 = vadd.f32 %v885, %v886
      %v888 = vrot.slane %v887, 1
      %v889 = vadd.f32 %v887, %v888
      %s890 = vtos %v889
      %s891 = sadd.f32 %s890, 1e-12
      %v892 = vstv %s891
      %v893 = vrsqrt.pop %v892
      %v894 = vmul.f32 %v893, %v892
      %v895 = vmul.f32 %v894, %v893
      %v896 = vmul.f32 0.5, %v895
      %v897 = vsub.f32 1.5, %v896
      %v898 = vmul.f32 %v893, %v897
      %vm899 = vweird.f32 %v892
      %vm900 = vweird.f32 %v893
      %vm901 = vmor %vm899, %vm900
      %v902 = vsel %vm901, %v893, %v898
      %s903 = vtos %v902
      %v904 = vstv %s903
      %v905 = vmul.f32 %v880, %v904
      %906 = vst [vmem:[%s197] sm:$0xff] %v905
      %p907 = scmp.lt.s32.totalorder %s15, 1
      %s908 = scalar_select %p907, %s15, 1
      %s909 = smul.addr %s908, 8
      %s910 = scalar_lea.vmem %s4, %s909
      // Predicated region
      $region37: #{anyloc_forward.11} parent=35 // pred_check
        %p911 = pneg %p122
      $region38: #{anyloc_forward.11} parent=35 // pred_check_branch
        %913 = sbr.rel (%p911) target = $region40
      $region39: #{anyloc_forward.11} parent=35 // pred_region
        _
      $region40: #{anyloc_forward.11} parent=35 // pred_fallthru
        _
    $region36: #{anyloc_forward.11} parent=5 // pred_fallthru
      _
    %p914 = scmp.le.s32.totalorder 2, %s10
    // Predicated region
    $region41: #{anyloc_forward.11} parent=5 // pred_check
      %p915 = pneg %p914
    $region42: #{anyloc_forward.11} parent=5 // pred_check_branch
      %917 = sbr.rel (%p915) target = $region44
    $region43: #{anyloc_forward.11} parent=5 // pred_region
      %s918 = ssub.s32 %s10, 2
      // Predicated region
      $region45: #{anyloc_forward.11} parent=43 // pred_check
        %p919 = pneg %p128
      $region46: #{anyloc_forward.11} parent=43 // pred_check_branch
        %921 = sbr.rel (%p919) target = $region48
      $region47: #{anyloc_forward.11} parent=43 // pred_region
        %p922 = scmp.lt.s32.totalorder %s16, 1
        %s923 = scalar_select %p922, %s16, 1
        %s924 = smul.addr %s923, 8
        %s925 = scalar_lea.vmem %s4, %s924
      $region48: #{anyloc_forward.11} parent=43 // pred_fallthru
        _
    $region44: #{anyloc_forward.11} parent=5 // pred_fallthru
      _
  $region6: #{anyloc_forward.11} parent=0 // loop_footer
    %s14 = sadd.s32 1, %s10
  $region7: #{anyloc_forward.11} parent=0 // loop_footer_branch
    %9 = sbr.rel target = $region3
  $region8: #{anyloc_forward.11} parent=0 // loop_exit
    _

</llo_original>
